<compile_context>
chip_gen: v7x
topology: tpu7x:2x2x1
jax: 0.10.0
libtpu: 0.0.40
codegen_flags: <defaults>
</compile_context>

<pallas_src>
import math
from functools import partial

import jax
import jax.numpy as jnp
from jax.experimental import pallas as pl
from jax.experimental.pallas import tpu as pltpu


PAD = 4  # zero padding of x: 3 for the 7x7 conv + 1 for the 3x3 halo


# ------------------------- layout helpers (shared) --------------------------

def _row_layout(C):
    """Row offsets of the packed, lane-broadcast weight table."""
    off, cur = {}, 0
    for name, n in (("w7", 49), ("b7", 1), ("we", 9), ("be", 1),
                    ("we1", C), ("be1", 1), ("w1x", C), ("w1l", C),
                    ("b1", 1), ("w2", 9 * C), ("b2", 1), ("w3", C),
                    ("b3", 1), ("lmask", 1)):
        off[name] = cur
        cur += n
    return off, cur


def _choose_seg(C, W):
    """Per-channel lane-segment width; prefer C*SEG to be a multiple of 128."""
    base = W + 2 * PAD
    step = 128 // math.gcd(C, 128)
    seg = -(-base // step) * step
    if seg - base > 32:            # don't waste lanes for awkward C
        seg = -(-base // 8) * 8
    return seg


def _pick_b_tile(N, cap=32):
    """Largest divisor of N <= cap that leaves >=2 grid steps (v7x megacore)."""
    best = 1
    for t in range(1, min(N, cap) + 1):
        if N % t == 0 and (N == 1 or N // t >= 2):
            best = t
    return best


# --------------------------------- kernel -----------------------------------

def lcea_kernel(wt_ref, xp_ref, o_ref, xd_ref, xs_ref, t0_ref, t1_ref,
                *, C, H, W, SEG, OFF):
    """Processes one (b, H, W) batch tile in the channel-lane-packed layout.

    wt_ref : VMEM f32[rows, PW]          lane-broadcast weight/bias/mask rows
    xp_ref : VMEM f32[b, H+8, PW]        packed, zero-padded input
    o_ref  : VMEM f32[b, C, H, W]        output (NCHW)
    xd_ref : VMEM f32[b, H+8, 2*PW]      input duplicated along lanes
    xs_ref : VMEM f32[7, b, H+8, PW]     7 lane-shifted (dx) copies of input
    t0_ref : VMEM f32[b, H+2, 2*PW]      duplicated scratch (edge/local/y2)
    t1_ref : VMEM f32[b, H+2, 2*PW]      duplicated scratch (masked y1)
    """
    PW = C * SEG
    He = H + 2

    def wrow(name, i=0):                       # one pre-broadcast (PW,) row
        return wt_ref[OFF[name] + i]

    # 1. duplicate the packed/padded input along lanes so that any cyclic
    #    channel shift becomes a plain static window load.
    xp = xp_ref[...]                           # (b, H+8, PW)
    xd_ref[:, :, 0:PW] = xp
    xd_ref[:, :, PW:2 * PW] = xp

    # 2. materialize the 7 lane-shifted (dx) copies once; every depthwise tap
    #    then becomes a cheap sublane-offset window load from VMEM.
    for dx in range(7):
        if dx == 0:
            xs_ref[0] = xp
        else:
            xs_ref[dx] = xd_ref[:, :, dx:dx + PW]

    # 3. edge branch first (its temporaries die before the heavy stages):
    #    depthwise 3x3 + bias, then 1x1 (C->1) + sigmoid via a cyclic channel
    #    reduction (result replicated across all channel segments).
    ea = eb = None
    t = 0
    for dy in range(3):
        for dx in range(3):
            v = wrow("we", t) * xs_ref[3 + dx, :, 3 + dy:3 + dy + H, :]
            if t % 2 == 0:
                ea = v if ea is None else ea + v
            else:
                eb = v if eb is None else eb + v
            t += 1
    edge = ea + eb + wrow("be")                # (b, H, PW)
    t0_ref[:, 0:H, 0:PW] = edge
    t0_ref[:, 0:H, PW:2 * PW] = edge
    acc = wrow("we1", 0) * edge
    for d in range(1, C):
        acc = acc + wrow("we1", d) * t0_ref[:, 0:H, d * SEG:d * SEG + PW]
    edge_map = jax.nn.sigmoid(acc + wrow("be1"))          # (b, H, PW)

    # 4. depthwise 7x7 local context, evaluated on the 1-px-halo extended
    #    (He, We) region (halo values are masked away in step 5).
    la = lb = None
    t = 0
    for dy in range(7):
        for dx in range(7):
            v = wrow("w7", t) * xs_ref[dx, :, dy:dy + He, :]
            if t % 2 == 0:
                la = v if la is None else la + v
            else:
                lb = v if lb is None else lb + v
            t += 1
    local = la + lb + wrow("b7")               # (b, He, PW)
    t0_ref[:, :, 0:PW] = local
    t0_ref[:, :, PW:2 * PW] = local

    # 5. 1x1 (2C->C) + folded BN + ReLU on the extended region; the halo ring
    #    is zeroed, which is exactly the zero padding the 3x3 expects.
    ya = wrow("w1x", 0) * xs_ref[3, :, 3:3 + He, :]
    yb = wrow("w1l", 0) * local
    for d in range(1, C):
        s = d * SEG
        ya = ya + wrow("w1x", d) * xd_ref[:, 3:3 + He, s + 3:s + 3 + PW]
        yb = yb + wrow("w1l", d) * t0_ref[:, :, s:s + PW]
    ri = jax.lax.broadcasted_iota(jnp.int32, (He, 1), 0)
    row_mask = ((ri >= 1) & (ri <= H)).astype(jnp.float32)        # (He, 1)
    mask2d = row_mask * wrow("lmask")                             # (He, PW)
    y1 = jnp.maximum(ya + yb + wrow("b1"), 0.0) * mask2d          # (b, He, PW)
    t1_ref[:, :, 0:PW] = y1
    t1_ref[:, :, PW:2 * PW] = y1

    # 6. 3x3 (C->C) + folded BN + ReLU: each (channel-shift d, dy, dx) tap is
    #    one packed window load at lane offset d*SEG+dx from the duplicated y1.
    za = zb = None
    t = 0
    for d in range(C):
        for dy in range(3):
            for dx in range(3):
                s = d * SEG + dx
                v = wrow("w2", d * 9 + dy * 3 + dx) * \
                    t1_ref[:, dy:dy + H, s:s + PW]
                if t % 2 == 0:
                    za = v if za is None else za + v
                else:
                    zb = v if zb is None else zb + v
                t += 1
    y2 = jnp.maximum(za + zb + wrow("b2"), 0.0)                   # (b, H, PW)
    t0_ref[:, 0:H, 0:PW] = y2
    t0_ref[:, 0:H, PW:2 * PW] = y2

    # 7. 1x1 (C->1) + sigmoid -> contrast map (replicated across segments).
    acc = wrow("w3", 0) * y2
    for d in range(1, C):
        acc = acc + wrow("w3", d) * t0_ref[:, 0:H, d * SEG:d * SEG + PW]
    contrast_map = jax.nn.sigmoid(acc + wrow("b3"))               # (b, H, PW)

    # 8. attention, apply to x, and unpack back to NCHW.
    attention = contrast_map * (1.0 + edge_map)                   # (b, H, PW)
    out_p = xs_ref[4, :, PAD:PAD + H, :] * attention              # x * attn
    for c in range(C):
        o_ref[:, c, :, :] = out_p[:, :, c * SEG:c * SEG + W].astype(o_ref.dtype)


# --------------------------------- wrapper ----------------------------------

def _build_tables(p, C, W, SEG):
    """Fold eval-mode BN into the convs and pre-broadcast every weight/bias
    into per-lane rows of one (rows, C*SEG) f32 table (kernel layout)."""
    PW = C * SEG
    eps = 1e-5
    s1 = p["g1"] / jnp.sqrt(p["v1"] + eps)
    s2 = p["g2"] / jnp.sqrt(p["v2"] + eps)
    w1f = p["w1"][:, :, 0, 0] * s1[:, None]                  # (C, 2C)
    b1f = (p["b1"] - p["m1"]) * s1 + p["bt1"]                # (C,)
    w2f = p["w2"] * s2[:, None, None, None]                  # (C, C, 3, 3)
    b2f = (p["b2"] - p["m2"]) * s2 + p["bt2"]                # (C,)
    w3 = p["w3"][0, :, 0, 0]
    we1 = p["we1"][0, :, 0, 0]

    def seg(v):                                              # (C,) -> (PW,)
        return jnp.repeat(v.astype(jnp.float32), SEG)

    oc = jnp.arange(C)
    rows = []
    for dy in range(7):
        for dx in range(7):
            rows.append(seg(p["w_dw7"][:, 0, dy, dx]))
    rows.append(seg(p["b_dw7"]))
    for dy in range(3):
        for dx in range(3):
            rows.append(seg(p["w_edw"][:, 0, dy, dx]))
    rows.append(seg(p["b_edw"]))
    for d in range(C):
        rows.append(seg(we1[(oc + d) % C]))
    rows.append(jnp.full((PW,), p["be1"][0], jnp.float32))
    for d in range(C):
        rows.append(seg(w1f[oc, (oc + d) % C]))              # x part
    for d in range(C):
        rows.append(seg(w1f[oc, C + (oc + d) % C]))          # local part
    rows.append(seg(b1f))
    for d in range(C):
        for dy in range(3):
            for dx in range(3):
                rows.append(seg(w2f[oc, (oc + d) % C, dy, dx]))
    rows.append(seg(b2f))
    for d in range(C):
        rows.append(seg(w3[(oc + d) % C]))
    rows.append(jnp.full((PW,), p["b3"][0], jnp.float32))
    q = jnp.arange(PW) % SEG
    rows.append(((q >= 1) & (q <= W)).astype(jnp.float32))   # y1 lane mask

    table = jnp.stack(rows)
    pad_r = (-table.shape[0]) % 8
    if pad_r:
        table = jnp.pad(table, ((0, pad_r), (0, 0)))
    return table


@jax.jit
def lcea_forward(x, params):
    """x: (N, C, H, W) float32; params: dict from init_params."""
    N, C, H, W = x.shape
    SEG = _choose_seg(C, W)
    PW = C * SEG
    Hp, He = H + 2 * PAD, H + 2
    OFF, _ = _row_layout(C)

    table = _build_tables(params, C, W, SEG)
    nrows_p = table.shape[0]

    # pack channels into lane segments: (N, C, H, W) -> (N, H+8, C*SEG)
    xp = jnp.pad(x.astype(jnp.float32),
                 ((0, 0), (0, 0), (PAD, PAD), (PAD, SEG - W - PAD)))
    xp = xp.transpose(0, 2, 1, 3).reshape(N, Hp, PW)

    b_tile = _pick_b_tile(N)
    kern = partial(lcea_kernel, C=C, H=H, W=W, SEG=SEG, OFF=OFF)
    return pl.pallas_call(
        kern,
        out_shape=jax.ShapeDtypeStruct((N, C, H, W), x.dtype),
        grid=(N // b_tile,),
        in_specs=[
            pl.BlockSpec((nrows_p, PW), lambda i: (0, 0)),        # weight table
            pl.BlockSpec((b_tile, Hp, PW), lambda i: (i, 0, 0)),  # packed x
        ],
        out_specs=pl.BlockSpec((b_tile, C, H, W), lambda i: (i, 0, 0, 0)),
        scratch_shapes=[
            pltpu.VMEM((b_tile, Hp, 2 * PW), jnp.float32),        # xd
            pltpu.VMEM((7, b_tile, Hp, PW), jnp.float32),         # xs
            pltpu.VMEM((b_tile, He, 2 * PW), jnp.float32),        # t0
            pltpu.VMEM((b_tile, He, 2 * PW), jnp.float32),        # t1
        ],
        compiler_params=pltpu.CompilerParams(
            dimension_semantics=("parallel",),
            vmem_limit_bytes=32 * 1024 * 1024),
    )(table, xp)


# ------------------ parameter setup (deterministic glue) --------------------

def init_params(key, C):
    ks = jax.random.split(key, 20)

    def u(k, shape, scale=0.2):
        return jax.random.uniform(k, shape, jnp.float32, -1.0, 1.0) * scale

    p = {}
    p["w_dw7"] = u(ks[0], (C, 1, 7, 7), 0.15)   # depthwise 7x7
    p["b_dw7"] = u(ks[1], (C,), 0.1)
    p["w1"] = u(ks[2], (C, 2 * C, 1, 1), 0.3)
    p["b1"] = u(ks[3], (C,), 0.1)
    p["g1"] = 1.0 + u(ks[4], (C,), 0.2)
    p["bt1"] = u(ks[5], (C,), 0.1)
    p["m1"] = u(ks[6], (C,), 0.1)
    p["v1"] = 1.0 + u(ks[7], (C,), 0.2)
    p["w2"] = u(ks[8], (C, C, 3, 3), 0.2)
    p["b2"] = u(ks[9], (C,), 0.1)
    p["g2"] = 1.0 + u(ks[10], (C,), 0.2)
    p["bt2"] = u(ks[11], (C,), 0.1)
    p["m2"] = u(ks[12], (C,), 0.1)
    p["v2"] = 1.0 + u(ks[13], (C,), 0.2)
    p["w3"] = u(ks[14], (1, C, 1, 1), 0.3)
    p["b3"] = u(ks[15], (1,), 0.1)
    p["w_edw"] = u(ks[16], (C, 1, 3, 3), 0.2)   # edge depthwise 3x3
    p["b_edw"] = u(ks[17], (C,), 0.1)
    p["we1"] = u(ks[18], (1, C, 1, 1), 0.3)
    p["be1"] = u(ks[19], (1,), 0.1)
    return p


# ---------------- pure-JAX reference (for verification) ---------------------

def reference(x, p, C):
    dn = ("NCHW", "OIHW", "NCHW")
    hp = jax.lax.Precision.HIGHEST

    def conv(inp, w, pad, groups=1):
        return jax.lax.conv_general_dilated(
            inp, w, (1, 1), [(pad, pad), (pad, pad)],
            dimension_numbers=dn, feature_group_count=groups, precision=hp)

    def bn(y, g, b, m, v):
        return (y - m[None, :, None, None]) / jnp.sqrt(v[None, :, None, None] + 1e-5) \
            * g[None, :, None, None] + b[None, :, None, None]

    local = conv(x, p["w_dw7"], 3, groups=C) + p["b_dw7"][None, :, None, None]
    cat = jnp.concatenate([x, local], axis=1)
    y1 = jax.nn.relu(bn(conv(cat, p["w1"], 0) + p["b1"][None, :, None, None],
                        p["g1"], p["bt1"], p["m1"], p["v1"]))
    y2 = jax.nn.relu(bn(conv(y1, p["w2"], 1) + p["b2"][None, :, None, None],
                        p["g2"], p["bt2"], p["m2"], p["v2"]))
    cm = jax.nn.sigmoid(conv(y2, p["w3"], 0) + p["b3"][None, :, None, None])
    edge = conv(x, p["w_edw"], 1, groups=C) + p["b_edw"][None, :, None, None]
    em = jax.nn.sigmoid(conv(edge, p["we1"], 0) + p["be1"][None, :, None, None])
    attention = cm * (1.0 + em)
    return x * attention


if __name__ == "__main__":
    N, C, H, W = 2, 4, 16, 16
    key = jax.random.PRNGKey(0)
    kx, kparam = jax.random.split(key)
    x = jax.random.normal(kx, (N, C, H, W), jnp.float32)

    params = init_params(kparam, C)

    out = jax.block_until_ready(lcea_forward(x, params))
    ref = jax.block_until_ready(reference(x, params, C))

    assert out.shape == x.shape and out.dtype == x.dtype
    max_err = float(jnp.max(jnp.abs(out - ref)))
    if not bool(jnp.allclose(out, ref, atol=2e-3, rtol=2e-3)):
        raise AssertionError(f"kernel/reference mismatch, max abs err = {max_err}")

    print("KERNEL_OK")
</pallas_src>

<mosaic_0001>
module attributes {stable_mosaic.version = 11 : i64} {
  func.func @lcea_kernel(%arg0: i32, %arg1: memref<120x128xf32, #tpu.memory_space<vmem>>, %arg2: memref<1x24x128xf32, #tpu.memory_space<vmem>>, %arg3: memref<1x4x16x16xf32, #tpu.memory_space<vmem>>, %arg4: memref<1x24x256xf32, #tpu.memory_space<vmem>>, %arg5: memref<7x1x24x128xf32, #tpu.memory_space<vmem>>, %arg6: memref<1x18x256xf32, #tpu.memory_space<vmem>>, %arg7: memref<1x18x256xf32, #tpu.memory_space<vmem>>) attributes {dimension_semantics = [#tpu.dimension_semantics<parallel>], iteration_bounds = array<i64: 2>, scalar_prefetch = 0 : i64, scratch_operands = 4 : i64, tpu.core_type = #tpu.core_type<tc>, window_params = [{pipeline_mode = #tpu.pipeline_mode<synchronous>, transform_indices = @transform_0, window_bounds = array<i64: 120, 128>}, {transform_indices = @transform_1, window_bounds = array<i64: 1, 24, 128>}, {transform_indices = @transform_2, window_bounds = array<i64: 1, 4, 16, 16>}]} {
    %c0 = arith.constant 0 : index
    %c0_0 = arith.constant 0 : index
    %c0_1 = arith.constant 0 : index
    %0 = vector.load %arg2[%c0, %c0_0, %c0_1] : memref<1x24x128xf32, #tpu.memory_space<vmem>>, vector<1x24x128xf32>
    %c0_2 = arith.constant 0 : index
    %c0_3 = arith.constant 0 : index
    %c0_4 = arith.constant 0 : index
    %1 = vector.load %arg4[%c0_2, %c0_3, %c0_4] : memref<1x24x256xf32, #tpu.memory_space<vmem>>, vector<1x24x128xf32>
    tpu.vector_store %arg4[%c0_2, %c0_3, %c0_4], %0 {strides = array<i32>} : memref<1x24x256xf32, #tpu.memory_space<vmem>>, vector<1x24x128xf32>,
    %c0_5 = arith.constant 0 : index
    %c0_6 = arith.constant 0 : index
    %c128 = arith.constant 128 : index
    %2 = vector.load %arg4[%c0_5, %c0_6, %c128] : memref<1x24x256xf32, #tpu.memory_space<vmem>>, vector<1x24x128xf32>
    tpu.vector_store %arg4[%c0_5, %c0_6, %c128], %0 {strides = array<i32>} : memref<1x24x256xf32, #tpu.memory_space<vmem>>, vector<1x24x128xf32>,
    %c0_7 = arith.constant 0 : index
    %c0_8 = arith.constant 0 : index
    %c0_9 = arith.constant 0 : index
    %c0_10 = arith.constant 0 : index
    %3 = vector.load %arg5[%c0_7, %c0_8, %c0_9, %c0_10] : memref<7x1x24x128xf32, #tpu.memory_space<vmem>>, vector<1x1x24x128xf32>
    %4 = vector.shape_cast %3 : vector<1x1x24x128xf32> to vector<1x24x128xf32>
    %5 = vector.shape_cast %0 : vector<1x24x128xf32> to vector<1x1x24x128xf32>
    tpu.vector_store %arg5[%c0_7, %c0_8, %c0_9, %c0_10], %5 {strides = array<i32>} : memref<7x1x24x128xf32, #tpu.memory_space<vmem>>, vector<1x1x24x128xf32>,
    %c0_11 = arith.constant 0 : index
    %c0_12 = arith.constant 0 : index
    %c1 = arith.constant 1 : index
    %6 = vector.load %arg4[%c0_11, %c0_12, %c1] : memref<1x24x256xf32, #tpu.memory_space<vmem>>, vector<1x24x128xf32>
    %c1_13 = arith.constant 1 : index
    %c0_14 = arith.constant 0 : index
    %c0_15 = arith.constant 0 : index
    %c0_16 = arith.constant 0 : index
    %7 = vector.load %arg5[%c1_13, %c0_14, %c0_15, %c0_16] : memref<7x1x24x128xf32, #tpu.memory_space<vmem>>, vector<1x1x24x128xf32>
    %8 = vector.shape_cast %7 : vector<1x1x24x128xf32> to vector<1x24x128xf32>
    %9 = vector.shape_cast %6 : vector<1x24x128xf32> to vector<1x1x24x128xf32>
    tpu.vector_store %arg5[%c1_13, %c0_14, %c0_15, %c0_16], %9 {strides = array<i32>} : memref<7x1x24x128xf32, #tpu.memory_space<vmem>>, vector<1x1x24x128xf32>,
    %c0_17 = arith.constant 0 : index
    %c0_18 = arith.constant 0 : index
    %c2 = arith.constant 2 : index
    %10 = vector.load %arg4[%c0_17, %c0_18, %c2] : memref<1x24x256xf32, #tpu.memory_space<vmem>>, vector<1x24x128xf32>
    %c2_19 = arith.constant 2 : index
    %c0_20 = arith.constant 0 : index
    %c0_21 = arith.constant 0 : index
    %c0_22 = arith.constant 0 : index
    %11 = vector.load %arg5[%c2_19, %c0_20, %c0_21, %c0_22] : memref<7x1x24x128xf32, #tpu.memory_space<vmem>>, vector<1x1x24x128xf32>
    %12 = vector.shape_cast %11 : vector<1x1x24x128xf32> to vector<1x24x128xf32>
    %13 = vector.shape_cast %10 : vector<1x24x128xf32> to vector<1x1x24x128xf32>
    tpu.vector_store %arg5[%c2_19, %c0_20, %c0_21, %c0_22], %13 {strides = array<i32>} : memref<7x1x24x128xf32, #tpu.memory_space<vmem>>, vector<1x1x24x128xf32>,
    %c0_23 = arith.constant 0 : index
    %c0_24 = arith.constant 0 : index
    %c3 = arith.constant 3 : index
    %14 = vector.load %arg4[%c0_23, %c0_24, %c3] : memref<1x24x256xf32, #tpu.memory_space<vmem>>, vector<1x24x128xf32>
    %c3_25 = arith.constant 3 : index
    %c0_26 = arith.constant 0 : index
    %c0_27 = arith.constant 0 : index
    %c0_28 = arith.constant 0 : index
    %15 = vector.load %arg5[%c3_25, %c0_26, %c0_27, %c0_28] : memref<7x1x24x128xf32, #tpu.memory_space<vmem>>, vector<1x1x24x128xf32>
    %16 = vector.shape_cast %15 : vector<1x1x24x128xf32> to vector<1x24x128xf32>
    %17 = vector.shape_cast %14 : vector<1x24x128xf32> to vector<1x1x24x128xf32>
    tpu.vector_store %arg5[%c3_25, %c0_26, %c0_27, %c0_28], %17 {strides = array<i32>} : memref<7x1x24x128xf32, #tpu.memory_space<vmem>>, vector<1x1x24x128xf32>,
    %c0_29 = arith.constant 0 : index
    %c0_30 = arith.constant 0 : index
    %c4 = arith.constant 4 : index
    %18 = vector.load %arg4[%c0_29, %c0_30, %c4] : memref<1x24x256xf32, #tpu.memory_space<vmem>>, vector<1x24x128xf32>
    %c4_31 = arith.constant 4 : index
    %c0_32 = arith.constant 0 : index
    %c0_33 = arith.constant 0 : index
    %c0_34 = arith.constant 0 : index
    %19 = vector.load %arg5[%c4_31, %c0_32, %c0_33, %c0_34] : memref<7x1x24x128xf32, #tpu.memory_space<vmem>>, vector<1x1x24x128xf32>
    %20 = vector.shape_cast %19 : vector<1x1x24x128xf32> to vector<1x24x128xf32>
    %21 = vector.shape_cast %18 : vector<1x24x128xf32> to vector<1x1x24x128xf32>
    tpu.vector_store %arg5[%c4_31, %c0_32, %c0_33, %c0_34], %21 {strides = array<i32>} : memref<7x1x24x128xf32, #tpu.memory_space<vmem>>, vector<1x1x24x128xf32>,
    %c0_35 = arith.constant 0 : index
    %c0_36 = arith.constant 0 : index
    %c5 = arith.constant 5 : index
    %22 = vector.load %arg4[%c0_35, %c0_36, %c5] : memref<1x24x256xf32, #tpu.memory_space<vmem>>, vector<1x24x128xf32>
    %c5_37 = arith.constant 5 : index
    %c0_38 = arith.constant 0 : index
    %c0_39 = arith.constant 0 : index
    %c0_40 = arith.constant 0 : index
    %23 = vector.load %arg5[%c5_37, %c0_38, %c0_39, %c0_40] : memref<7x1x24x128xf32, #tpu.memory_space<vmem>>, vector<1x1x24x128xf32>
    %24 = vector.shape_cast %23 : vector<1x1x24x128xf32> to vector<1x24x128xf32>
    %25 = vector.shape_cast %22 : vector<1x24x128xf32> to vector<1x1x24x128xf32>
    tpu.vector_store %arg5[%c5_37, %c0_38, %c0_39, %c0_40], %25 {strides = array<i32>} : memref<7x1x24x128xf32, #tpu.memory_space<vmem>>, vector<1x1x24x128xf32>,
    %c0_41 = arith.constant 0 : index
    %c0_42 = arith.constant 0 : index
    %c6 = arith.constant 6 : index
    %26 = vector.load %arg4[%c0_41, %c0_42, %c6] : memref<1x24x256xf32, #tpu.memory_space<vmem>>, vector<1x24x128xf32>
    %c6_43 = arith.constant 6 : index
    %c0_44 = arith.constant 0 : index
    %c0_45 = arith.constant 0 : index
    %c0_46 = arith.constant 0 : index
    %27 = vector.load %arg5[%c6_43, %c0_44, %c0_45, %c0_46] : memref<7x1x24x128xf32, #tpu.memory_space<vmem>>, vector<1x1x24x128xf32>
    %28 = vector.shape_cast %27 : vector<1x1x24x128xf32> to vector<1x24x128xf32>
    %29 = vector.shape_cast %26 : vector<1x24x128xf32> to vector<1x1x24x128xf32>
    tpu.vector_store %arg5[%c6_43, %c0_44, %c0_45, %c0_46], %29 {strides = array<i32>} : memref<7x1x24x128xf32, #tpu.memory_space<vmem>>, vector<1x1x24x128xf32>,
    %c50 = arith.constant 50 : index
    %c0_47 = arith.constant 0 : index
    %30 = vector.load %arg1[%c50, %c0_47] : memref<120x128xf32, #tpu.memory_space<vmem>>, vector<1x128xf32>
    %31 = vector.shape_cast %30 : vector<1x128xf32> to vector<128xf32>
    %c3_48 = arith.constant 3 : index
    %c0_49 = arith.constant 0 : index
    %c3_50 = arith.constant 3 : index
    %c0_51 = arith.constant 0 : index
    %32 = vector.load %arg5[%c3_48, %c0_49, %c3_50, %c0_51] : memref<7x1x24x128xf32, #tpu.memory_space<vmem>>, vector<1x1x16x128xf32>
    %33 = vector.shape_cast %32 : vector<1x1x16x128xf32> to vector<1x16x128xf32>
    %34 = vector.shape_cast %31 : vector<128xf32> to vector<1x1x128xf32>
    %35 = vector.broadcast %34 : vector<1x1x128xf32> to vector<1x16x128xf32>
    %36 = arith.mulf %35, %33 : vector<1x16x128xf32>
    %c51 = arith.constant 51 : index
    %c0_52 = arith.constant 0 : index
    %37 = vector.load %arg1[%c51, %c0_52] : memref<120x128xf32, #tpu.memory_space<vmem>>, vector<1x128xf32>
    %38 = vector.shape_cast %37 : vector<1x128xf32> to vector<128xf32>
    %c4_53 = arith.constant 4 : index
    %c0_54 = arith.constant 0 : index
    %c3_55 = arith.constant 3 : index
    %c0_56 = arith.constant 0 : index
    %39 = vector.load %arg5[%c4_53, %c0_54, %c3_55, %c0_56] : memref<7x1x24x128xf32, #tpu.memory_space<vmem>>, vector<1x1x16x128xf32>
    %40 = vector.shape_cast %39 : vector<1x1x16x128xf32> to vector<1x16x128xf32>
    %41 = vector.shape_cast %38 : vector<128xf32> to vector<1x1x128xf32>
    %42 = vector.broadcast %41 : vector<1x1x128xf32> to vector<1x16x128xf32>
    %43 = arith.mulf %42, %40 : vector<1x16x128xf32>
    %c52 = arith.constant 52 : index
    %c0_57 = arith.constant 0 : index
    %44 = vector.load %arg1[%c52, %c0_57] : memref<120x128xf32, #tpu.memory_space<vmem>>, vector<1x128xf32>
    %45 = vector.shape_cast %44 : vector<1x128xf32> to vector<128xf32>
    %c5_58 = arith.constant 5 : index
    %c0_59 = arith.constant 0 : index
    %c3_60 = arith.constant 3 : index
    %c0_61 = arith.constant 0 : index
    %46 = vector.load %arg5[%c5_58, %c0_59, %c3_60, %c0_61] : memref<7x1x24x128xf32, #tpu.memory_space<vmem>>, vector<1x1x16x128xf32>
    %47 = vector.shape_cast %46 : vector<1x1x16x128xf32> to vector<1x16x128xf32>
    %48 = vector.shape_cast %45 : vector<128xf32> to vector<1x1x128xf32>
    %49 = vector.broadcast %48 : vector<1x1x128xf32> to vector<1x16x128xf32>
    %50 = arith.mulf %49, %47 : vector<1x16x128xf32>
    %51 = arith.addf %36, %50 : vector<1x16x128xf32>
    %c53 = arith.constant 53 : index
    %c0_62 = arith.constant 0 : index
    %52 = vector.load %arg1[%c53, %c0_62] : memref<120x128xf32, #tpu.memory_space<vmem>>, vector<1x128xf32>
    %53 = vector.shape_cast %52 : vector<1x128xf32> to vector<128xf32>
    %c3_63 = arith.constant 3 : index
    %c0_64 = arith.constant 0 : index
    %c4_65 = arith.constant 4 : index
    %c0_66 = arith.constant 0 : index
    %54 = vector.load %arg5[%c3_63, %c0_64, %c4_65, %c0_66] : memref<7x1x24x128xf32, #tpu.memory_space<vmem>>, vector<1x1x16x128xf32>
    %55 = vector.shape_cast %54 : vector<1x1x16x128xf32> to vector<1x16x128xf32>
    %56 = vector.shape_cast %53 : vector<128xf32> to vector<1x1x128xf32>
    %57 = vector.broadcast %56 : vector<1x1x128xf32> to vector<1x16x128xf32>
    %58 = arith.mulf %57, %55 : vector<1x16x128xf32>
    %59 = arith.addf %43, %58 : vector<1x16x128xf32>
    %c54 = arith.constant 54 : index
    %c0_67 = arith.constant 0 : index
    %60 = vector.load %arg1[%c54, %c0_67] : memref<120x128xf32, #tpu.memory_space<vmem>>, vector<1x128xf32>
    %61 = vector.shape_cast %60 : vector<1x128xf32> to vector<128xf32>
    %c4_68 = arith.constant 4 : index
    %c0_69 = arith.constant 0 : index
    %c4_70 = arith.constant 4 : index
    %c0_71 = arith.constant 0 : index
    %62 = vector.load %arg5[%c4_68, %c0_69, %c4_70, %c0_71] : memref<7x1x24x128xf32, #tpu.memory_space<vmem>>, vector<1x1x16x128xf32>
    %63 = vector.shape_cast %62 : vector<1x1x16x128xf32> to vector<1x16x128xf32>
    %64 = vector.shape_cast %61 : vector<128xf32> to vector<1x1x128xf32>
    %65 = vector.broadcast %64 : vector<1x1x128xf32> to vector<1x16x128xf32>
    %66 = arith.mulf %65, %63 : vector<1x16x128xf32>
    %67 = arith.addf %51, %66 : vector<1x16x128xf32>
    %c55 = arith.constant 55 : index
    %c0_72 = arith.constant 0 : index
    %68 = vector.load %arg1[%c55, %c0_72] : memref<120x128xf32, #tpu.memory_space<vmem>>, vector<1x128xf32>
    %69 = vector.shape_cast %68 : vector<1x128xf32> to vector<128xf32>
    %c5_73 = arith.constant 5 : index
    %c0_74 = arith.constant 0 : index
    %c4_75 = arith.constant 4 : index
    %c0_76 = arith.constant 0 : index
    %70 = vector.load %arg5[%c5_73, %c0_74, %c4_75, %c0_76] : memref<7x1x24x128xf32, #tpu.memory_space<vmem>>, vector<1x1x16x128xf32>
    %71 = vector.shape_cast %70 : vector<1x1x16x128xf32> to vector<1x16x128xf32>
    %72 = vector.shape_cast %69 : vector<128xf32> to vector<1x1x128xf32>
    %73 = vector.broadcast %72 : vector<1x1x128xf32> to vector<1x16x128xf32>
    %74 = arith.mulf %73, %71 : vector<1x16x128xf32>
    %75 = arith.addf %59, %74 : vector<1x16x128xf32>
    %c56 = arith.constant 56 : index
    %c0_77 = arith.constant 0 : index
    %76 = vector.load %arg1[%c56, %c0_77] : memref<120x128xf32, #tpu.memory_space<vmem>>, vector<1x128xf32>
    %77 = vector.shape_cast %76 : vector<1x128xf32> to vector<128xf32>
    %c3_78 = arith.constant 3 : index
    %c0_79 = arith.constant 0 : index
    %c5_80 = arith.constant 5 : index
    %c0_81 = arith.constant 0 : index
    %78 = vector.load %arg5[%c3_78, %c0_79, %c5_80, %c0_81] : memref<7x1x24x128xf32, #tpu.memory_space<vmem>>, vector<1x1x16x128xf32>
    %79 = vector.shape_cast %78 : vector<1x1x16x128xf32> to vector<1x16x128xf32>
    %80 = vector.shape_cast %77 : vector<128xf32> to vector<1x1x128xf32>
    %81 = vector.broadcast %80 : vector<1x1x128xf32> to vector<1x16x128xf32>
    %82 = arith.mulf %81, %79 : vector<1x16x128xf32>
    %83 = arith.addf %67, %82 : vector<1x16x128xf32>
    %c57 = arith.constant 57 : index
    %c0_82 = arith.constant 0 : index
    %84 = vector.load %arg1[%c57, %c0_82] : memref<120x128xf32, #tpu.memory_space<vmem>>, vector<1x128xf32>
    %85 = vector.shape_cast %84 : vector<1x128xf32> to vector<128xf32>
    %c4_83 = arith.constant 4 : index
    %c0_84 = arith.constant 0 : index
    %c5_85 = arith.constant 5 : index
    %c0_86 = arith.constant 0 : index
    %86 = vector.load %arg5[%c4_83, %c0_84, %c5_85, %c0_86] : memref<7x1x24x128xf32, #tpu.memory_space<vmem>>, vector<1x1x16x128xf32>
    %87 = vector.shape_cast %86 : vector<1x1x16x128xf32> to vector<1x16x128xf32>
    %88 = vector.shape_cast %85 : vector<128xf32> to vector<1x1x128xf32>
    %89 = vector.broadcast %88 : vector<1x1x128xf32> to vector<1x16x128xf32>
    %90 = arith.mulf %89, %87 : vector<1x16x128xf32>
    %91 = arith.addf %75, %90 : vector<1x16x128xf32>
    %c58 = arith.constant 58 : index
    %c0_87 = arith.constant 0 : index
    %92 = vector.load %arg1[%c58, %c0_87] : memref<120x128xf32, #tpu.memory_space<vmem>>, vector<1x128xf32>
    %93 = vector.shape_cast %92 : vector<1x128xf32> to vector<128xf32>
    %c5_88 = arith.constant 5 : index
    %c0_89 = arith.constant 0 : index
    %c5_90 = arith.constant 5 : index
    %c0_91 = arith.constant 0 : index
    %94 = vector.load %arg5[%c5_88, %c0_89, %c5_90, %c0_91] : memref<7x1x24x128xf32, #tpu.memory_space<vmem>>, vector<1x1x16x128xf32>
    %95 = vector.shape_cast %94 : vector<1x1x16x128xf32> to vector<1x16x128xf32>
    %96 = vector.shape_cast %93 : vector<128xf32> to vector<1x1x128xf32>
    %97 = vector.broadcast %96 : vector<1x1x128xf32> to vector<1x16x128xf32>
    %98 = arith.mulf %97, %95 : vector<1x16x128xf32>
    %99 = arith.addf %83, %98 : vector<1x16x128xf32>
    %100 = arith.addf %99, %91 : vector<1x16x128xf32>
    %c59 = arith.constant 59 : index
    %c0_92 = arith.constant 0 : index
    %101 = vector.load %arg1[%c59, %c0_92] : memref<120x128xf32, #tpu.memory_space<vmem>>, vector<1x128xf32>
    %102 = vector.shape_cast %101 : vector<1x128xf32> to vector<128xf32>
    %103 = vector.shape_cast %102 : vector<128xf32> to vector<1x1x128xf32>
    %104 = vector.broadcast %103 : vector<1x1x128xf32> to vector<1x16x128xf32>
    %105 = arith.addf %100, %104 : vector<1x16x128xf32>
    %c0_93 = arith.constant 0 : index
    %c0_94 = arith.constant 0 : index
    %c0_95 = arith.constant 0 : index
    %106 = vector.load %arg6[%c0_93, %c0_94, %c0_95] : memref<1x18x256xf32, #tpu.memory_space<vmem>>, vector<1x16x128xf32>
    tpu.vector_store %arg6[%c0_93, %c0_94, %c0_95], %105 {strides = array<i32>} : memref<1x18x256xf32, #tpu.memory_space<vmem>>, vector<1x16x128xf32>,
    %c0_96 = arith.constant 0 : index
    %c0_97 = arith.constant 0 : index
    %c128_98 = arith.constant 128 : index
    %107 = vector.load %arg6[%c0_96, %c0_97, %c128_98] : memref<1x18x256xf32, #tpu.memory_space<vmem>>, vector<1x16x128xf32>
    tpu.vector_store %arg6[%c0_96, %c0_97, %c128_98], %105 {strides = array<i32>} : memref<1x18x256xf32, #tpu.memory_space<vmem>>, vector<1x16x128xf32>,
    %c60 = arith.constant 60 : index
    %c0_99 = arith.constant 0 : index
    %108 = vector.load %arg1[%c60, %c0_99] : memref<120x128xf32, #tpu.memory_space<vmem>>, vector<1x128xf32>
    %109 = vector.shape_cast %108 : vector<1x128xf32> to vector<128xf32>
    %110 = vector.shape_cast %109 : vector<128xf32> to vector<1x1x128xf32>
    %111 = vector.broadcast %110 : vector<1x1x128xf32> to vector<1x16x128xf32>
    %112 = arith.mulf %111, %105 : vector<1x16x128xf32>
    %c61 = arith.constant 61 : index
    %c0_100 = arith.constant 0 : index
    %113 = vector.load %arg1[%c61, %c0_100] : memref<120x128xf32, #tpu.memory_space<vmem>>, vector<1x128xf32>
    %114 = vector.shape_cast %113 : vector<1x128xf32> to vector<128xf32>
    %c0_101 = arith.constant 0 : index
    %c0_102 = arith.constant 0 : index
    %c32 = arith.constant 32 : index
    %115 = vector.load %arg6[%c0_101, %c0_102, %c32] : memref<1x18x256xf32, #tpu.memory_space<vmem>>, vector<1x16x128xf32>
    %116 = vector.shape_cast %114 : vector<128xf32> to vector<1x1x128xf32>
    %117 = vector.broadcast %116 : vector<1x1x128xf32> to vector<1x16x128xf32>
    %118 = arith.mulf %117, %115 : vector<1x16x128xf32>
    %119 = arith.addf %112, %118 : vector<1x16x128xf32>
    %c62 = arith.constant 62 : index
    %c0_103 = arith.constant 0 : index
    %120 = vector.load %arg1[%c62, %c0_103] : memref<120x128xf32, #tpu.memory_space<vmem>>, vector<1x128xf32>
    %121 = vector.shape_cast %120 : vector<1x128xf32> to vector<128xf32>
    %c0_104 = arith.constant 0 : index
    %c0_105 = arith.constant 0 : index
    %c64 = arith.constant 64 : index
    %122 = vector.load %arg6[%c0_104, %c0_105, %c64] : memref<1x18x256xf32, #tpu.memory_space<vmem>>, vector<1x16x128xf32>
    %123 = vector.shape_cast %121 : vector<128xf32> to vector<1x1x128xf32>
    %124 = vector.broadcast %123 : vector<1x1x128xf32> to vector<1x16x128xf32>
    %125 = arith.mulf %124, %122 : vector<1x16x128xf32>
    %126 = arith.addf %119, %125 : vector<1x16x128xf32>
    %c63 = arith.constant 63 : index
    %c0_106 = arith.constant 0 : index
    %127 = vector.load %arg1[%c63, %c0_106] : memref<120x128xf32, #tpu.memory_space<vmem>>, vector<1x128xf32>
    %128 = vector.shape_cast %127 : vector<1x128xf32> to vector<128xf32>
    %c0_107 = arith.constant 0 : index
    %c0_108 = arith.constant 0 : index
    %c96 = arith.constant 96 : index
    %129 = vector.load %arg6[%c0_107, %c0_108, %c96] : memref<1x18x256xf32, #tpu.memory_space<vmem>>, vector<1x16x128xf32>
    %130 = vector.shape_cast %128 : vector<128xf32> to vector<1x1x128xf32>
    %131 = vector.broadcast %130 : vector<1x1x128xf32> to vector<1x16x128xf32>
    %132 = arith.mulf %131, %129 : vector<1x16x128xf32>
    %133 = arith.addf %126, %132 : vector<1x16x128xf32>
    %c64_109 = arith.constant 64 : index
    %c0_110 = arith.constant 0 : index
    %134 = vector.load %arg1[%c64_109, %c0_110] : memref<120x128xf32, #tpu.memory_space<vmem>>, vector<1x128xf32>
    %135 = vector.shape_cast %134 : vector<1x128xf32> to vector<128xf32>
    %136 = vector.shape_cast %135 : vector<128xf32> to vector<1x1x128xf32>
    %137 = vector.broadcast %136 : vector<1x1x128xf32> to vector<1x16x128xf32>
    %138 = arith.addf %133, %137 : vector<1x16x128xf32>
    %139 = arith.negf %138 : vector<1x16x128xf32>
    %140 = math.exp %139 : vector<1x16x128xf32>
    %cst = arith.constant 1.000000e+00 : f32
    %141 = vector.broadcast %cst : f32 to vector<1x16x128xf32>
    %142 = arith.addf %141, %140 : vector<1x16x128xf32>
    %143 = arith.divf %141, %142 : vector<1x16x128xf32>
    %c0_111 = arith.constant 0 : index
    %c0_112 = arith.constant 0 : index
    %144 = vector.load %arg1[%c0_111, %c0_112] : memref<120x128xf32, #tpu.memory_space<vmem>>, vector<1x128xf32>
    %145 = vector.shape_cast %144 : vector<1x128xf32> to vector<128xf32>
    %c0_113 = arith.constant 0 : index
    %c0_114 = arith.constant 0 : index
    %c0_115 = arith.constant 0 : index
    %c0_116 = arith.constant 0 : index
    %146 = vector.load %arg5[%c0_113, %c0_114, %c0_115, %c0_116] : memref<7x1x24x128xf32, #tpu.memory_space<vmem>>, vector<1x1x18x128xf32>
    %147 = vector.shape_cast %146 : vector<1x1x18x128xf32> to vector<1x18x128xf32>
    %148 = vector.shape_cast %145 : vector<128xf32> to vector<1x1x128xf32>
    %149 = vector.broadcast %148 : vector<1x1x128xf32> to vector<1x18x128xf32>
    %150 = arith.mulf %149, %147 : vector<1x18x128xf32>
    %c1_117 = arith.constant 1 : index
    %c0_118 = arith.constant 0 : index
    %151 = vector.load %arg1[%c1_117, %c0_118] : memref<120x128xf32, #tpu.memory_space<vmem>>, vector<1x128xf32>
    %152 = vector.shape_cast %151 : vector<1x128xf32> to vector<128xf32>
    %c1_119 = arith.constant 1 : index
    %c0_120 = arith.constant 0 : index
    %c0_121 = arith.constant 0 : index
    %c0_122 = arith.constant 0 : index
    %153 = vector.load %arg5[%c1_119, %c0_120, %c0_121, %c0_122] : memref<7x1x24x128xf32, #tpu.memory_space<vmem>>, vector<1x1x18x128xf32>
    %154 = vector.shape_cast %153 : vector<1x1x18x128xf32> to vector<1x18x128xf32>
    %155 = vector.shape_cast %152 : vector<128xf32> to vector<1x1x128xf32>
    %156 = vector.broadcast %155 : vector<1x1x128xf32> to vector<1x18x128xf32>
    %157 = arith.mulf %156, %154 : vector<1x18x128xf32>
    %c2_123 = arith.constant 2 : index
    %c0_124 = arith.constant 0 : index
    %158 = vector.load %arg1[%c2_123, %c0_124] : memref<120x128xf32, #tpu.memory_space<vmem>>, vector<1x128xf32>
    %159 = vector.shape_cast %158 : vector<1x128xf32> to vector<128xf32>
    %c2_125 = arith.constant 2 : index
    %c0_126 = arith.constant 0 : index
    %c0_127 = arith.constant 0 : index
    %c0_128 = arith.constant 0 : index
    %160 = vector.load %arg5[%c2_125, %c0_126, %c0_127, %c0_128] : memref<7x1x24x128xf32, #tpu.memory_space<vmem>>, vector<1x1x18x128xf32>
    %161 = vector.shape_cast %160 : vector<1x1x18x128xf32> to vector<1x18x128xf32>
    %162 = vector.shape_cast %159 : vector<128xf32> to vector<1x1x128xf32>
    %163 = vector.broadcast %162 : vector<1x1x128xf32> to vector<1x18x128xf32>
    %164 = arith.mulf %163, %161 : vector<1x18x128xf32>
    %165 = arith.addf %150, %164 : vector<1x18x128xf32>
    %c3_129 = arith.constant 3 : index
    %c0_130 = arith.constant 0 : index
    %166 = vector.load %arg1[%c3_129, %c0_130] : memref<120x128xf32, #tpu.memory_space<vmem>>, vector<1x128xf32>
    %167 = vector.shape_cast %166 : vector<1x128xf32> to vector<128xf32>
    %c3_131 = arith.constant 3 : index
    %c0_132 = arith.constant 0 : index
    %c0_133 = arith.constant 0 : index
    %c0_134 = arith.constant 0 : index
    %168 = vector.load %arg5[%c3_131, %c0_132, %c0_133, %c0_134] : memref<7x1x24x128xf32, #tpu.memory_space<vmem>>, vector<1x1x18x128xf32>
    %169 = vector.shape_cast %168 : vector<1x1x18x128xf32> to vector<1x18x128xf32>
    %170 = vector.shape_cast %167 : vector<128xf32> to vector<1x1x128xf32>
    %171 = vector.broadcast %170 : vector<1x1x128xf32> to vector<1x18x128xf32>
    %172 = arith.mulf %171, %169 : vector<1x18x128xf32>
    %173 = arith.addf %157, %172 : vector<1x18x128xf32>
    %c4_135 = arith.constant 4 : index
    %c0_136 = arith.constant 0 : index
    %174 = vector.load %arg1[%c4_135, %c0_136] : memref<120x128xf32, #tpu.memory_space<vmem>>, vector<1x128xf32>
    %175 = vector.shape_cast %174 : vector<1x128xf32> to vector<128xf32>
    %c4_137 = arith.constant 4 : index
    %c0_138 = arith.constant 0 : index
    %c0_139 = arith.constant 0 : index
    %c0_140 = arith.constant 0 : index
    %176 = vector.load %arg5[%c4_137, %c0_138, %c0_139, %c0_140] : memref<7x1x24x128xf32, #tpu.memory_space<vmem>>, vector<1x1x18x128xf32>
    %177 = vector.shape_cast %176 : vector<1x1x18x128xf32> to vector<1x18x128xf32>
    %178 = vector.shape_cast %175 : vector<128xf32> to vector<1x1x128xf32>
    %179 = vector.broadcast %178 : vector<1x1x128xf32> to vector<1x18x128xf32>
    %180 = arith.mulf %179, %177 : vector<1x18x128xf32>
    %181 = arith.addf %165, %180 : vector<1x18x128xf32>
    %c5_141 = arith.constant 5 : index
    %c0_142 = arith.constant 0 : index
    %182 = vector.load %arg1[%c5_141, %c0_142] : memref<120x128xf32, #tpu.memory_space<vmem>>, vector<1x128xf32>
    %183 = vector.shape_cast %182 : vector<1x128xf32> to vector<128xf32>
    %c5_143 = arith.constant 5 : index
    %c0_144 = arith.constant 0 : index
    %c0_145 = arith.constant 0 : index
    %c0_146 = arith.constant 0 : index
    %184 = vector.load %arg5[%c5_143, %c0_144, %c0_145, %c0_146] : memref<7x1x24x128xf32, #tpu.memory_space<vmem>>, vector<1x1x18x128xf32>
    %185 = vector.shape_cast %184 : vector<1x1x18x128xf32> to vector<1x18x128xf32>
    %186 = vector.shape_cast %183 : vector<128xf32> to vector<1x1x128xf32>
    %187 = vector.broadcast %186 : vector<1x1x128xf32> to vector<1x18x128xf32>
    %188 = arith.mulf %187, %185 : vector<1x18x128xf32>
    %189 = arith.addf %173, %188 : vector<1x18x128xf32>
    %c6_147 = arith.constant 6 : index
    %c0_148 = arith.constant 0 : index
    %190 = vector.load %arg1[%c6_147, %c0_148] : memref<120x128xf32, #tpu.memory_space<vmem>>, vector<1x128xf32>
    %191 = vector.shape_cast %190 : vector<1x128xf32> to vector<128xf32>
    %c6_149 = arith.constant 6 : index
    %c0_150 = arith.constant 0 : index
    %c0_151 = arith.constant 0 : index
    %c0_152 = arith.constant 0 : index
    %192 = vector.load %arg5[%c6_149, %c0_150, %c0_151, %c0_152] : memref<7x1x24x128xf32, #tpu.memory_space<vmem>>, vector<1x1x18x128xf32>
    %193 = vector.shape_cast %192 : vector<1x1x18x128xf32> to vector<1x18x128xf32>
    %194 = vector.shape_cast %191 : vector<128xf32> to vector<1x1x128xf32>
    %195 = vector.broadcast %194 : vector<1x1x128xf32> to vector<1x18x128xf32>
    %196 = arith.mulf %195, %193 : vector<1x18x128xf32>
    %197 = arith.addf %181, %196 : vector<1x18x128xf32>
    %c7 = arith.constant 7 : index
    %c0_153 = arith.constant 0 : index
    %198 = vector.load %arg1[%c7, %c0_153] : memref<120x128xf32, #tpu.memory_space<vmem>>, vector<1x128xf32>
    %199 = vector.shape_cast %198 : vector<1x128xf32> to vector<128xf32>
    %c0_154 = arith.constant 0 : index
    %c0_155 = arith.constant 0 : index
    %c1_156 = arith.constant 1 : index
    %c0_157 = arith.constant 0 : index
    %200 = vector.load %arg5[%c0_154, %c0_155, %c1_156, %c0_157] : memref<7x1x24x128xf32, #tpu.memory_space<vmem>>, vector<1x1x18x128xf32>
    %201 = vector.shape_cast %200 : vector<1x1x18x128xf32> to vector<1x18x128xf32>
    %202 = vector.shape_cast %199 : vector<128xf32> to vector<1x1x128xf32>
    %203 = vector.broadcast %202 : vector<1x1x128xf32> to vector<1x18x128xf32>
    %204 = arith.mulf %203, %201 : vector<1x18x128xf32>
    %205 = arith.addf %189, %204 : vector<1x18x128xf32>
    %c8 = arith.constant 8 : index
    %c0_158 = arith.constant 0 : index
    %206 = vector.load %arg1[%c8, %c0_158] : memref<120x128xf32, #tpu.memory_space<vmem>>, vector<1x128xf32>
    %207 = vector.shape_cast %206 : vector<1x128xf32> to vector<128xf32>
    %c1_159 = arith.constant 1 : index
    %c0_160 = arith.constant 0 : index
    %c1_161 = arith.constant 1 : index
    %c0_162 = arith.constant 0 : index
    %208 = vector.load %arg5[%c1_159, %c0_160, %c1_161, %c0_162] : memref<7x1x24x128xf32, #tpu.memory_space<vmem>>, vector<1x1x18x128xf32>
    %209 = vector.shape_cast %208 : vector<1x1x18x128xf32> to vector<1x18x128xf32>
    %210 = vector.shape_cast %207 : vector<128xf32> to vector<1x1x128xf32>
    %211 = vector.broadcast %210 : vector<1x1x128xf32> to vector<1x18x128xf32>
    %212 = arith.mulf %211, %209 : vector<1x18x128xf32>
    %213 = arith.addf %197, %212 : vector<1x18x128xf32>
    %c9 = arith.constant 9 : index
    %c0_163 = arith.constant 0 : index
    %214 = vector.load %arg1[%c9, %c0_163] : memref<120x128xf32, #tpu.memory_space<vmem>>, vector<1x128xf32>
    %215 = vector.shape_cast %214 : vector<1x128xf32> to vector<128xf32>
    %c2_164 = arith.constant 2 : index
    %c0_165 = arith.constant 0 : index
    %c1_166 = arith.constant 1 : index
    %c0_167 = arith.constant 0 : index
    %216 = vector.load %arg5[%c2_164, %c0_165, %c1_166, %c0_167] : memref<7x1x24x128xf32, #tpu.memory_space<vmem>>, vector<1x1x18x128xf32>
    %217 = vector.shape_cast %216 : vector<1x1x18x128xf32> to vector<1x18x128xf32>
    %218 = vector.shape_cast %215 : vector<128xf32> to vector<1x1x128xf32>
    %219 = vector.broadcast %218 : vector<1x1x128xf32> to vector<1x18x128xf32>
    %220 = arith.mulf %219, %217 : vector<1x18x128xf32>
    %221 = arith.addf %205, %220 : vector<1x18x128xf32>
    %c10 = arith.constant 10 : index
    %c0_168 = arith.constant 0 : index
    %222 = vector.load %arg1[%c10, %c0_168] : memref<120x128xf32, #tpu.memory_space<vmem>>, vector<1x128xf32>
    %223 = vector.shape_cast %222 : vector<1x128xf32> to vector<128xf32>
    %c3_169 = arith.constant 3 : index
    %c0_170 = arith.constant 0 : index
    %c1_171 = arith.constant 1 : index
    %c0_172 = arith.constant 0 : index
    %224 = vector.load %arg5[%c3_169, %c0_170, %c1_171, %c0_172] : memref<7x1x24x128xf32, #tpu.memory_space<vmem>>, vector<1x1x18x128xf32>
    %225 = vector.shape_cast %224 : vector<1x1x18x128xf32> to vector<1x18x128xf32>
    %226 = vector.shape_cast %223 : vector<128xf32> to vector<1x1x128xf32>
    %227 = vector.broadcast %226 : vector<1x1x128xf32> to vector<1x18x128xf32>
    %228 = arith.mulf %227, %225 : vector<1x18x128xf32>
    %229 = arith.addf %213, %228 : vector<1x18x128xf32>
    %c11 = arith.constant 11 : index
    %c0_173 = arith.constant 0 : index
    %230 = vector.load %arg1[%c11, %c0_173] : memref<120x128xf32, #tpu.memory_space<vmem>>, vector<1x128xf32>
    %231 = vector.shape_cast %230 : vector<1x128xf32> to vector<128xf32>
    %c4_174 = arith.constant 4 : index
    %c0_175 = arith.constant 0 : index
    %c1_176 = arith.constant 1 : index
    %c0_177 = arith.constant 0 : index
    %232 = vector.load %arg5[%c4_174, %c0_175, %c1_176, %c0_177] : memref<7x1x24x128xf32, #tpu.memory_space<vmem>>, vector<1x1x18x128xf32>
    %233 = vector.shape_cast %232 : vector<1x1x18x128xf32> to vector<1x18x128xf32>
    %234 = vector.shape_cast %231 : vector<128xf32> to vector<1x1x128xf32>
    %235 = vector.broadcast %234 : vector<1x1x128xf32> to vector<1x18x128xf32>
    %236 = arith.mulf %235, %233 : vector<1x18x128xf32>
    %237 = arith.addf %221, %236 : vector<1x18x128xf32>
    %c12 = arith.constant 12 : index
    %c0_178 = arith.constant 0 : index
    %238 = vector.load %arg1[%c12, %c0_178] : memref<120x128xf32, #tpu.memory_space<vmem>>, vector<1x128xf32>
    %239 = vector.shape_cast %238 : vector<1x128xf32> to vector<128xf32>
    %c5_179 = arith.constant 5 : index
    %c0_180 = arith.constant 0 : index
    %c1_181 = arith.constant 1 : index
    %c0_182 = arith.constant 0 : index
    %240 = vector.load %arg5[%c5_179, %c0_180, %c1_181, %c0_182] : memref<7x1x24x128xf32, #tpu.memory_space<vmem>>, vector<1x1x18x128xf32>
    %241 = vector.shape_cast %240 : vector<1x1x18x128xf32> to vector<1x18x128xf32>
    %242 = vector.shape_cast %239 : vector<128xf32> to vector<1x1x128xf32>
    %243 = vector.broadcast %242 : vector<1x1x128xf32> to vector<1x18x128xf32>
    %244 = arith.mulf %243, %241 : vector<1x18x128xf32>
    %245 = arith.addf %229, %244 : vector<1x18x128xf32>
    %c13 = arith.constant 13 : index
    %c0_183 = arith.constant 0 : index
    %246 = vector.load %arg1[%c13, %c0_183] : memref<120x128xf32, #tpu.memory_space<vmem>>, vector<1x128xf32>
    %247 = vector.shape_cast %246 : vector<1x128xf32> to vector<128xf32>
    %c6_184 = arith.constant 6 : index
    %c0_185 = arith.constant 0 : index
    %c1_186 = arith.constant 1 : index
    %c0_187 = arith.constant 0 : index
    %248 = vector.load %arg5[%c6_184, %c0_185, %c1_186, %c0_187] : memref<7x1x24x128xf32, #tpu.memory_space<vmem>>, vector<1x1x18x128xf32>
    %249 = vector.shape_cast %248 : vector<1x1x18x128xf32> to vector<1x18x128xf32>
    %250 = vector.shape_cast %247 : vector<128xf32> to vector<1x1x128xf32>
    %251 = vector.broadcast %250 : vector<1x1x128xf32> to vector<1x18x128xf32>
    %252 = arith.mulf %251, %249 : vector<1x18x128xf32>
    %253 = arith.addf %237, %252 : vector<1x18x128xf32>
    %c14 = arith.constant 14 : index
    %c0_188 = arith.constant 0 : index
    %254 = vector.load %arg1[%c14, %c0_188] : memref<120x128xf32, #tpu.memory_space<vmem>>, vector<1x128xf32>
    %255 = vector.shape_cast %254 : vector<1x128xf32> to vector<128xf32>
    %c0_189 = arith.constant 0 : index
    %c0_190 = arith.constant 0 : index
    %c2_191 = arith.constant 2 : index
    %c0_192 = arith.constant 0 : index
    %256 = vector.load %arg5[%c0_189, %c0_190, %c2_191, %c0_192] : memref<7x1x24x128xf32, #tpu.memory_space<vmem>>, vector<1x1x18x128xf32>
    %257 = vector.shape_cast %256 : vector<1x1x18x128xf32> to vector<1x18x128xf32>
    %258 = vector.shape_cast %255 : vector<128xf32> to vector<1x1x128xf32>
    %259 = vector.broadcast %258 : vector<1x1x128xf32> to vector<1x18x128xf32>
    %260 = arith.mulf %259, %257 : vector<1x18x128xf32>
    %261 = arith.addf %245, %260 : vector<1x18x128xf32>
    %c15 = arith.constant 15 : index
    %c0_193 = arith.constant 0 : index
    %262 = vector.load %arg1[%c15, %c0_193] : memref<120x128xf32, #tpu.memory_space<vmem>>, vector<1x128xf32>
    %263 = vector.shape_cast %262 : vector<1x128xf32> to vector<128xf32>
    %c1_194 = arith.constant 1 : index
    %c0_195 = arith.constant 0 : index
    %c2_196 = arith.constant 2 : index
    %c0_197 = arith.constant 0 : index
    %264 = vector.load %arg5[%c1_194, %c0_195, %c2_196, %c0_197] : memref<7x1x24x128xf32, #tpu.memory_space<vmem>>, vector<1x1x18x128xf32>
    %265 = vector.shape_cast %264 : vector<1x1x18x128xf32> to vector<1x18x128xf32>
    %266 = vector.shape_cast %263 : vector<128xf32> to vector<1x1x128xf32>
    %267 = vector.broadcast %266 : vector<1x1x128xf32> to vector<1x18x128xf32>
    %268 = arith.mulf %267, %265 : vector<1x18x128xf32>
    %269 = arith.addf %253, %268 : vector<1x18x128xf32>
    %c16 = arith.constant 16 : index
    %c0_198 = arith.constant 0 : index
    %270 = vector.load %arg1[%c16, %c0_198] : memref<120x128xf32, #tpu.memory_space<vmem>>, vector<1x128xf32>
    %271 = vector.shape_cast %270 : vector<1x128xf32> to vector<128xf32>
    %c2_199 = arith.constant 2 : index
    %c0_200 = arith.constant 0 : index
    %c2_201 = arith.constant 2 : index
    %c0_202 = arith.constant 0 : index
    %272 = vector.load %arg5[%c2_199, %c0_200, %c2_201, %c0_202] : memref<7x1x24x128xf32, #tpu.memory_space<vmem>>, vector<1x1x18x128xf32>
    %273 = vector.shape_cast %272 : vector<1x1x18x128xf32> to vector<1x18x128xf32>
    %274 = vector.shape_cast %271 : vector<128xf32> to vector<1x1x128xf32>
    %275 = vector.broadcast %274 : vector<1x1x128xf32> to vector<1x18x128xf32>
    %276 = arith.mulf %275, %273 : vector<1x18x128xf32>
    %277 = arith.addf %261, %276 : vector<1x18x128xf32>
    %c17 = arith.constant 17 : index
    %c0_203 = arith.constant 0 : index
    %278 = vector.load %arg1[%c17, %c0_203] : memref<120x128xf32, #tpu.memory_space<vmem>>, vector<1x128xf32>
    %279 = vector.shape_cast %278 : vector<1x128xf32> to vector<128xf32>
    %c3_204 = arith.constant 3 : index
    %c0_205 = arith.constant 0 : index
    %c2_206 = arith.constant 2 : index
    %c0_207 = arith.constant 0 : index
    %280 = vector.load %arg5[%c3_204, %c0_205, %c2_206, %c0_207] : memref<7x1x24x128xf32, #tpu.memory_space<vmem>>, vector<1x1x18x128xf32>
    %281 = vector.shape_cast %280 : vector<1x1x18x128xf32> to vector<1x18x128xf32>
    %282 = vector.shape_cast %279 : vector<128xf32> to vector<1x1x128xf32>
    %283 = vector.broadcast %282 : vector<1x1x128xf32> to vector<1x18x128xf32>
    %284 = arith.mulf %283, %281 : vector<1x18x128xf32>
    %285 = arith.addf %269, %284 : vector<1x18x128xf32>
    %c18 = arith.constant 18 : index
    %c0_208 = arith.constant 0 : index
    %286 = vector.load %arg1[%c18, %c0_208] : memref<120x128xf32, #tpu.memory_space<vmem>>, vector<1x128xf32>
    %287 = vector.shape_cast %286 : vector<1x128xf32> to vector<128xf32>
    %c4_209 = arith.constant 4 : index
    %c0_210 = arith.constant 0 : index
    %c2_211 = arith.constant 2 : index
    %c0_212 = arith.constant 0 : index
    %288 = vector.load %arg5[%c4_209, %c0_210, %c2_211, %c0_212] : memref<7x1x24x128xf32, #tpu.memory_space<vmem>>, vector<1x1x18x128xf32>
    %289 = vector.shape_cast %288 : vector<1x1x18x128xf32> to vector<1x18x128xf32>
    %290 = vector.shape_cast %287 : vector<128xf32> to vector<1x1x128xf32>
    %291 = vector.broadcast %290 : vector<1x1x128xf32> to vector<1x18x128xf32>
    %292 = arith.mulf %291, %289 : vector<1x18x128xf32>
    %293 = arith.addf %277, %292 : vector<1x18x128xf32>
    %c19 = arith.constant 19 : index
    %c0_213 = arith.constant 0 : index
    %294 = vector.load %arg1[%c19, %c0_213] : memref<120x128xf32, #tpu.memory_space<vmem>>, vector<1x128xf32>
    %295 = vector.shape_cast %294 : vector<1x128xf32> to vector<128xf32>
    %c5_214 = arith.constant 5 : index
    %c0_215 = arith.constant 0 : index
    %c2_216 = arith.constant 2 : index
    %c0_217 = arith.constant 0 : index
    %296 = vector.load %arg5[%c5_214, %c0_215, %c2_216, %c0_217] : memref<7x1x24x128xf32, #tpu.memory_space<vmem>>, vector<1x1x18x128xf32>
    %297 = vector.shape_cast %296 : vector<1x1x18x128xf32> to vector<1x18x128xf32>
    %298 = vector.shape_cast %295 : vector<128xf32> to vector<1x1x128xf32>
    %299 = vector.broadcast %298 : vector<1x1x128xf32> to vector<1x18x128xf32>
    %300 = arith.mulf %299, %297 : vector<1x18x128xf32>
    %301 = arith.addf %285, %300 : vector<1x18x128xf32>
    %c20 = arith.constant 20 : index
    %c0_218 = arith.constant 0 : index
    %302 = vector.load %arg1[%c20, %c0_218] : memref<120x128xf32, #tpu.memory_space<vmem>>, vector<1x128xf32>
    %303 = vector.shape_cast %302 : vector<1x128xf32> to vector<128xf32>
    %c6_219 = arith.constant 6 : index
    %c0_220 = arith.constant 0 : index
    %c2_221 = arith.constant 2 : index
    %c0_222 = arith.constant 0 : index
    %304 = vector.load %arg5[%c6_219, %c0_220, %c2_221, %c0_222] : memref<7x1x24x128xf32, #tpu.memory_space<vmem>>, vector<1x1x18x128xf32>
    %305 = vector.shape_cast %304 : vector<1x1x18x128xf32> to vector<1x18x128xf32>
    %306 = vector.shape_cast %303 : vector<128xf32> to vector<1x1x128xf32>
    %307 = vector.broadcast %306 : vector<1x1x128xf32> to vector<1x18x128xf32>
    %308 = arith.mulf %307, %305 : vector<1x18x128xf32>
    %309 = arith.addf %293, %308 : vector<1x18x128xf32>
    %c21 = arith.constant 21 : index
    %c0_223 = arith.constant 0 : index
    %310 = vector.load %arg1[%c21, %c0_223] : memref<120x128xf32, #tpu.memory_space<vmem>>, vector<1x128xf32>
    %311 = vector.shape_cast %310 : vector<1x128xf32> to vector<128xf32>
    %c0_224 = arith.constant 0 : index
    %c0_225 = arith.constant 0 : index
    %c3_226 = arith.constant 3 : index
    %c0_227 = arith.constant 0 : index
    %312 = vector.load %arg5[%c0_224, %c0_225, %c3_226, %c0_227] : memref<7x1x24x128xf32, #tpu.memory_space<vmem>>, vector<1x1x18x128xf32>
    %313 = vector.shape_cast %312 : vector<1x1x18x128xf32> to vector<1x18x128xf32>
    %314 = vector.shape_cast %311 : vector<128xf32> to vector<1x1x128xf32>
    %315 = vector.broadcast %314 : vector<1x1x128xf32> to vector<1x18x128xf32>
    %316 = arith.mulf %315, %313 : vector<1x18x128xf32>
    %317 = arith.addf %301, %316 : vector<1x18x128xf32>
    %c22 = arith.constant 22 : index
    %c0_228 = arith.constant 0 : index
    %318 = vector.load %arg1[%c22, %c0_228] : memref<120x128xf32, #tpu.memory_space<vmem>>, vector<1x128xf32>
    %319 = vector.shape_cast %318 : vector<1x128xf32> to vector<128xf32>
    %c1_229 = arith.constant 1 : index
    %c0_230 = arith.constant 0 : index
    %c3_231 = arith.constant 3 : index
    %c0_232 = arith.constant 0 : index
    %320 = vector.load %arg5[%c1_229, %c0_230, %c3_231, %c0_232] : memref<7x1x24x128xf32, #tpu.memory_space<vmem>>, vector<1x1x18x128xf32>
    %321 = vector.shape_cast %320 : vector<1x1x18x128xf32> to vector<1x18x128xf32>
    %322 = vector.shape_cast %319 : vector<128xf32> to vector<1x1x128xf32>
    %323 = vector.broadcast %322 : vector<1x1x128xf32> to vector<1x18x128xf32>
    %324 = arith.mulf %323, %321 : vector<1x18x128xf32>
    %325 = arith.addf %309, %324 : vector<1x18x128xf32>
    %c23 = arith.constant 23 : index
    %c0_233 = arith.constant 0 : index
    %326 = vector.load %arg1[%c23, %c0_233] : memref<120x128xf32, #tpu.memory_space<vmem>>, vector<1x128xf32>
    %327 = vector.shape_cast %326 : vector<1x128xf32> to vector<128xf32>
    %c2_234 = arith.constant 2 : index
    %c0_235 = arith.constant 0 : index
    %c3_236 = arith.constant 3 : index
    %c0_237 = arith.constant 0 : index
    %328 = vector.load %arg5[%c2_234, %c0_235, %c3_236, %c0_237] : memref<7x1x24x128xf32, #tpu.memory_space<vmem>>, vector<1x1x18x128xf32>
    %329 = vector.shape_cast %328 : vector<1x1x18x128xf32> to vector<1x18x128xf32>
    %330 = vector.shape_cast %327 : vector<128xf32> to vector<1x1x128xf32>
    %331 = vector.broadcast %330 : vector<1x1x128xf32> to vector<1x18x128xf32>
    %332 = arith.mulf %331, %329 : vector<1x18x128xf32>
    %333 = arith.addf %317, %332 : vector<1x18x128xf32>
    %c24 = arith.constant 24 : index
    %c0_238 = arith.constant 0 : index
    %334 = vector.load %arg1[%c24, %c0_238] : memref<120x128xf32, #tpu.memory_space<vmem>>, vector<1x128xf32>
    %335 = vector.shape_cast %334 : vector<1x128xf32> to vector<128xf32>
    %c3_239 = arith.constant 3 : index
    %c0_240 = arith.constant 0 : index
    %c3_241 = arith.constant 3 : index
    %c0_242 = arith.constant 0 : index
    %336 = vector.load %arg5[%c3_239, %c0_240, %c3_241, %c0_242] : memref<7x1x24x128xf32, #tpu.memory_space<vmem>>, vector<1x1x18x128xf32>
    %337 = vector.shape_cast %336 : vector<1x1x18x128xf32> to vector<1x18x128xf32>
    %338 = vector.shape_cast %335 : vector<128xf32> to vector<1x1x128xf32>
    %339 = vector.broadcast %338 : vector<1x1x128xf32> to vector<1x18x128xf32>
    %340 = arith.mulf %339, %337 : vector<1x18x128xf32>
    %341 = arith.addf %325, %340 : vector<1x18x128xf32>
    %c25 = arith.constant 25 : index
    %c0_243 = arith.constant 0 : index
    %342 = vector.load %arg1[%c25, %c0_243] : memref<120x128xf32, #tpu.memory_space<vmem>>, vector<1x128xf32>
    %343 = vector.shape_cast %342 : vector<1x128xf32> to vector<128xf32>
    %c4_244 = arith.constant 4 : index
    %c0_245 = arith.constant 0 : index
    %c3_246 = arith.constant 3 : index
    %c0_247 = arith.constant 0 : index
    %344 = vector.load %arg5[%c4_244, %c0_245, %c3_246, %c0_247] : memref<7x1x24x128xf32, #tpu.memory_space<vmem>>, vector<1x1x18x128xf32>
    %345 = vector.shape_cast %344 : vector<1x1x18x128xf32> to vector<1x18x128xf32>
    %346 = vector.shape_cast %343 : vector<128xf32> to vector<1x1x128xf32>
    %347 = vector.broadcast %346 : vector<1x1x128xf32> to vector<1x18x128xf32>
    %348 = arith.mulf %347, %345 : vector<1x18x128xf32>
    %349 = arith.addf %333, %348 : vector<1x18x128xf32>
    %c26 = arith.constant 26 : index
    %c0_248 = arith.constant 0 : index
    %350 = vector.load %arg1[%c26, %c0_248] : memref<120x128xf32, #tpu.memory_space<vmem>>, vector<1x128xf32>
    %351 = vector.shape_cast %350 : vector<1x128xf32> to vector<128xf32>
    %c5_249 = arith.constant 5 : index
    %c0_250 = arith.constant 0 : index
    %c3_251 = arith.constant 3 : index
    %c0_252 = arith.constant 0 : index
    %352 = vector.load %arg5[%c5_249, %c0_250, %c3_251, %c0_252] : memref<7x1x24x128xf32, #tpu.memory_space<vmem>>, vector<1x1x18x128xf32>
    %353 = vector.shape_cast %352 : vector<1x1x18x128xf32> to vector<1x18x128xf32>
    %354 = vector.shape_cast %351 : vector<128xf32> to vector<1x1x128xf32>
    %355 = vector.broadcast %354 : vector<1x1x128xf32> to vector<1x18x128xf32>
    %356 = arith.mulf %355, %353 : vector<1x18x128xf32>
    %357 = arith.addf %341, %356 : vector<1x18x128xf32>
    %c27 = arith.constant 27 : index
    %c0_253 = arith.constant 0 : index
    %358 = vector.load %arg1[%c27, %c0_253] : memref<120x128xf32, #tpu.memory_space<vmem>>, vector<1x128xf32>
    %359 = vector.shape_cast %358 : vector<1x128xf32> to vector<128xf32>
    %c6_254 = arith.constant 6 : index
    %c0_255 = arith.constant 0 : index
    %c3_256 = arith.constant 3 : index
    %c0_257 = arith.constant 0 : index
    %360 = vector.load %arg5[%c6_254, %c0_255, %c3_256, %c0_257] : memref<7x1x24x128xf32, #tpu.memory_space<vmem>>, vector<1x1x18x128xf32>
    %361 = vector.shape_cast %360 : vector<1x1x18x128xf32> to vector<1x18x128xf32>
    %362 = vector.shape_cast %359 : vector<128xf32> to vector<1x1x128xf32>
    %363 = vector.broadcast %362 : vector<1x1x128xf32> to vector<1x18x128xf32>
    %364 = arith.mulf %363, %361 : vector<1x18x128xf32>
    %365 = arith.addf %349, %364 : vector<1x18x128xf32>
    %c28 = arith.constant 28 : index
    %c0_258 = arith.constant 0 : index
    %366 = vector.load %arg1[%c28, %c0_258] : memref<120x128xf32, #tpu.memory_space<vmem>>, vector<1x128xf32>
    %367 = vector.shape_cast %366 : vector<1x128xf32> to vector<128xf32>
    %c0_259 = arith.constant 0 : index
    %c0_260 = arith.constant 0 : index
    %c4_261 = arith.constant 4 : index
    %c0_262 = arith.constant 0 : index
    %368 = vector.load %arg5[%c0_259, %c0_260, %c4_261, %c0_262] : memref<7x1x24x128xf32, #tpu.memory_space<vmem>>, vector<1x1x18x128xf32>
    %369 = vector.shape_cast %368 : vector<1x1x18x128xf32> to vector<1x18x128xf32>
    %370 = vector.shape_cast %367 : vector<128xf32> to vector<1x1x128xf32>
    %371 = vector.broadcast %370 : vector<1x1x128xf32> to vector<1x18x128xf32>
    %372 = arith.mulf %371, %369 : vector<1x18x128xf32>
    %373 = arith.addf %357, %372 : vector<1x18x128xf32>
    %c29 = arith.constant 29 : index
    %c0_263 = arith.constant 0 : index
    %374 = vector.load %arg1[%c29, %c0_263] : memref<120x128xf32, #tpu.memory_space<vmem>>, vector<1x128xf32>
    %375 = vector.shape_cast %374 : vector<1x128xf32> to vector<128xf32>
    %c1_264 = arith.constant 1 : index
    %c0_265 = arith.constant 0 : index
    %c4_266 = arith.constant 4 : index
    %c0_267 = arith.constant 0 : index
    %376 = vector.load %arg5[%c1_264, %c0_265, %c4_266, %c0_267] : memref<7x1x24x128xf32, #tpu.memory_space<vmem>>, vector<1x1x18x128xf32>
    %377 = vector.shape_cast %376 : vector<1x1x18x128xf32> to vector<1x18x128xf32>
    %378 = vector.shape_cast %375 : vector<128xf32> to vector<1x1x128xf32>
    %379 = vector.broadcast %378 : vector<1x1x128xf32> to vector<1x18x128xf32>
    %380 = arith.mulf %379, %377 : vector<1x18x128xf32>
    %381 = arith.addf %365, %380 : vector<1x18x128xf32>
    %c30 = arith.constant 30 : index
    %c0_268 = arith.constant 0 : index
    %382 = vector.load %arg1[%c30, %c0_268] : memref<120x128xf32, #tpu.memory_space<vmem>>, vector<1x128xf32>
    %383 = vector.shape_cast %382 : vector<1x128xf32> to vector<128xf32>
    %c2_269 = arith.constant 2 : index
    %c0_270 = arith.constant 0 : index
    %c4_271 = arith.constant 4 : index
    %c0_272 = arith.constant 0 : index
    %384 = vector.load %arg5[%c2_269, %c0_270, %c4_271, %c0_272] : memref<7x1x24x128xf32, #tpu.memory_space<vmem>>, vector<1x1x18x128xf32>
    %385 = vector.shape_cast %384 : vector<1x1x18x128xf32> to vector<1x18x128xf32>
    %386 = vector.shape_cast %383 : vector<128xf32> to vector<1x1x128xf32>
    %387 = vector.broadcast %386 : vector<1x1x128xf32> to vector<1x18x128xf32>
    %388 = arith.mulf %387, %385 : vector<1x18x128xf32>
    %389 = arith.addf %373, %388 : vector<1x18x128xf32>
    %c31 = arith.constant 31 : index
    %c0_273 = arith.constant 0 : index
    %390 = vector.load %arg1[%c31, %c0_273] : memref<120x128xf32, #tpu.memory_space<vmem>>, vector<1x128xf32>
    %391 = vector.shape_cast %390 : vector<1x128xf32> to vector<128xf32>
    %c3_274 = arith.constant 3 : index
    %c0_275 = arith.constant 0 : index
    %c4_276 = arith.constant 4 : index
    %c0_277 = arith.constant 0 : index
    %392 = vector.load %arg5[%c3_274, %c0_275, %c4_276, %c0_277] : memref<7x1x24x128xf32, #tpu.memory_space<vmem>>, vector<1x1x18x128xf32>
    %393 = vector.shape_cast %392 : vector<1x1x18x128xf32> to vector<1x18x128xf32>
    %394 = vector.shape_cast %391 : vector<128xf32> to vector<1x1x128xf32>
    %395 = vector.broadcast %394 : vector<1x1x128xf32> to vector<1x18x128xf32>
    %396 = arith.mulf %395, %393 : vector<1x18x128xf32>
    %397 = arith.addf %381, %396 : vector<1x18x128xf32>
    %c32_278 = arith.constant 32 : index
    %c0_279 = arith.constant 0 : index
    %398 = vector.load %arg1[%c32_278, %c0_279] : memref<120x128xf32, #tpu.memory_space<vmem>>, vector<1x128xf32>
    %399 = vector.shape_cast %398 : vector<1x128xf32> to vector<128xf32>
    %c4_280 = arith.constant 4 : index
    %c0_281 = arith.constant 0 : index
    %c4_282 = arith.constant 4 : index
    %c0_283 = arith.constant 0 : index
    %400 = vector.load %arg5[%c4_280, %c0_281, %c4_282, %c0_283] : memref<7x1x24x128xf32, #tpu.memory_space<vmem>>, vector<1x1x18x128xf32>
    %401 = vector.shape_cast %400 : vector<1x1x18x128xf32> to vector<1x18x128xf32>
    %402 = vector.shape_cast %399 : vector<128xf32> to vector<1x1x128xf32>
    %403 = vector.broadcast %402 : vector<1x1x128xf32> to vector<1x18x128xf32>
    %404 = arith.mulf %403, %401 : vector<1x18x128xf32>
    %405 = arith.addf %389, %404 : vector<1x18x128xf32>
    %c33 = arith.constant 33 : index
    %c0_284 = arith.constant 0 : index
    %406 = vector.load %arg1[%c33, %c0_284] : memref<120x128xf32, #tpu.memory_space<vmem>>, vector<1x128xf32>
    %407 = vector.shape_cast %406 : vector<1x128xf32> to vector<128xf32>
    %c5_285 = arith.constant 5 : index
    %c0_286 = arith.constant 0 : index
    %c4_287 = arith.constant 4 : index
    %c0_288 = arith.constant 0 : index
    %408 = vector.load %arg5[%c5_285, %c0_286, %c4_287, %c0_288] : memref<7x1x24x128xf32, #tpu.memory_space<vmem>>, vector<1x1x18x128xf32>
    %409 = vector.shape_cast %408 : vector<1x1x18x128xf32> to vector<1x18x128xf32>
    %410 = vector.shape_cast %407 : vector<128xf32> to vector<1x1x128xf32>
    %411 = vector.broadcast %410 : vector<1x1x128xf32> to vector<1x18x128xf32>
    %412 = arith.mulf %411, %409 : vector<1x18x128xf32>
    %413 = arith.addf %397, %412 : vector<1x18x128xf32>
    %c34 = arith.constant 34 : index
    %c0_289 = arith.constant 0 : index
    %414 = vector.load %arg1[%c34, %c0_289] : memref<120x128xf32, #tpu.memory_space<vmem>>, vector<1x128xf32>
    %415 = vector.shape_cast %414 : vector<1x128xf32> to vector<128xf32>
    %c6_290 = arith.constant 6 : index
    %c0_291 = arith.constant 0 : index
    %c4_292 = arith.constant 4 : index
    %c0_293 = arith.constant 0 : index
    %416 = vector.load %arg5[%c6_290, %c0_291, %c4_292, %c0_293] : memref<7x1x24x128xf32, #tpu.memory_space<vmem>>, vector<1x1x18x128xf32>
    %417 = vector.shape_cast %416 : vector<1x1x18x128xf32> to vector<1x18x128xf32>
    %418 = vector.shape_cast %415 : vector<128xf32> to vector<1x1x128xf32>
    %419 = vector.broadcast %418 : vector<1x1x128xf32> to vector<1x18x128xf32>
    %420 = arith.mulf %419, %417 : vector<1x18x128xf32>
    %421 = arith.addf %405, %420 : vector<1x18x128xf32>
    %c35 = arith.constant 35 : index
    %c0_294 = arith.constant 0 : index
    %422 = vector.load %arg1[%c35, %c0_294] : memref<120x128xf32, #tpu.memory_space<vmem>>, vector<1x128xf32>
    %423 = vector.shape_cast %422 : vector<1x128xf32> to vector<128xf32>
    %c0_295 = arith.constant 0 : index
    %c0_296 = arith.constant 0 : index
    %c5_297 = arith.constant 5 : index
    %c0_298 = arith.constant 0 : index
    %424 = vector.load %arg5[%c0_295, %c0_296, %c5_297, %c0_298] : memref<7x1x24x128xf32, #tpu.memory_space<vmem>>, vector<1x1x18x128xf32>
    %425 = vector.shape_cast %424 : vector<1x1x18x128xf32> to vector<1x18x128xf32>
    %426 = vector.shape_cast %423 : vector<128xf32> to vector<1x1x128xf32>
    %427 = vector.broadcast %426 : vector<1x1x128xf32> to vector<1x18x128xf32>
    %428 = arith.mulf %427, %425 : vector<1x18x128xf32>
    %429 = arith.addf %413, %428 : vector<1x18x128xf32>
    %c36 = arith.constant 36 : index
    %c0_299 = arith.constant 0 : index
    %430 = vector.load %arg1[%c36, %c0_299] : memref<120x128xf32, #tpu.memory_space<vmem>>, vector<1x128xf32>
    %431 = vector.shape_cast %430 : vector<1x128xf32> to vector<128xf32>
    %c1_300 = arith.constant 1 : index
    %c0_301 = arith.constant 0 : index
    %c5_302 = arith.constant 5 : index
    %c0_303 = arith.constant 0 : index
    %432 = vector.load %arg5[%c1_300, %c0_301, %c5_302, %c0_303] : memref<7x1x24x128xf32, #tpu.memory_space<vmem>>, vector<1x1x18x128xf32>
    %433 = vector.shape_cast %432 : vector<1x1x18x128xf32> to vector<1x18x128xf32>
    %434 = vector.shape_cast %431 : vector<128xf32> to vector<1x1x128xf32>
    %435 = vector.broadcast %434 : vector<1x1x128xf32> to vector<1x18x128xf32>
    %436 = arith.mulf %435, %433 : vector<1x18x128xf32>
    %437 = arith.addf %421, %436 : vector<1x18x128xf32>
    %c37 = arith.constant 37 : index
    %c0_304 = arith.constant 0 : index
    %438 = vector.load %arg1[%c37, %c0_304] : memref<120x128xf32, #tpu.memory_space<vmem>>, vector<1x128xf32>
    %439 = vector.shape_cast %438 : vector<1x128xf32> to vector<128xf32>
    %c2_305 = arith.constant 2 : index
    %c0_306 = arith.constant 0 : index
    %c5_307 = arith.constant 5 : index
    %c0_308 = arith.constant 0 : index
    %440 = vector.load %arg5[%c2_305, %c0_306, %c5_307, %c0_308] : memref<7x1x24x128xf32, #tpu.memory_space<vmem>>, vector<1x1x18x128xf32>
    %441 = vector.shape_cast %440 : vector<1x1x18x128xf32> to vector<1x18x128xf32>
    %442 = vector.shape_cast %439 : vector<128xf32> to vector<1x1x128xf32>
    %443 = vector.broadcast %442 : vector<1x1x128xf32> to vector<1x18x128xf32>
    %444 = arith.mulf %443, %441 : vector<1x18x128xf32>
    %445 = arith.addf %429, %444 : vector<1x18x128xf32>
    %c38 = arith.constant 38 : index
    %c0_309 = arith.constant 0 : index
    %446 = vector.load %arg1[%c38, %c0_309] : memref<120x128xf32, #tpu.memory_space<vmem>>, vector<1x128xf32>
    %447 = vector.shape_cast %446 : vector<1x128xf32> to vector<128xf32>
    %c3_310 = arith.constant 3 : index
    %c0_311 = arith.constant 0 : index
    %c5_312 = arith.constant 5 : index
    %c0_313 = arith.constant 0 : index
    %448 = vector.load %arg5[%c3_310, %c0_311, %c5_312, %c0_313] : memref<7x1x24x128xf32, #tpu.memory_space<vmem>>, vector<1x1x18x128xf32>
    %449 = vector.shape_cast %448 : vector<1x1x18x128xf32> to vector<1x18x128xf32>
    %450 = vector.shape_cast %447 : vector<128xf32> to vector<1x1x128xf32>
    %451 = vector.broadcast %450 : vector<1x1x128xf32> to vector<1x18x128xf32>
    %452 = arith.mulf %451, %449 : vector<1x18x128xf32>
    %453 = arith.addf %437, %452 : vector<1x18x128xf32>
    %c39 = arith.constant 39 : index
    %c0_314 = arith.constant 0 : index
    %454 = vector.load %arg1[%c39, %c0_314] : memref<120x128xf32, #tpu.memory_space<vmem>>, vector<1x128xf32>
    %455 = vector.shape_cast %454 : vector<1x128xf32> to vector<128xf32>
    %c4_315 = arith.constant 4 : index
    %c0_316 = arith.constant 0 : index
    %c5_317 = arith.constant 5 : index
    %c0_318 = arith.constant 0 : index
    %456 = vector.load %arg5[%c4_315, %c0_316, %c5_317, %c0_318] : memref<7x1x24x128xf32, #tpu.memory_space<vmem>>, vector<1x1x18x128xf32>
    %457 = vector.shape_cast %456 : vector<1x1x18x128xf32> to vector<1x18x128xf32>
    %458 = vector.shape_cast %455 : vector<128xf32> to vector<1x1x128xf32>
    %459 = vector.broadcast %458 : vector<1x1x128xf32> to vector<1x18x128xf32>
    %460 = arith.mulf %459, %457 : vector<1x18x128xf32>
    %461 = arith.addf %445, %460 : vector<1x18x128xf32>
    %c40 = arith.constant 40 : index
    %c0_319 = arith.constant 0 : index
    %462 = vector.load %arg1[%c40, %c0_319] : memref<120x128xf32, #tpu.memory_space<vmem>>, vector<1x128xf32>
    %463 = vector.shape_cast %462 : vector<1x128xf32> to vector<128xf32>
    %c5_320 = arith.constant 5 : index
    %c0_321 = arith.constant 0 : index
    %c5_322 = arith.constant 5 : index
    %c0_323 = arith.constant 0 : index
    %464 = vector.load %arg5[%c5_320, %c0_321, %c5_322, %c0_323] : memref<7x1x24x128xf32, #tpu.memory_space<vmem>>, vector<1x1x18x128xf32>
    %465 = vector.shape_cast %464 : vector<1x1x18x128xf32> to vector<1x18x128xf32>
    %466 = vector.shape_cast %463 : vector<128xf32> to vector<1x1x128xf32>
    %467 = vector.broadcast %466 : vector<1x1x128xf32> to vector<1x18x128xf32>
    %468 = arith.mulf %467, %465 : vector<1x18x128xf32>
    %469 = arith.addf %453, %468 : vector<1x18x128xf32>
    %c41 = arith.constant 41 : index
    %c0_324 = arith.constant 0 : index
    %470 = vector.load %arg1[%c41, %c0_324] : memref<120x128xf32, #tpu.memory_space<vmem>>, vector<1x128xf32>
    %471 = vector.shape_cast %470 : vector<1x128xf32> to vector<128xf32>
    %c6_325 = arith.constant 6 : index
    %c0_326 = arith.constant 0 : index
    %c5_327 = arith.constant 5 : index
    %c0_328 = arith.constant 0 : index
    %472 = vector.load %arg5[%c6_325, %c0_326, %c5_327, %c0_328] : memref<7x1x24x128xf32, #tpu.memory_space<vmem>>, vector<1x1x18x128xf32>
    %473 = vector.shape_cast %472 : vector<1x1x18x128xf32> to vector<1x18x128xf32>
    %474 = vector.shape_cast %471 : vector<128xf32> to vector<1x1x128xf32>
    %475 = vector.broadcast %474 : vector<1x1x128xf32> to vector<1x18x128xf32>
    %476 = arith.mulf %475, %473 : vector<1x18x128xf32>
    %477 = arith.addf %461, %476 : vector<1x18x128xf32>
    %c42 = arith.constant 42 : index
    %c0_329 = arith.constant 0 : index
    %478 = vector.load %arg1[%c42, %c0_329] : memref<120x128xf32, #tpu.memory_space<vmem>>, vector<1x128xf32>
    %479 = vector.shape_cast %478 : vector<1x128xf32> to vector<128xf32>
    %c0_330 = arith.constant 0 : index
    %c0_331 = arith.constant 0 : index
    %c6_332 = arith.constant 6 : index
    %c0_333 = arith.constant 0 : index
    %480 = vector.load %arg5[%c0_330, %c0_331, %c6_332, %c0_333] : memref<7x1x24x128xf32, #tpu.memory_space<vmem>>, vector<1x1x18x128xf32>
    %481 = vector.shape_cast %480 : vector<1x1x18x128xf32> to vector<1x18x128xf32>
    %482 = vector.shape_cast %479 : vector<128xf32> to vector<1x1x128xf32>
    %483 = vector.broadcast %482 : vector<1x1x128xf32> to vector<1x18x128xf32>
    %484 = arith.mulf %483, %481 : vector<1x18x128xf32>
    %485 = arith.addf %469, %484 : vector<1x18x128xf32>
    %c43 = arith.constant 43 : index
    %c0_334 = arith.constant 0 : index
    %486 = vector.load %arg1[%c43, %c0_334] : memref<120x128xf32, #tpu.memory_space<vmem>>, vector<1x128xf32>
    %487 = vector.shape_cast %486 : vector<1x128xf32> to vector<128xf32>
    %c1_335 = arith.constant 1 : index
    %c0_336 = arith.constant 0 : index
    %c6_337 = arith.constant 6 : index
    %c0_338 = arith.constant 0 : index
    %488 = vector.load %arg5[%c1_335, %c0_336, %c6_337, %c0_338] : memref<7x1x24x128xf32, #tpu.memory_space<vmem>>, vector<1x1x18x128xf32>
    %489 = vector.shape_cast %488 : vector<1x1x18x128xf32> to vector<1x18x128xf32>
    %490 = vector.shape_cast %487 : vector<128xf32> to vector<1x1x128xf32>
    %491 = vector.broadcast %490 : vector<1x1x128xf32> to vector<1x18x128xf32>
    %492 = arith.mulf %491, %489 : vector<1x18x128xf32>
    %493 = arith.addf %477, %492 : vector<1x18x128xf32>
    %c44 = arith.constant 44 : index
    %c0_339 = arith.constant 0 : index
    %494 = vector.load %arg1[%c44, %c0_339] : memref<120x128xf32, #tpu.memory_space<vmem>>, vector<1x128xf32>
    %495 = vector.shape_cast %494 : vector<1x128xf32> to vector<128xf32>
    %c2_340 = arith.constant 2 : index
    %c0_341 = arith.constant 0 : index
    %c6_342 = arith.constant 6 : index
    %c0_343 = arith.constant 0 : index
    %496 = vector.load %arg5[%c2_340, %c0_341, %c6_342, %c0_343] : memref<7x1x24x128xf32, #tpu.memory_space<vmem>>, vector<1x1x18x128xf32>
    %497 = vector.shape_cast %496 : vector<1x1x18x128xf32> to vector<1x18x128xf32>
    %498 = vector.shape_cast %495 : vector<128xf32> to vector<1x1x128xf32>
    %499 = vector.broadcast %498 : vector<1x1x128xf32> to vector<1x18x128xf32>
    %500 = arith.mulf %499, %497 : vector<1x18x128xf32>
    %501 = arith.addf %485, %500 : vector<1x18x128xf32>
    %c45 = arith.constant 45 : index
    %c0_344 = arith.constant 0 : index
    %502 = vector.load %arg1[%c45, %c0_344] : memref<120x128xf32, #tpu.memory_space<vmem>>, vector<1x128xf32>
    %503 = vector.shape_cast %502 : vector<1x128xf32> to vector<128xf32>
    %c3_345 = arith.constant 3 : index
    %c0_346 = arith.constant 0 : index
    %c6_347 = arith.constant 6 : index
    %c0_348 = arith.constant 0 : index
    %504 = vector.load %arg5[%c3_345, %c0_346, %c6_347, %c0_348] : memref<7x1x24x128xf32, #tpu.memory_space<vmem>>, vector<1x1x18x128xf32>
    %505 = vector.shape_cast %504 : vector<1x1x18x128xf32> to vector<1x18x128xf32>
    %506 = vector.shape_cast %503 : vector<128xf32> to vector<1x1x128xf32>
    %507 = vector.broadcast %506 : vector<1x1x128xf32> to vector<1x18x128xf32>
    %508 = arith.mulf %507, %505 : vector<1x18x128xf32>
    %509 = arith.addf %493, %508 : vector<1x18x128xf32>
    %c46 = arith.constant 46 : index
    %c0_349 = arith.constant 0 : index
    %510 = vector.load %arg1[%c46, %c0_349] : memref<120x128xf32, #tpu.memory_space<vmem>>, vector<1x128xf32>
    %511 = vector.shape_cast %510 : vector<1x128xf32> to vector<128xf32>
    %c4_350 = arith.constant 4 : index
    %c0_351 = arith.constant 0 : index
    %c6_352 = arith.constant 6 : index
    %c0_353 = arith.constant 0 : index
    %512 = vector.load %arg5[%c4_350, %c0_351, %c6_352, %c0_353] : memref<7x1x24x128xf32, #tpu.memory_space<vmem>>, vector<1x1x18x128xf32>
    %513 = vector.shape_cast %512 : vector<1x1x18x128xf32> to vector<1x18x128xf32>
    %514 = vector.shape_cast %511 : vector<128xf32> to vector<1x1x128xf32>
    %515 = vector.broadcast %514 : vector<1x1x128xf32> to vector<1x18x128xf32>
    %516 = arith.mulf %515, %513 : vector<1x18x128xf32>
    %517 = arith.addf %501, %516 : vector<1x18x128xf32>
    %c47 = arith.constant 47 : index
    %c0_354 = arith.constant 0 : index
    %518 = vector.load %arg1[%c47, %c0_354] : memref<120x128xf32, #tpu.memory_space<vmem>>, vector<1x128xf32>
    %519 = vector.shape_cast %518 : vector<1x128xf32> to vector<128xf32>
    %c5_355 = arith.constant 5 : index
    %c0_356 = arith.constant 0 : index
    %c6_357 = arith.constant 6 : index
    %c0_358 = arith.constant 0 : index
    %520 = vector.load %arg5[%c5_355, %c0_356, %c6_357, %c0_358] : memref<7x1x24x128xf32, #tpu.memory_space<vmem>>, vector<1x1x18x128xf32>
    %521 = vector.shape_cast %520 : vector<1x1x18x128xf32> to vector<1x18x128xf32>
    %522 = vector.shape_cast %519 : vector<128xf32> to vector<1x1x128xf32>
    %523 = vector.broadcast %522 : vector<1x1x128xf32> to vector<1x18x128xf32>
    %524 = arith.mulf %523, %521 : vector<1x18x128xf32>
    %525 = arith.addf %509, %524 : vector<1x18x128xf32>
    %c48 = arith.constant 48 : index
    %c0_359 = arith.constant 0 : index
    %526 = vector.load %arg1[%c48, %c0_359] : memref<120x128xf32, #tpu.memory_space<vmem>>, vector<1x128xf32>
    %527 = vector.shape_cast %526 : vector<1x128xf32> to vector<128xf32>
    %c6_360 = arith.constant 6 : index
    %c0_361 = arith.constant 0 : index
    %c6_362 = arith.constant 6 : index
    %c0_363 = arith.constant 0 : index
    %528 = vector.load %arg5[%c6_360, %c0_361, %c6_362, %c0_363] : memref<7x1x24x128xf32, #tpu.memory_space<vmem>>, vector<1x1x18x128xf32>
    %529 = vector.shape_cast %528 : vector<1x1x18x128xf32> to vector<1x18x128xf32>
    %530 = vector.shape_cast %527 : vector<128xf32> to vector<1x1x128xf32>
    %531 = vector.broadcast %530 : vector<1x1x128xf32> to vector<1x18x128xf32>
    %532 = arith.mulf %531, %529 : vector<1x18x128xf32>
    %533 = arith.addf %517, %532 : vector<1x18x128xf32>
    %534 = arith.addf %533, %525 : vector<1x18x128xf32>
    %c49 = arith.constant 49 : index
    %c0_364 = arith.constant 0 : index
    %535 = vector.load %arg1[%c49, %c0_364] : memref<120x128xf32, #tpu.memory_space<vmem>>, vector<1x128xf32>
    %536 = vector.shape_cast %535 : vector<1x128xf32> to vector<128xf32>
    %537 = vector.shape_cast %536 : vector<128xf32> to vector<1x1x128xf32>
    %538 = vector.broadcast %537 : vector<1x1x128xf32> to vector<1x18x128xf32>
    %539 = arith.addf %534, %538 : vector<1x18x128xf32>
    %c0_365 = arith.constant 0 : index
    %c0_366 = arith.constant 0 : index
    %c0_367 = arith.constant 0 : index
    %540 = vector.load %arg6[%c0_365, %c0_366, %c0_367] : memref<1x18x256xf32, #tpu.memory_space<vmem>>, vector<1x18x128xf32>
    tpu.vector_store %arg6[%c0_365, %c0_366, %c0_367], %539 {strides = array<i32>} : memref<1x18x256xf32, #tpu.memory_space<vmem>>, vector<1x18x128xf32>,
    %c0_368 = arith.constant 0 : index
    %c0_369 = arith.constant 0 : index
    %c128_370 = arith.constant 128 : index
    %541 = vector.load %arg6[%c0_368, %c0_369, %c128_370] : memref<1x18x256xf32, #tpu.memory_space<vmem>>, vector<1x18x128xf32>
    tpu.vector_store %arg6[%c0_368, %c0_369, %c128_370], %539 {strides = array<i32>} : memref<1x18x256xf32, #tpu.memory_space<vmem>>, vector<1x18x128xf32>,
    %c65 = arith.constant 65 : index
    %c0_371 = arith.constant 0 : index
    %542 = vector.load %arg1[%c65, %c0_371] : memref<120x128xf32, #tpu.memory_space<vmem>>, vector<1x128xf32>
    %543 = vector.shape_cast %542 : vector<1x128xf32> to vector<128xf32>
    %c3_372 = arith.constant 3 : index
    %c0_373 = arith.constant 0 : index
    %c3_374 = arith.constant 3 : index
    %c0_375 = arith.constant 0 : index
    %544 = vector.load %arg5[%c3_372, %c0_373, %c3_374, %c0_375] : memref<7x1x24x128xf32, #tpu.memory_space<vmem>>, vector<1x1x18x128xf32>
    %545 = vector.shape_cast %544 : vector<1x1x18x128xf32> to vector<1x18x128xf32>
    %546 = vector.shape_cast %543 : vector<128xf32> to vector<1x1x128xf32>
    %547 = vector.broadcast %546 : vector<1x1x128xf32> to vector<1x18x128xf32>
    %548 = arith.mulf %547, %545 : vector<1x18x128xf32>
    %c69 = arith.constant 69 : index
    %c0_376 = arith.constant 0 : index
    %549 = vector.load %arg1[%c69, %c0_376] : memref<120x128xf32, #tpu.memory_space<vmem>>, vector<1x128xf32>
    %550 = vector.shape_cast %549 : vector<1x128xf32> to vector<128xf32>
    %551 = vector.shape_cast %550 : vector<128xf32> to vector<1x1x128xf32>
    %552 = vector.broadcast %551 : vector<1x1x128xf32> to vector<1x18x128xf32>
    %553 = arith.mulf %552, %539 : vector<1x18x128xf32>
    %c66 = arith.constant 66 : index
    %c0_377 = arith.constant 0 : index
    %554 = vector.load %arg1[%c66, %c0_377] : memref<120x128xf32, #tpu.memory_space<vmem>>, vector<1x128xf32>
    %555 = vector.shape_cast %554 : vector<1x128xf32> to vector<128xf32>
    %c0_378 = arith.constant 0 : index
    %c3_379 = arith.constant 3 : index
    %c35_380 = arith.constant 35 : index
    %556 = vector.load %arg4[%c0_378, %c3_379, %c35_380] : memref<1x24x256xf32, #tpu.memory_space<vmem>>, vector<1x18x128xf32>
    %557 = vector.shape_cast %555 : vector<128xf32> to vector<1x1x128xf32>
    %558 = vector.broadcast %557 : vector<1x1x128xf32> to vector<1x18x128xf32>
    %559 = arith.mulf %558, %556 : vector<1x18x128xf32>
    %560 = arith.addf %548, %559 : vector<1x18x128xf32>
    %c70 = arith.constant 70 : index
    %c0_381 = arith.constant 0 : index
    %561 = vector.load %arg1[%c70, %c0_381] : memref<120x128xf32, #tpu.memory_space<vmem>>, vector<1x128xf32>
    %562 = vector.shape_cast %561 : vector<1x128xf32> to vector<128xf32>
    %c0_382 = arith.constant 0 : index
    %c0_383 = arith.constant 0 : index
    %c32_384 = arith.constant 32 : index
    %563 = vector.load %arg6[%c0_382, %c0_383, %c32_384] : memref<1x18x256xf32, #tpu.memory_space<vmem>>, vector<1x18x128xf32>
    %564 = vector.shape_cast %562 : vector<128xf32> to vector<1x1x128xf32>
    %565 = vector.broadcast %564 : vector<1x1x128xf32> to vector<1x18x128xf32>
    %566 = arith.mulf %565, %563 : vector<1x18x128xf32>
    %567 = arith.addf %553, %566 : vector<1x18x128xf32>
    %c67 = arith.constant 67 : index
    %c0_385 = arith.constant 0 : index
    %568 = vector.load %arg1[%c67, %c0_385] : memref<120x128xf32, #tpu.memory_space<vmem>>, vector<1x128xf32>
    %569 = vector.shape_cast %568 : vector<1x128xf32> to vector<128xf32>
    %c0_386 = arith.constant 0 : index
    %c3_387 = arith.constant 3 : index
    %c67_388 = arith.constant 67 : index
    %570 = vector.load %arg4[%c0_386, %c3_387, %c67_388] : memref<1x24x256xf32, #tpu.memory_space<vmem>>, vector<1x18x128xf32>
    %571 = vector.shape_cast %569 : vector<128xf32> to vector<1x1x128xf32>
    %572 = vector.broadcast %571 : vector<1x1x128xf32> to vector<1x18x128xf32>
    %573 = arith.mulf %572, %570 : vector<1x18x128xf32>
    %574 = arith.addf %560, %573 : vector<1x18x128xf32>
    %c71 = arith.constant 71 : index
    %c0_389 = arith.constant 0 : index
    %575 = vector.load %arg1[%c71, %c0_389] : memref<120x128xf32, #tpu.memory_space<vmem>>, vector<1x128xf32>
    %576 = vector.shape_cast %575 : vector<1x128xf32> to vector<128xf32>
    %c0_390 = arith.constant 0 : index
    %c0_391 = arith.constant 0 : index
    %c64_392 = arith.constant 64 : index
    %577 = vector.load %arg6[%c0_390, %c0_391, %c64_392] : memref<1x18x256xf32, #tpu.memory_space<vmem>>, vector<1x18x128xf32>
    %578 = vector.shape_cast %576 : vector<128xf32> to vector<1x1x128xf32>
    %579 = vector.broadcast %578 : vector<1x1x128xf32> to vector<1x18x128xf32>
    %580 = arith.mulf %579, %577 : vector<1x18x128xf32>
    %581 = arith.addf %567, %580 : vector<1x18x128xf32>
    %c68 = arith.constant 68 : index
    %c0_393 = arith.constant 0 : index
    %582 = vector.load %arg1[%c68, %c0_393] : memref<120x128xf32, #tpu.memory_space<vmem>>, vector<1x128xf32>
    %583 = vector.shape_cast %582 : vector<1x128xf32> to vector<128xf32>
    %c0_394 = arith.constant 0 : index
    %c3_395 = arith.constant 3 : index
    %c99 = arith.constant 99 : index
    %584 = vector.load %arg4[%c0_394, %c3_395, %c99] : memref<1x24x256xf32, #tpu.memory_space<vmem>>, vector<1x18x128xf32>
    %585 = vector.shape_cast %583 : vector<128xf32> to vector<1x1x128xf32>
    %586 = vector.broadcast %585 : vector<1x1x128xf32> to vector<1x18x128xf32>
    %587 = arith.mulf %586, %584 : vector<1x18x128xf32>
    %588 = arith.addf %574, %587 : vector<1x18x128xf32>
    %c72 = arith.constant 72 : index
    %c0_396 = arith.constant 0 : index
    %589 = vector.load %arg1[%c72, %c0_396] : memref<120x128xf32, #tpu.memory_space<vmem>>, vector<1x128xf32>
    %590 = vector.shape_cast %589 : vector<1x128xf32> to vector<128xf32>
    %c0_397 = arith.constant 0 : index
    %c0_398 = arith.constant 0 : index
    %c96_399 = arith.constant 96 : index
    %591 = vector.load %arg6[%c0_397, %c0_398, %c96_399] : memref<1x18x256xf32, #tpu.memory_space<vmem>>, vector<1x18x128xf32>
    %592 = vector.shape_cast %590 : vector<128xf32> to vector<1x1x128xf32>
    %593 = vector.broadcast %592 : vector<1x1x128xf32> to vector<1x18x128xf32>
    %594 = arith.mulf %593, %591 : vector<1x18x128xf32>
    %595 = arith.addf %581, %594 : vector<1x18x128xf32>
    %596 = tpu.iota {dimensions = array<i32: 0>} : vector<18x1xi32>
    %c1_i32 = arith.constant 1 : i32
    %597 = vector.broadcast %c1_i32 : i32 to vector<18x1xi32>
    %598 = arith.cmpi sge, %596, %597 : vector<18x1xi32>
    %c16_i32 = arith.constant 16 : i32
    %599 = vector.broadcast %c16_i32 : i32 to vector<18x1xi32>
    %600 = arith.cmpi sle, %596, %599 : vector<18x1xi32>
    %601 = arith.andi %598, %600 : vector<18x1xi1>
    %602 = arith.extui %601 : vector<18x1xi1> to vector<18x1xi32>
    %603 = arith.sitofp %602 : vector<18x1xi32> to vector<18x1xf32>
    %c116 = arith.constant 116 : index
    %c0_400 = arith.constant 0 : index
    %604 = vector.load %arg1[%c116, %c0_400] : memref<120x128xf32, #tpu.memory_space<vmem>>, vector<1x128xf32>
    %605 = vector.shape_cast %604 : vector<1x128xf32> to vector<128xf32>
    %606 = vector.shape_cast %605 : vector<128xf32> to vector<1x128xf32>
    %607 = vector.broadcast %603 : vector<18x1xf32> to vector<18x128xf32>
    %608 = vector.broadcast %606 : vector<1x128xf32> to vector<18x128xf32>
    %609 = arith.mulf %607, %608 : vector<18x128xf32>
    %610 = arith.addf %588, %595 : vector<1x18x128xf32>
    %c73 = arith.constant 73 : index
    %c0_401 = arith.constant 0 : index
    %611 = vector.load %arg1[%c73, %c0_401] : memref<120x128xf32, #tpu.memory_space<vmem>>, vector<1x128xf32>
    %612 = vector.shape_cast %611 : vector<1x128xf32> to vector<128xf32>
    %613 = vector.shape_cast %612 : vector<128xf32> to vector<1x1x128xf32>
    %614 = vector.broadcast %613 : vector<1x1x128xf32> to vector<1x18x128xf32>
    %615 = arith.addf %610, %614 : vector<1x18x128xf32>
    %cst_402 = arith.constant 0.000000e+00 : f32
    %616 = vector.broadcast %cst_402 : f32 to vector<1x18x128xf32>
    %617 = arith.maximumf %615, %616 : vector<1x18x128xf32>
    %618 = vector.shape_cast %609 : vector<18x128xf32> to vector<1x18x128xf32>
    %619 = arith.mulf %617, %618 : vector<1x18x128xf32>
    %c0_403 = arith.constant 0 : index
    %c0_404 = arith.constant 0 : index
    %c0_405 = arith.constant 0 : index
    %620 = vector.load %arg7[%c0_403, %c0_404, %c0_405] : memref<1x18x256xf32, #tpu.memory_space<vmem>>, vector<1x18x128xf32>
    tpu.vector_store %arg7[%c0_403, %c0_404, %c0_405], %619 {strides = array<i32>} : memref<1x18x256xf32, #tpu.memory_space<vmem>>, vector<1x18x128xf32>,
    %c0_406 = arith.constant 0 : index
    %c0_407 = arith.constant 0 : index
    %c128_408 = arith.constant 128 : index
    %621 = vector.load %arg7[%c0_406, %c0_407, %c128_408] : memref<1x18x256xf32, #tpu.memory_space<vmem>>, vector<1x18x128xf32>
    tpu.vector_store %arg7[%c0_406, %c0_407, %c128_408], %619 {strides = array<i32>} : memref<1x18x256xf32, #tpu.memory_space<vmem>>, vector<1x18x128xf32>,
    %c74 = arith.constant 74 : index
    %c0_409 = arith.constant 0 : index
    %622 = vector.load %arg1[%c74, %c0_409] : memref<120x128xf32, #tpu.memory_space<vmem>>, vector<1x128xf32>
    %623 = vector.shape_cast %622 : vector<1x128xf32> to vector<128xf32>
    %c0_410 = arith.constant 0 : index
    %c0_411 = arith.constant 0 : index
    %c0_412 = arith.constant 0 : index
    %624 = vector.load %arg7[%c0_410, %c0_411, %c0_412] : memref<1x18x256xf32, #tpu.memory_space<vmem>>, vector<1x16x128xf32>
    %625 = vector.shape_cast %623 : vector<128xf32> to vector<1x1x128xf32>
    %626 = vector.broadcast %625 : vector<1x1x128xf32> to vector<1x16x128xf32>
    %627 = arith.mulf %626, %624 : vector<1x16x128xf32>
    %c75 = arith.constant 75 : index
    %c0_413 = arith.constant 0 : index
    %628 = vector.load %arg1[%c75, %c0_413] : memref<120x128xf32, #tpu.memory_space<vmem>>, vector<1x128xf32>
    %629 = vector.shape_cast %628 : vector<1x128xf32> to vector<128xf32>
    %c0_414 = arith.constant 0 : index
    %c0_415 = arith.constant 0 : index
    %c1_416 = arith.constant 1 : index
    %630 = vector.load %arg7[%c0_414, %c0_415, %c1_416] : memref<1x18x256xf32, #tpu.memory_space<vmem>>, vector<1x16x128xf32>
    %631 = vector.shape_cast %629 : vector<128xf32> to vector<1x1x128xf32>
    %632 = vector.broadcast %631 : vector<1x1x128xf32> to vector<1x16x128xf32>
    %633 = arith.mulf %632, %630 : vector<1x16x128xf32>
    %c76 = arith.constant 76 : index
    %c0_417 = arith.constant 0 : index
    %634 = vector.load %arg1[%c76, %c0_417] : memref<120x128xf32, #tpu.memory_space<vmem>>, vector<1x128xf32>
    %635 = vector.shape_cast %634 : vector<1x128xf32> to vector<128xf32>
    %c0_418 = arith.constant 0 : index
    %c0_419 = arith.constant 0 : index
    %c2_420 = arith.constant 2 : index
    %636 = vector.load %arg7[%c0_418, %c0_419, %c2_420] : memref<1x18x256xf32, #tpu.memory_space<vmem>>, vector<1x16x128xf32>
    %637 = vector.shape_cast %635 : vector<128xf32> to vector<1x1x128xf32>
    %638 = vector.broadcast %637 : vector<1x1x128xf32> to vector<1x16x128xf32>
    %639 = arith.mulf %638, %636 : vector<1x16x128xf32>
    %640 = arith.addf %627, %639 : vector<1x16x128xf32>
    %c77 = arith.constant 77 : index
    %c0_421 = arith.constant 0 : index
    %641 = vector.load %arg1[%c77, %c0_421] : memref<120x128xf32, #tpu.memory_space<vmem>>, vector<1x128xf32>
    %642 = vector.shape_cast %641 : vector<1x128xf32> to vector<128xf32>
    %c0_422 = arith.constant 0 : index
    %c1_423 = arith.constant 1 : index
    %c0_424 = arith.constant 0 : index
    %643 = vector.load %arg7[%c0_422, %c1_423, %c0_424] : memref<1x18x256xf32, #tpu.memory_space<vmem>>, vector<1x16x128xf32>
    %644 = vector.shape_cast %642 : vector<128xf32> to vector<1x1x128xf32>
    %645 = vector.broadcast %644 : vector<1x1x128xf32> to vector<1x16x128xf32>
    %646 = arith.mulf %645, %643 : vector<1x16x128xf32>
    %647 = arith.addf %633, %646 : vector<1x16x128xf32>
    %c78 = arith.constant 78 : index
    %c0_425 = arith.constant 0 : index
    %648 = vector.load %arg1[%c78, %c0_425] : memref<120x128xf32, #tpu.memory_space<vmem>>, vector<1x128xf32>
    %649 = vector.shape_cast %648 : vector<1x128xf32> to vector<128xf32>
    %c0_426 = arith.constant 0 : index
    %c1_427 = arith.constant 1 : index
    %c1_428 = arith.constant 1 : index
    %650 = vector.load %arg7[%c0_426, %c1_427, %c1_428] : memref<1x18x256xf32, #tpu.memory_space<vmem>>, vector<1x16x128xf32>
    %651 = vector.shape_cast %649 : vector<128xf32> to vector<1x1x128xf32>
    %652 = vector.broadcast %651 : vector<1x1x128xf32> to vector<1x16x128xf32>
    %653 = arith.mulf %652, %650 : vector<1x16x128xf32>
    %654 = arith.addf %640, %653 : vector<1x16x128xf32>
    %c79 = arith.constant 79 : index
    %c0_429 = arith.constant 0 : index
    %655 = vector.load %arg1[%c79, %c0_429] : memref<120x128xf32, #tpu.memory_space<vmem>>, vector<1x128xf32>
    %656 = vector.shape_cast %655 : vector<1x128xf32> to vector<128xf32>
    %c0_430 = arith.constant 0 : index
    %c1_431 = arith.constant 1 : index
    %c2_432 = arith.constant 2 : index
    %657 = vector.load %arg7[%c0_430, %c1_431, %c2_432] : memref<1x18x256xf32, #tpu.memory_space<vmem>>, vector<1x16x128xf32>
    %658 = vector.shape_cast %656 : vector<128xf32> to vector<1x1x128xf32>
    %659 = vector.broadcast %658 : vector<1x1x128xf32> to vector<1x16x128xf32>
    %660 = arith.mulf %659, %657 : vector<1x16x128xf32>
    %661 = arith.addf %647, %660 : vector<1x16x128xf32>
    %c80 = arith.constant 80 : index
    %c0_433 = arith.constant 0 : index
    %662 = vector.load %arg1[%c80, %c0_433] : memref<120x128xf32, #tpu.memory_space<vmem>>, vector<1x128xf32>
    %663 = vector.shape_cast %662 : vector<1x128xf32> to vector<128xf32>
    %c0_434 = arith.constant 0 : index
    %c2_435 = arith.constant 2 : index
    %c0_436 = arith.constant 0 : index
    %664 = vector.load %arg7[%c0_434, %c2_435, %c0_436] : memref<1x18x256xf32, #tpu.memory_space<vmem>>, vector<1x16x128xf32>
    %665 = vector.shape_cast %663 : vector<128xf32> to vector<1x1x128xf32>
    %666 = vector.broadcast %665 : vector<1x1x128xf32> to vector<1x16x128xf32>
    %667 = arith.mulf %666, %664 : vector<1x16x128xf32>
    %668 = arith.addf %654, %667 : vector<1x16x128xf32>
    %c81 = arith.constant 81 : index
    %c0_437 = arith.constant 0 : index
    %669 = vector.load %arg1[%c81, %c0_437] : memref<120x128xf32, #tpu.memory_space<vmem>>, vector<1x128xf32>
    %670 = vector.shape_cast %669 : vector<1x128xf32> to vector<128xf32>
    %c0_438 = arith.constant 0 : index
    %c2_439 = arith.constant 2 : index
    %c1_440 = arith.constant 1 : index
    %671 = vector.load %arg7[%c0_438, %c2_439, %c1_440] : memref<1x18x256xf32, #tpu.memory_space<vmem>>, vector<1x16x128xf32>
    %672 = vector.shape_cast %670 : vector<128xf32> to vector<1x1x128xf32>
    %673 = vector.broadcast %672 : vector<1x1x128xf32> to vector<1x16x128xf32>
    %674 = arith.mulf %673, %671 : vector<1x16x128xf32>
    %675 = arith.addf %661, %674 : vector<1x16x128xf32>
    %c82 = arith.constant 82 : index
    %c0_441 = arith.constant 0 : index
    %676 = vector.load %arg1[%c82, %c0_441] : memref<120x128xf32, #tpu.memory_space<vmem>>, vector<1x128xf32>
    %677 = vector.shape_cast %676 : vector<1x128xf32> to vector<128xf32>
    %c0_442 = arith.constant 0 : index
    %c2_443 = arith.constant 2 : index
    %c2_444 = arith.constant 2 : index
    %678 = vector.load %arg7[%c0_442, %c2_443, %c2_444] : memref<1x18x256xf32, #tpu.memory_space<vmem>>, vector<1x16x128xf32>
    %679 = vector.shape_cast %677 : vector<128xf32> to vector<1x1x128xf32>
    %680 = vector.broadcast %679 : vector<1x1x128xf32> to vector<1x16x128xf32>
    %681 = arith.mulf %680, %678 : vector<1x16x128xf32>
    %682 = arith.addf %668, %681 : vector<1x16x128xf32>
    %c83 = arith.constant 83 : index
    %c0_445 = arith.constant 0 : index
    %683 = vector.load %arg1[%c83, %c0_445] : memref<120x128xf32, #tpu.memory_space<vmem>>, vector<1x128xf32>
    %684 = vector.shape_cast %683 : vector<1x128xf32> to vector<128xf32>
    %c0_446 = arith.constant 0 : index
    %c0_447 = arith.constant 0 : index
    %c32_448 = arith.constant 32 : index
    %685 = vector.load %arg7[%c0_446, %c0_447, %c32_448] : memref<1x18x256xf32, #tpu.memory_space<vmem>>, vector<1x16x128xf32>
    %686 = vector.shape_cast %684 : vector<128xf32> to vector<1x1x128xf32>
    %687 = vector.broadcast %686 : vector<1x1x128xf32> to vector<1x16x128xf32>
    %688 = arith.mulf %687, %685 : vector<1x16x128xf32>
    %689 = arith.addf %675, %688 : vector<1x16x128xf32>
    %c84 = arith.constant 84 : index
    %c0_449 = arith.constant 0 : index
    %690 = vector.load %arg1[%c84, %c0_449] : memref<120x128xf32, #tpu.memory_space<vmem>>, vector<1x128xf32>
    %691 = vector.shape_cast %690 : vector<1x128xf32> to vector<128xf32>
    %c0_450 = arith.constant 0 : index
    %c0_451 = arith.constant 0 : index
    %c33_452 = arith.constant 33 : index
    %692 = vector.load %arg7[%c0_450, %c0_451, %c33_452] : memref<1x18x256xf32, #tpu.memory_space<vmem>>, vector<1x16x128xf32>
    %693 = vector.shape_cast %691 : vector<128xf32> to vector<1x1x128xf32>
    %694 = vector.broadcast %693 : vector<1x1x128xf32> to vector<1x16x128xf32>
    %695 = arith.mulf %694, %692 : vector<1x16x128xf32>
    %696 = arith.addf %682, %695 : vector<1x16x128xf32>
    %c85 = arith.constant 85 : index
    %c0_453 = arith.constant 0 : index
    %697 = vector.load %arg1[%c85, %c0_453] : memref<120x128xf32, #tpu.memory_space<vmem>>, vector<1x128xf32>
    %698 = vector.shape_cast %697 : vector<1x128xf32> to vector<128xf32>
    %c0_454 = arith.constant 0 : index
    %c0_455 = arith.constant 0 : index
    %c34_456 = arith.constant 34 : index
    %699 = vector.load %arg7[%c0_454, %c0_455, %c34_456] : memref<1x18x256xf32, #tpu.memory_space<vmem>>, vector<1x16x128xf32>
    %700 = vector.shape_cast %698 : vector<128xf32> to vector<1x1x128xf32>
    %701 = vector.broadcast %700 : vector<1x1x128xf32> to vector<1x16x128xf32>
    %702 = arith.mulf %701, %699 : vector<1x16x128xf32>
    %703 = arith.addf %689, %702 : vector<1x16x128xf32>
    %c86 = arith.constant 86 : index
    %c0_457 = arith.constant 0 : index
    %704 = vector.load %arg1[%c86, %c0_457] : memref<120x128xf32, #tpu.memory_space<vmem>>, vector<1x128xf32>
    %705 = vector.shape_cast %704 : vector<1x128xf32> to vector<128xf32>
    %c0_458 = arith.constant 0 : index
    %c1_459 = arith.constant 1 : index
    %c32_460 = arith.constant 32 : index
    %706 = vector.load %arg7[%c0_458, %c1_459, %c32_460] : memref<1x18x256xf32, #tpu.memory_space<vmem>>, vector<1x16x128xf32>
    %707 = vector.shape_cast %705 : vector<128xf32> to vector<1x1x128xf32>
    %708 = vector.broadcast %707 : vector<1x1x128xf32> to vector<1x16x128xf32>
    %709 = arith.mulf %708, %706 : vector<1x16x128xf32>
    %710 = arith.addf %696, %709 : vector<1x16x128xf32>
    %c87 = arith.constant 87 : index
    %c0_461 = arith.constant 0 : index
    %711 = vector.load %arg1[%c87, %c0_461] : memref<120x128xf32, #tpu.memory_space<vmem>>, vector<1x128xf32>
    %712 = vector.shape_cast %711 : vector<1x128xf32> to vector<128xf32>
    %c0_462 = arith.constant 0 : index
    %c1_463 = arith.constant 1 : index
    %c33_464 = arith.constant 33 : index
    %713 = vector.load %arg7[%c0_462, %c1_463, %c33_464] : memref<1x18x256xf32, #tpu.memory_space<vmem>>, vector<1x16x128xf32>
    %714 = vector.shape_cast %712 : vector<128xf32> to vector<1x1x128xf32>
    %715 = vector.broadcast %714 : vector<1x1x128xf32> to vector<1x16x128xf32>
    %716 = arith.mulf %715, %713 : vector<1x16x128xf32>
    %717 = arith.addf %703, %716 : vector<1x16x128xf32>
    %c88 = arith.constant 88 : index
    %c0_465 = arith.constant 0 : index
    %718 = vector.load %arg1[%c88, %c0_465] : memref<120x128xf32, #tpu.memory_space<vmem>>, vector<1x128xf32>
    %719 = vector.shape_cast %718 : vector<1x128xf32> to vector<128xf32>
    %c0_466 = arith.constant 0 : index
    %c1_467 = arith.constant 1 : index
    %c34_468 = arith.constant 34 : index
    %720 = vector.load %arg7[%c0_466, %c1_467, %c34_468] : memref<1x18x256xf32, #tpu.memory_space<vmem>>, vector<1x16x128xf32>
    %721 = vector.shape_cast %719 : vector<128xf32> to vector<1x1x128xf32>
    %722 = vector.broadcast %721 : vector<1x1x128xf32> to vector<1x16x128xf32>
    %723 = arith.mulf %722, %720 : vector<1x16x128xf32>
    %724 = arith.addf %710, %723 : vector<1x16x128xf32>
    %c89 = arith.constant 89 : index
    %c0_469 = arith.constant 0 : index
    %725 = vector.load %arg1[%c89, %c0_469] : memref<120x128xf32, #tpu.memory_space<vmem>>, vector<1x128xf32>
    %726 = vector.shape_cast %725 : vector<1x128xf32> to vector<128xf32>
    %c0_470 = arith.constant 0 : index
    %c2_471 = arith.constant 2 : index
    %c32_472 = arith.constant 32 : index
    %727 = vector.load %arg7[%c0_470, %c2_471, %c32_472] : memref<1x18x256xf32, #tpu.memory_space<vmem>>, vector<1x16x128xf32>
    %728 = vector.shape_cast %726 : vector<128xf32> to vector<1x1x128xf32>
    %729 = vector.broadcast %728 : vector<1x1x128xf32> to vector<1x16x128xf32>
    %730 = arith.mulf %729, %727 : vector<1x16x128xf32>
    %731 = arith.addf %717, %730 : vector<1x16x128xf32>
    %c90 = arith.constant 90 : index
    %c0_473 = arith.constant 0 : index
    %732 = vector.load %arg1[%c90, %c0_473] : memref<120x128xf32, #tpu.memory_space<vmem>>, vector<1x128xf32>
    %733 = vector.shape_cast %732 : vector<1x128xf32> to vector<128xf32>
    %c0_474 = arith.constant 0 : index
    %c2_475 = arith.constant 2 : index
    %c33_476 = arith.constant 33 : index
    %734 = vector.load %arg7[%c0_474, %c2_475, %c33_476] : memref<1x18x256xf32, #tpu.memory_space<vmem>>, vector<1x16x128xf32>
    %735 = vector.shape_cast %733 : vector<128xf32> to vector<1x1x128xf32>
    %736 = vector.broadcast %735 : vector<1x1x128xf32> to vector<1x16x128xf32>
    %737 = arith.mulf %736, %734 : vector<1x16x128xf32>
    %738 = arith.addf %724, %737 : vector<1x16x128xf32>
    %c91 = arith.constant 91 : index
    %c0_477 = arith.constant 0 : index
    %739 = vector.load %arg1[%c91, %c0_477] : memref<120x128xf32, #tpu.memory_space<vmem>>, vector<1x128xf32>
    %740 = vector.shape_cast %739 : vector<1x128xf32> to vector<128xf32>
    %c0_478 = arith.constant 0 : index
    %c2_479 = arith.constant 2 : index
    %c34_480 = arith.constant 34 : index
    %741 = vector.load %arg7[%c0_478, %c2_479, %c34_480] : memref<1x18x256xf32, #tpu.memory_space<vmem>>, vector<1x16x128xf32>
    %742 = vector.shape_cast %740 : vector<128xf32> to vector<1x1x128xf32>
    %743 = vector.broadcast %742 : vector<1x1x128xf32> to vector<1x16x128xf32>
    %744 = arith.mulf %743, %741 : vector<1x16x128xf32>
    %745 = arith.addf %731, %744 : vector<1x16x128xf32>
    %c92 = arith.constant 92 : index
    %c0_481 = arith.constant 0 : index
    %746 = vector.load %arg1[%c92, %c0_481] : memref<120x128xf32, #tpu.memory_space<vmem>>, vector<1x128xf32>
    %747 = vector.shape_cast %746 : vector<1x128xf32> to vector<128xf32>
    %c0_482 = arith.constant 0 : index
    %c0_483 = arith.constant 0 : index
    %c64_484 = arith.constant 64 : index
    %748 = vector.load %arg7[%c0_482, %c0_483, %c64_484] : memref<1x18x256xf32, #tpu.memory_space<vmem>>, vector<1x16x128xf32>
    %749 = vector.shape_cast %747 : vector<128xf32> to vector<1x1x128xf32>
    %750 = vector.broadcast %749 : vector<1x1x128xf32> to vector<1x16x128xf32>
    %751 = arith.mulf %750, %748 : vector<1x16x128xf32>
    %752 = arith.addf %738, %751 : vector<1x16x128xf32>
    %c93 = arith.constant 93 : index
    %c0_485 = arith.constant 0 : index
    %753 = vector.load %arg1[%c93, %c0_485] : memref<120x128xf32, #tpu.memory_space<vmem>>, vector<1x128xf32>
    %754 = vector.shape_cast %753 : vector<1x128xf32> to vector<128xf32>
    %c0_486 = arith.constant 0 : index
    %c0_487 = arith.constant 0 : index
    %c65_488 = arith.constant 65 : index
    %755 = vector.load %arg7[%c0_486, %c0_487, %c65_488] : memref<1x18x256xf32, #tpu.memory_space<vmem>>, vector<1x16x128xf32>
    %756 = vector.shape_cast %754 : vector<128xf32> to vector<1x1x128xf32>
    %757 = vector.broadcast %756 : vector<1x1x128xf32> to vector<1x16x128xf32>
    %758 = arith.mulf %757, %755 : vector<1x16x128xf32>
    %759 = arith.addf %745, %758 : vector<1x16x128xf32>
    %c94 = arith.constant 94 : index
    %c0_489 = arith.constant 0 : index
    %760 = vector.load %arg1[%c94, %c0_489] : memref<120x128xf32, #tpu.memory_space<vmem>>, vector<1x128xf32>
    %761 = vector.shape_cast %760 : vector<1x128xf32> to vector<128xf32>
    %c0_490 = arith.constant 0 : index
    %c0_491 = arith.constant 0 : index
    %c66_492 = arith.constant 66 : index
    %762 = vector.load %arg7[%c0_490, %c0_491, %c66_492] : memref<1x18x256xf32, #tpu.memory_space<vmem>>, vector<1x16x128xf32>
    %763 = vector.shape_cast %761 : vector<128xf32> to vector<1x1x128xf32>
    %764 = vector.broadcast %763 : vector<1x1x128xf32> to vector<1x16x128xf32>
    %765 = arith.mulf %764, %762 : vector<1x16x128xf32>
    %766 = arith.addf %752, %765 : vector<1x16x128xf32>
    %c95 = arith.constant 95 : index
    %c0_493 = arith.constant 0 : index
    %767 = vector.load %arg1[%c95, %c0_493] : memref<120x128xf32, #tpu.memory_space<vmem>>, vector<1x128xf32>
    %768 = vector.shape_cast %767 : vector<1x128xf32> to vector<128xf32>
    %c0_494 = arith.constant 0 : index
    %c1_495 = arith.constant 1 : index
    %c64_496 = arith.constant 64 : index
    %769 = vector.load %arg7[%c0_494, %c1_495, %c64_496] : memref<1x18x256xf32, #tpu.memory_space<vmem>>, vector<1x16x128xf32>
    %770 = vector.shape_cast %768 : vector<128xf32> to vector<1x1x128xf32>
    %771 = vector.broadcast %770 : vector<1x1x128xf32> to vector<1x16x128xf32>
    %772 = arith.mulf %771, %769 : vector<1x16x128xf32>
    %773 = arith.addf %759, %772 : vector<1x16x128xf32>
    %c96_497 = arith.constant 96 : index
    %c0_498 = arith.constant 0 : index
    %774 = vector.load %arg1[%c96_497, %c0_498] : memref<120x128xf32, #tpu.memory_space<vmem>>, vector<1x128xf32>
    %775 = vector.shape_cast %774 : vector<1x128xf32> to vector<128xf32>
    %c0_499 = arith.constant 0 : index
    %c1_500 = arith.constant 1 : index
    %c65_501 = arith.constant 65 : index
    %776 = vector.load %arg7[%c0_499, %c1_500, %c65_501] : memref<1x18x256xf32, #tpu.memory_space<vmem>>, vector<1x16x128xf32>
    %777 = vector.shape_cast %775 : vector<128xf32> to vector<1x1x128xf32>
    %778 = vector.broadcast %777 : vector<1x1x128xf32> to vector<1x16x128xf32>
    %779 = arith.mulf %778, %776 : vector<1x16x128xf32>
    %780 = arith.addf %766, %779 : vector<1x16x128xf32>
    %c97 = arith.constant 97 : index
    %c0_502 = arith.constant 0 : index
    %781 = vector.load %arg1[%c97, %c0_502] : memref<120x128xf32, #tpu.memory_space<vmem>>, vector<1x128xf32>
    %782 = vector.shape_cast %781 : vector<1x128xf32> to vector<128xf32>
    %c0_503 = arith.constant 0 : index
    %c1_504 = arith.constant 1 : index
    %c66_505 = arith.constant 66 : index
    %783 = vector.load %arg7[%c0_503, %c1_504, %c66_505] : memref<1x18x256xf32, #tpu.memory_space<vmem>>, vector<1x16x128xf32>
    %784 = vector.shape_cast %782 : vector<128xf32> to vector<1x1x128xf32>
    %785 = vector.broadcast %784 : vector<1x1x128xf32> to vector<1x16x128xf32>
    %786 = arith.mulf %785, %783 : vector<1x16x128xf32>
    %787 = arith.addf %773, %786 : vector<1x16x128xf32>
    %c98 = arith.constant 98 : index
    %c0_506 = arith.constant 0 : index
    %788 = vector.load %arg1[%c98, %c0_506] : memref<120x128xf32, #tpu.memory_space<vmem>>, vector<1x128xf32>
    %789 = vector.shape_cast %788 : vector<1x128xf32> to vector<128xf32>
    %c0_507 = arith.constant 0 : index
    %c2_508 = arith.constant 2 : index
    %c64_509 = arith.constant 64 : index
    %790 = vector.load %arg7[%c0_507, %c2_508, %c64_509] : memref<1x18x256xf32, #tpu.memory_space<vmem>>, vector<1x16x128xf32>
    %791 = vector.shape_cast %789 : vector<128xf32> to vector<1x1x128xf32>
    %792 = vector.broadcast %791 : vector<1x1x128xf32> to vector<1x16x128xf32>
    %793 = arith.mulf %792, %790 : vector<1x16x128xf32>
    %794 = arith.addf %780, %793 : vector<1x16x128xf32>
    %c99_510 = arith.constant 99 : index
    %c0_511 = arith.constant 0 : index
    %795 = vector.load %arg1[%c99_510, %c0_511] : memref<120x128xf32, #tpu.memory_space<vmem>>, vector<1x128xf32>
    %796 = vector.shape_cast %795 : vector<1x128xf32> to vector<128xf32>
    %c0_512 = arith.constant 0 : index
    %c2_513 = arith.constant 2 : index
    %c65_514 = arith.constant 65 : index
    %797 = vector.load %arg7[%c0_512, %c2_513, %c65_514] : memref<1x18x256xf32, #tpu.memory_space<vmem>>, vector<1x16x128xf32>
    %798 = vector.shape_cast %796 : vector<128xf32> to vector<1x1x128xf32>
    %799 = vector.broadcast %798 : vector<1x1x128xf32> to vector<1x16x128xf32>
    %800 = arith.mulf %799, %797 : vector<1x16x128xf32>
    %801 = arith.addf %787, %800 : vector<1x16x128xf32>
    %c100 = arith.constant 100 : index
    %c0_515 = arith.constant 0 : index
    %802 = vector.load %arg1[%c100, %c0_515] : memref<120x128xf32, #tpu.memory_space<vmem>>, vector<1x128xf32>
    %803 = vector.shape_cast %802 : vector<1x128xf32> to vector<128xf32>
    %c0_516 = arith.constant 0 : index
    %c2_517 = arith.constant 2 : index
    %c66_518 = arith.constant 66 : index
    %804 = vector.load %arg7[%c0_516, %c2_517, %c66_518] : memref<1x18x256xf32, #tpu.memory_space<vmem>>, vector<1x16x128xf32>
    %805 = vector.shape_cast %803 : vector<128xf32> to vector<1x1x128xf32>
    %806 = vector.broadcast %805 : vector<1x1x128xf32> to vector<1x16x128xf32>
    %807 = arith.mulf %806, %804 : vector<1x16x128xf32>
    %808 = arith.addf %794, %807 : vector<1x16x128xf32>
    %c101 = arith.constant 101 : index
    %c0_519 = arith.constant 0 : index
    %809 = vector.load %arg1[%c101, %c0_519] : memref<120x128xf32, #tpu.memory_space<vmem>>, vector<1x128xf32>
    %810 = vector.shape_cast %809 : vector<1x128xf32> to vector<128xf32>
    %c0_520 = arith.constant 0 : index
    %c0_521 = arith.constant 0 : index
    %c96_522 = arith.constant 96 : index
    %811 = vector.load %arg7[%c0_520, %c0_521, %c96_522] : memref<1x18x256xf32, #tpu.memory_space<vmem>>, vector<1x16x128xf32>
    %812 = vector.shape_cast %810 : vector<128xf32> to vector<1x1x128xf32>
    %813 = vector.broadcast %812 : vector<1x1x128xf32> to vector<1x16x128xf32>
    %814 = arith.mulf %813, %811 : vector<1x16x128xf32>
    %815 = arith.addf %801, %814 : vector<1x16x128xf32>
    %c102 = arith.constant 102 : index
    %c0_523 = arith.constant 0 : index
    %816 = vector.load %arg1[%c102, %c0_523] : memref<120x128xf32, #tpu.memory_space<vmem>>, vector<1x128xf32>
    %817 = vector.shape_cast %816 : vector<1x128xf32> to vector<128xf32>
    %c0_524 = arith.constant 0 : index
    %c0_525 = arith.constant 0 : index
    %c97_526 = arith.constant 97 : index
    %818 = vector.load %arg7[%c0_524, %c0_525, %c97_526] : memref<1x18x256xf32, #tpu.memory_space<vmem>>, vector<1x16x128xf32>
    %819 = vector.shape_cast %817 : vector<128xf32> to vector<1x1x128xf32>
    %820 = vector.broadcast %819 : vector<1x1x128xf32> to vector<1x16x128xf32>
    %821 = arith.mulf %820, %818 : vector<1x16x128xf32>
    %822 = arith.addf %808, %821 : vector<1x16x128xf32>
    %c103 = arith.constant 103 : index
    %c0_527 = arith.constant 0 : index
    %823 = vector.load %arg1[%c103, %c0_527] : memref<120x128xf32, #tpu.memory_space<vmem>>, vector<1x128xf32>
    %824 = vector.shape_cast %823 : vector<1x128xf32> to vector<128xf32>
    %c0_528 = arith.constant 0 : index
    %c0_529 = arith.constant 0 : index
    %c98_530 = arith.constant 98 : index
    %825 = vector.load %arg7[%c0_528, %c0_529, %c98_530] : memref<1x18x256xf32, #tpu.memory_space<vmem>>, vector<1x16x128xf32>
    %826 = vector.shape_cast %824 : vector<128xf32> to vector<1x1x128xf32>
    %827 = vector.broadcast %826 : vector<1x1x128xf32> to vector<1x16x128xf32>
    %828 = arith.mulf %827, %825 : vector<1x16x128xf32>
    %829 = arith.addf %815, %828 : vector<1x16x128xf32>
    %c104 = arith.constant 104 : index
    %c0_531 = arith.constant 0 : index
    %830 = vector.load %arg1[%c104, %c0_531] : memref<120x128xf32, #tpu.memory_space<vmem>>, vector<1x128xf32>
    %831 = vector.shape_cast %830 : vector<1x128xf32> to vector<128xf32>
    %c0_532 = arith.constant 0 : index
    %c1_533 = arith.constant 1 : index
    %c96_534 = arith.constant 96 : index
    %832 = vector.load %arg7[%c0_532, %c1_533, %c96_534] : memref<1x18x256xf32, #tpu.memory_space<vmem>>, vector<1x16x128xf32>
    %833 = vector.shape_cast %831 : vector<128xf32> to vector<1x1x128xf32>
    %834 = vector.broadcast %833 : vector<1x1x128xf32> to vector<1x16x128xf32>
    %835 = arith.mulf %834, %832 : vector<1x16x128xf32>
    %836 = arith.addf %822, %835 : vector<1x16x128xf32>
    %c105 = arith.constant 105 : index
    %c0_535 = arith.constant 0 : index
    %837 = vector.load %arg1[%c105, %c0_535] : memref<120x128xf32, #tpu.memory_space<vmem>>, vector<1x128xf32>
    %838 = vector.shape_cast %837 : vector<1x128xf32> to vector<128xf32>
    %c0_536 = arith.constant 0 : index
    %c1_537 = arith.constant 1 : index
    %c97_538 = arith.constant 97 : index
    %839 = vector.load %arg7[%c0_536, %c1_537, %c97_538] : memref<1x18x256xf32, #tpu.memory_space<vmem>>, vector<1x16x128xf32>
    %840 = vector.shape_cast %838 : vector<128xf32> to vector<1x1x128xf32>
    %841 = vector.broadcast %840 : vector<1x1x128xf32> to vector<1x16x128xf32>
    %842 = arith.mulf %841, %839 : vector<1x16x128xf32>
    %843 = arith.addf %829, %842 : vector<1x16x128xf32>
    %c106 = arith.constant 106 : index
    %c0_539 = arith.constant 0 : index
    %844 = vector.load %arg1[%c106, %c0_539] : memref<120x128xf32, #tpu.memory_space<vmem>>, vector<1x128xf32>
    %845 = vector.shape_cast %844 : vector<1x128xf32> to vector<128xf32>
    %c0_540 = arith.constant 0 : index
    %c1_541 = arith.constant 1 : index
    %c98_542 = arith.constant 98 : index
    %846 = vector.load %arg7[%c0_540, %c1_541, %c98_542] : memref<1x18x256xf32, #tpu.memory_space<vmem>>, vector<1x16x128xf32>
    %847 = vector.shape_cast %845 : vector<128xf32> to vector<1x1x128xf32>
    %848 = vector.broadcast %847 : vector<1x1x128xf32> to vector<1x16x128xf32>
    %849 = arith.mulf %848, %846 : vector<1x16x128xf32>
    %850 = arith.addf %836, %849 : vector<1x16x128xf32>
    %c107 = arith.constant 107 : index
    %c0_543 = arith.constant 0 : index
    %851 = vector.load %arg1[%c107, %c0_543] : memref<120x128xf32, #tpu.memory_space<vmem>>, vector<1x128xf32>
    %852 = vector.shape_cast %851 : vector<1x128xf32> to vector<128xf32>
    %c0_544 = arith.constant 0 : index
    %c2_545 = arith.constant 2 : index
    %c96_546 = arith.constant 96 : index
    %853 = vector.load %arg7[%c0_544, %c2_545, %c96_546] : memref<1x18x256xf32, #tpu.memory_space<vmem>>, vector<1x16x128xf32>
    %854 = vector.shape_cast %852 : vector<128xf32> to vector<1x1x128xf32>
    %855 = vector.broadcast %854 : vector<1x1x128xf32> to vector<1x16x128xf32>
    %856 = arith.mulf %855, %853 : vector<1x16x128xf32>
    %857 = arith.addf %843, %856 : vector<1x16x128xf32>
    %c108 = arith.constant 108 : index
    %c0_547 = arith.constant 0 : index
    %858 = vector.load %arg1[%c108, %c0_547] : memref<120x128xf32, #tpu.memory_space<vmem>>, vector<1x128xf32>
    %859 = vector.shape_cast %858 : vector<1x128xf32> to vector<128xf32>
    %c0_548 = arith.constant 0 : index
    %c2_549 = arith.constant 2 : index
    %c97_550 = arith.constant 97 : index
    %860 = vector.load %arg7[%c0_548, %c2_549, %c97_550] : memref<1x18x256xf32, #tpu.memory_space<vmem>>, vector<1x16x128xf32>
    %861 = vector.shape_cast %859 : vector<128xf32> to vector<1x1x128xf32>
    %862 = vector.broadcast %861 : vector<1x1x128xf32> to vector<1x16x128xf32>
    %863 = arith.mulf %862, %860 : vector<1x16x128xf32>
    %864 = arith.addf %850, %863 : vector<1x16x128xf32>
    %c109 = arith.constant 109 : index
    %c0_551 = arith.constant 0 : index
    %865 = vector.load %arg1[%c109, %c0_551] : memref<120x128xf32, #tpu.memory_space<vmem>>, vector<1x128xf32>
    %866 = vector.shape_cast %865 : vector<1x128xf32> to vector<128xf32>
    %c0_552 = arith.constant 0 : index
    %c2_553 = arith.constant 2 : index
    %c98_554 = arith.constant 98 : index
    %867 = vector.load %arg7[%c0_552, %c2_553, %c98_554] : memref<1x18x256xf32, #tpu.memory_space<vmem>>, vector<1x16x128xf32>
    %868 = vector.shape_cast %866 : vector<128xf32> to vector<1x1x128xf32>
    %869 = vector.broadcast %868 : vector<1x1x128xf32> to vector<1x16x128xf32>
    %870 = arith.mulf %869, %867 : vector<1x16x128xf32>
    %871 = arith.addf %857, %870 : vector<1x16x128xf32>
    %872 = arith.addf %864, %871 : vector<1x16x128xf32>
    %c110 = arith.constant 110 : index
    %c0_555 = arith.constant 0 : index
    %873 = vector.load %arg1[%c110, %c0_555] : memref<120x128xf32, #tpu.memory_space<vmem>>, vector<1x128xf32>
    %874 = vector.shape_cast %873 : vector<1x128xf32> to vector<128xf32>
    %875 = vector.shape_cast %874 : vector<128xf32> to vector<1x1x128xf32>
    %876 = vector.broadcast %875 : vector<1x1x128xf32> to vector<1x16x128xf32>
    %877 = arith.addf %872, %876 : vector<1x16x128xf32>
    %cst_556 = arith.constant 0.000000e+00 : f32
    %878 = vector.broadcast %cst_556 : f32 to vector<1x16x128xf32>
    %879 = arith.maximumf %877, %878 : vector<1x16x128xf32>
    %c0_557 = arith.constant 0 : index
    %c0_558 = arith.constant 0 : index
    %c0_559 = arith.constant 0 : index
    %880 = vector.load %arg6[%c0_557, %c0_558, %c0_559] : memref<1x18x256xf32, #tpu.memory_space<vmem>>, vector<1x16x128xf32>
    tpu.vector_store %arg6[%c0_557, %c0_558, %c0_559], %879 {strides = array<i32>} : memref<1x18x256xf32, #tpu.memory_space<vmem>>, vector<1x16x128xf32>,
    %c0_560 = arith.constant 0 : index
    %c0_561 = arith.constant 0 : index
    %c128_562 = arith.constant 128 : index
    %881 = vector.load %arg6[%c0_560, %c0_561, %c128_562] : memref<1x18x256xf32, #tpu.memory_space<vmem>>, vector<1x16x128xf32>
    tpu.vector_store %arg6[%c0_560, %c0_561, %c128_562], %879 {strides = array<i32>} : memref<1x18x256xf32, #tpu.memory_space<vmem>>, vector<1x16x128xf32>,
    %c111 = arith.constant 111 : index
    %c0_563 = arith.constant 0 : index
    %882 = vector.load %arg1[%c111, %c0_563] : memref<120x128xf32, #tpu.memory_space<vmem>>, vector<1x128xf32>
    %883 = vector.shape_cast %882 : vector<1x128xf32> to vector<128xf32>
    %884 = vector.shape_cast %883 : vector<128xf32> to vector<1x1x128xf32>
    %885 = vector.broadcast %884 : vector<1x1x128xf32> to vector<1x16x128xf32>
    %886 = arith.mulf %885, %879 : vector<1x16x128xf32>
    %c112 = arith.constant 112 : index
    %c0_564 = arith.constant 0 : index
    %887 = vector.load %arg1[%c112, %c0_564] : memref<120x128xf32, #tpu.memory_space<vmem>>, vector<1x128xf32>
    %888 = vector.shape_cast %887 : vector<1x128xf32> to vector<128xf32>
    %c0_565 = arith.constant 0 : index
    %c0_566 = arith.constant 0 : index
    %c32_567 = arith.constant 32 : index
    %889 = vector.load %arg6[%c0_565, %c0_566, %c32_567] : memref<1x18x256xf32, #tpu.memory_space<vmem>>, vector<1x16x128xf32>
    %890 = vector.shape_cast %888 : vector<128xf32> to vector<1x1x128xf32>
    %891 = vector.broadcast %890 : vector<1x1x128xf32> to vector<1x16x128xf32>
    %892 = arith.mulf %891, %889 : vector<1x16x128xf32>
    %893 = arith.addf %886, %892 : vector<1x16x128xf32>
    %c113 = arith.constant 113 : index
    %c0_568 = arith.constant 0 : index
    %894 = vector.load %arg1[%c113, %c0_568] : memref<120x128xf32, #tpu.memory_space<vmem>>, vector<1x128xf32>
    %895 = vector.shape_cast %894 : vector<1x128xf32> to vector<128xf32>
    %c0_569 = arith.constant 0 : index
    %c0_570 = arith.constant 0 : index
    %c64_571 = arith.constant 64 : index
    %896 = vector.load %arg6[%c0_569, %c0_570, %c64_571] : memref<1x18x256xf32, #tpu.memory_space<vmem>>, vector<1x16x128xf32>
    %897 = vector.shape_cast %895 : vector<128xf32> to vector<1x1x128xf32>
    %898 = vector.broadcast %897 : vector<1x1x128xf32> to vector<1x16x128xf32>
    %899 = arith.mulf %898, %896 : vector<1x16x128xf32>
    %900 = arith.addf %893, %899 : vector<1x16x128xf32>
    %c114 = arith.constant 114 : index
    %c0_572 = arith.constant 0 : index
    %901 = vector.load %arg1[%c114, %c0_572] : memref<120x128xf32, #tpu.memory_space<vmem>>, vector<1x128xf32>
    %902 = vector.shape_cast %901 : vector<1x128xf32> to vector<128xf32>
    %c0_573 = arith.constant 0 : index
    %c0_574 = arith.constant 0 : index
    %c96_575 = arith.constant 96 : index
    %903 = vector.load %arg6[%c0_573, %c0_574, %c96_575] : memref<1x18x256xf32, #tpu.memory_space<vmem>>, vector<1x16x128xf32>
    %904 = vector.shape_cast %902 : vector<128xf32> to vector<1x1x128xf32>
    %905 = vector.broadcast %904 : vector<1x1x128xf32> to vector<1x16x128xf32>
    %906 = arith.mulf %905, %903 : vector<1x16x128xf32>
    %907 = arith.addf %900, %906 : vector<1x16x128xf32>
    %c115 = arith.constant 115 : index
    %c0_576 = arith.constant 0 : index
    %908 = vector.load %arg1[%c115, %c0_576] : memref<120x128xf32, #tpu.memory_space<vmem>>, vector<1x128xf32>
    %909 = vector.shape_cast %908 : vector<1x128xf32> to vector<128xf32>
    %910 = vector.shape_cast %909 : vector<128xf32> to vector<1x1x128xf32>
    %911 = vector.broadcast %910 : vector<1x1x128xf32> to vector<1x16x128xf32>
    %912 = arith.addf %907, %911 : vector<1x16x128xf32>
    %913 = arith.negf %912 : vector<1x16x128xf32>
    %914 = math.exp %913 : vector<1x16x128xf32>
    %cst_577 = arith.constant 1.000000e+00 : f32
    %915 = vector.broadcast %cst_577 : f32 to vector<1x16x128xf32>
    %916 = arith.addf %915, %914 : vector<1x16x128xf32>
    %917 = arith.divf %915, %916 : vector<1x16x128xf32>
    %cst_578 = arith.constant 1.000000e+00 : f32
    %918 = vector.broadcast %cst_578 : f32 to vector<1x16x128xf32>
    %919 = arith.addf %918, %143 : vector<1x16x128xf32>
    %920 = arith.mulf %917, %919 : vector<1x16x128xf32>
    %c4_579 = arith.constant 4 : index
    %c0_580 = arith.constant 0 : index
    %c4_581 = arith.constant 4 : index
    %c0_582 = arith.constant 0 : index
    %921 = vector.load %arg5[%c4_579, %c0_580, %c4_581, %c0_582] : memref<7x1x24x128xf32, #tpu.memory_space<vmem>>, vector<1x1x16x128xf32>
    %922 = vector.shape_cast %921 : vector<1x1x16x128xf32> to vector<1x16x128xf32>
    %923 = arith.mulf %922, %920 : vector<1x16x128xf32>
    %924 = vector.extract_strided_slice %923 {offsets = [0, 0, 0], sizes = [1, 16, 16], strides = [1, 1, 1]} : vector<1x16x128xf32> to vector<1x16x16xf32>
    %c0_583 = arith.constant 0 : index
    %c0_584 = arith.constant 0 : index
    %c0_585 = arith.constant 0 : index
    %c0_586 = arith.constant 0 : index
    %925 = vector.load %arg3[%c0_583, %c0_584, %c0_585, %c0_586] : memref<1x4x16x16xf32, #tpu.memory_space<vmem>>, vector<1x1x16x16xf32>
    %926 = vector.shape_cast %925 : vector<1x1x16x16xf32> to vector<1x16x16xf32>
    %927 = vector.shape_cast %924 : vector<1x16x16xf32> to vector<1x1x16x16xf32>
    tpu.vector_store %arg3[%c0_583, %c0_584, %c0_585, %c0_586], %927 {strides = array<i32>} : memref<1x4x16x16xf32, #tpu.memory_space<vmem>>, vector<1x1x16x16xf32>,
    %928 = vector.extract_strided_slice %923 {offsets = [0, 0, 32], sizes = [1, 16, 16], strides = [1, 1, 1]} : vector<1x16x128xf32> to vector<1x16x16xf32>
    %c0_587 = arith.constant 0 : index
    %c1_588 = arith.constant 1 : index
    %c0_589 = arith.constant 0 : index
    %c0_590 = arith.constant 0 : index
    %929 = vector.load %arg3[%c0_587, %c1_588, %c0_589, %c0_590] : memref<1x4x16x16xf32, #tpu.memory_space<vmem>>, vector<1x1x16x16xf32>
    %930 = vector.shape_cast %929 : vector<1x1x16x16xf32> to vector<1x16x16xf32>
    %931 = vector.shape_cast %928 : vector<1x16x16xf32> to vector<1x1x16x16xf32>
    tpu.vector_store %arg3[%c0_587, %c1_588, %c0_589, %c0_590], %931 {strides = array<i32>} : memref<1x4x16x16xf32, #tpu.memory_space<vmem>>, vector<1x1x16x16xf32>,
    %932 = vector.extract_strided_slice %923 {offsets = [0, 0, 64], sizes = [1, 16, 16], strides = [1, 1, 1]} : vector<1x16x128xf32> to vector<1x16x16xf32>
    %c0_591 = arith.constant 0 : index
    %c2_592 = arith.constant 2 : index
    %c0_593 = arith.constant 0 : index
    %c0_594 = arith.constant 0 : index
    %933 = vector.load %arg3[%c0_591, %c2_592, %c0_593, %c0_594] : memref<1x4x16x16xf32, #tpu.memory_space<vmem>>, vector<1x1x16x16xf32>
    %934 = vector.shape_cast %933 : vector<1x1x16x16xf32> to vector<1x16x16xf32>
    %935 = vector.shape_cast %932 : vector<1x16x16xf32> to vector<1x1x16x16xf32>
    tpu.vector_store %arg3[%c0_591, %c2_592, %c0_593, %c0_594], %935 {strides = array<i32>} : memref<1x4x16x16xf32, #tpu.memory_space<vmem>>, vector<1x1x16x16xf32>,
    %936 = vector.extract_strided_slice %923 {offsets = [0, 0, 96], sizes = [1, 16, 16], strides = [1, 1, 1]} : vector<1x16x128xf32> to vector<1x16x16xf32>
    %c0_595 = arith.constant 0 : index
    %c3_596 = arith.constant 3 : index
    %c0_597 = arith.constant 0 : index
    %c0_598 = arith.constant 0 : index
    %937 = vector.load %arg3[%c0_595, %c3_596, %c0_597, %c0_598] : memref<1x4x16x16xf32, #tpu.memory_space<vmem>>, vector<1x1x16x16xf32>
    %938 = vector.shape_cast %937 : vector<1x1x16x16xf32> to vector<1x16x16xf32>
    %939 = vector.shape_cast %936 : vector<1x16x16xf32> to vector<1x1x16x16xf32>
    tpu.vector_store %arg3[%c0_595, %c3_596, %c0_597, %c0_598], %939 {strides = array<i32>} : memref<1x4x16x16xf32, #tpu.memory_space<vmem>>, vector<1x1x16x16xf32>,
    return
  }
  func.func @transform_0(%arg0: i32) -> (i32, i32) {
    %c0_i32 = arith.constant 0 : i32
    %c0_i32_0 = arith.constant 0 : i32
    %c0_i32_1 = arith.constant 0 : i32
    return %c0_i32, %c0_i32_0 : i32, i32
  }
  func.func @transform_1(%arg0: i32) -> (i32, i32, i32) {
    %c0_i32 = arith.constant 0 : i32
    %c0_i32_0 = arith.constant 0 : i32
    %c0_i32_1 = arith.constant 0 : i32
    return %arg0, %c0_i32, %c0_i32_0 : i32, i32, i32
  }
  func.func @transform_2(%arg0: i32) -> (i32, i32, i32, i32) {
    %c0_i32 = arith.constant 0 : i32
    %c0_i32_0 = arith.constant 0 : i32
    %c0_i32_1 = arith.constant 0 : i32
    %c0_i32_2 = arith.constant 0 : i32
    return %arg0, %c0_i32, %c0_i32_0, %c0_i32_1 : i32, i32, i32, i32
  }
}

</mosaic_0001>

<llo_original>
// kernel: lcea_forward.1
$region0: #{lcea_forward.1}
  #allocation0 [shape = 'u32[]', space=smem, size = 0x4, offset = 0x4, fixed_abs, tag = 'smem constant byte address 0x4 - core index']
  #allocation1 [shape = 'u32[144,128]{1,0:T(1,128)}', space=vmem, size = 0x12000, scoped, tag = 'internal scratch']
  #allocation2 [shape = 'f32[1,24,256]{2,1,0:T(8,128)}', space=vmem, size = 0x6000, scoped, tag = 'scratch operand']
  #allocation3 [shape = 'f32[7,1,24,128]{3,2,1,0:T(8,128)}', space=vmem, size = 0x15000, scoped, tag = 'scratch operand']
  #allocation4 [shape = 'f32[1,18,256]{2,1,0:T(8,128)}', space=vmem, size = 0x6000, scoped, tag = 'scratch operand']
  #allocation5 [shape = 'f32[1,18,256]{2,1,0:T(8,128)}', space=vmem, size = 0x6000, scoped, tag = 'scratch operand']
  %s0 = inlined_call_operand.vmem [shape: f32[120,128], index: 0, kind: input, shape index: {}]
  %s1 = inlined_call_operand.vmem [shape: f32[2,24,128], index: 1, kind: input, shape index: {}]
  %s2 = inlined_call_operand.hbm [shape: f32[2,4,16,16], index: 2, kind: output, shape index: {}]
  %s3 = sld [smem:[#allocation0]]
  $region41: #{lcea_forward.1} parent=0
    _
  %s5 = ssub.s32 1, %s3
  %s6 = scalar_select 0, %s5, %s3
  $region1: #{lcea_forward.1} parent=0
    #allocation6 [shape = 'u8[65536]{0}', space=vmem, size = 0x10000, scoped, tag = 'output window, operand 0']
    #allocation7 [shape = 's32[2]{0}', space=sflag, size = 0x8, scoped, tag = 'scoped memory for lcea_forward.1']
    %7 = vsyncpa [#allocation7], 0
    %s8 = scalar_lea.sflag [#allocation7], 1
    %9 = vsyncpa %s8, 0
    loop: start=0, step=1, limit=4
    $region2: #{lcea_forward.1} parent=1 // loop_pre_header
      _
    $region3: #{lcea_forward.1} parent=1 // loop_header
      %s11 = sphi 0, %s15
      %p12 = scmp.ge.s32.totalorder %s11, 4
      %s19 = sphi 0, %s19
      %s21 = sphi 0, %s19
      %s22 = sphi 0, %s21
      %s36 = sphi 0, %s22
      %s42 = sphi 0, %s44
      %s45 = sphi 0, %s42
      %s46 = sphi 0, %s45
      %s62 = sphi 0, %s46
      %s68 = sphi 0, %s70
      %s71 = sphi 0, %s68
      %s72 = sphi 0, %s71
      %s88 = sphi 0, %s72
    $region4: #{lcea_forward.1} parent=1 // loop_header_branch
      %14 = sbr.rel (%p12) target = $region8
    $region5: #{lcea_forward.1} parent=1 // loop_body
      %s16 = ssub.s32 %s11, 1
      %s17 = ssub.s32 %s11, 2
      %s18 = sadd.s32 %s11, 1
      %s20 = sadd.s32 %s19, 1
      %p23 = scmp.eq.s32.totalorder %s11, 1
      %p24 = scmp.ne.s32.totalorder %s19, %s21
      %p25 = scmp.eq.s32.totalorder %s11, 0
      %p26 = por %p24, %p25
      %p27 = scmp.ne.s32.totalorder %s19, %s21
      %p28 = scmp.eq.s32.totalorder %s16, 1
      %p29 = por %p27, %p28
      %p30 = scmp.ne.s32.totalorder %s21, %s22
      %p31 = scmp.eq.s32.totalorder %s16, 0
      %p32 = por %p30, %p31
      %p33 = scmp.ne.s32.totalorder %s21, %s22
      %p34 = scmp.eq.s32.totalorder %s17, 1
      %p35 = por %p33, %p34
      %p37 = scmp.ne.s32.totalorder %s22, %s36
      %p38 = scmp.eq.s32.totalorder %s17, 0
      %p39 = por %p37, %p38
      %s40 = ssub.s32 %s11, %s18
      %p41 = scmp.eq.s32.totalorder %s40, 0
      %s43 = sadd.s32 %s42, 1
      %s44 = scalar_select %p41, %s42, %s43
      %p47 = pneg %p41
      %p48 = scmp.eq.s32.totalorder %s11, 1
      %p49 = por %p47, %p48
      %p50 = scmp.ne.s32.totalorder %s42, %s45
      %p51 = scmp.eq.s32.totalorder %s11, 0
      %p52 = por %p50, %p51
      %p53 = scmp.ne.s32.totalorder %s42, %s45
      %p54 = scmp.eq.s32.totalorder %s16, 1
      %p55 = por %p53, %p54
      %p56 = scmp.ne.s32.totalorder %s45, %s46
      %p57 = scmp.eq.s32.totalorder %s16, 0
      %p58 = por %p56, %p57
      %p59 = scmp.ne.s32.totalorder %s45, %s46
      %p60 = scmp.eq.s32.totalorder %s17, 1
      %p61 = por %p59, %p60
      %p63 = scmp.ne.s32.totalorder %s46, %s62
      %p64 = scmp.eq.s32.totalorder %s17, 0
      %p65 = por %p63, %p64
      %s66 = ssub.s32 %s11, %s18
      %p67 = scmp.eq.s32.totalorder %s66, 0
      %s69 = sadd.s32 %s68, 1
      %s70 = scalar_select %p67, %s68, %s69
      %p73 = pneg %p67
      %p74 = scmp.eq.s32.totalorder %s11, 1
      %p75 = por %p73, %p74
      %p76 = scmp.ne.s32.totalorder %s68, %s71
      %p77 = scmp.eq.s32.totalorder %s11, 0
      %p78 = por %p76, %p77
      %p79 = scmp.ne.s32.totalorder %s68, %s71
      %p80 = scmp.eq.s32.totalorder %s16, 1
      %p81 = por %p79, %p80
      %p82 = scmp.ne.s32.totalorder %s71, %s72
      %p83 = scmp.eq.s32.totalorder %s16, 0
      %p84 = por %p82, %p83
      %p85 = scmp.ne.s32.totalorder %s71, %s72
      %p86 = scmp.eq.s32.totalorder %s17, 1
      %p87 = por %p85, %p86
      %p89 = scmp.ne.s32.totalorder %s72, %s88
      %p90 = scmp.eq.s32.totalorder %s17, 0
      %p91 = por %p89, %p90
      %p92 = scmp.le.s32.totalorder 1, %s11
      %p93 = scmp.lt.s32.totalorder %s11, 3
      %p94 = pnand %p92, %p93
      %p95 = pneg %p94
      // Predicated region
      $region9: #{lcea_forward.1} parent=5 // pred_check
        _
      $region10: #{lcea_forward.1} parent=5 // pred_check_branch
        %97 = sbr.rel (%p94) target = $region12
      $region11: #{lcea_forward.1} parent=5 // pred_region
        %s98 = ssub.s32 %s11, 1
        // Predicated region
        $region13: #{lcea_forward.1} parent=11 // pred_check
          %p99 = pneg %p32
        $region14: #{lcea_forward.1} parent=11 // pred_check_branch
          %101 = sbr.rel (%p99) target = $region16
        $region15: #{lcea_forward.1} parent=11 // pred_region
          _
        $region16: #{lcea_forward.1} parent=11 // pred_fallthru
          _
      $region12: #{lcea_forward.1} parent=5 // pred_fallthru
        _
      %p102 = scmp.lt.s32.totalorder %s11, 2
      // Predicated region
      $region17: #{lcea_forward.1} parent=5 // pred_check
        %p103 = pneg %p102
      $region18: #{lcea_forward.1} parent=5 // pred_check_branch
        %105 = sbr.rel (%p103) target = $region20
      $region19: #{lcea_forward.1} parent=5 // pred_region
        // Predicated region
        $region21: #{lcea_forward.1} parent=19 // pred_check
          %p106 = pneg %p52
        $region22: #{lcea_forward.1} parent=19 // pred_check_branch
          %108 = sbr.rel (%p106) target = $region24
        $region23: #{lcea_forward.1} parent=19 // pred_region
          %p109 = scmp.lt.s32.totalorder %s11, 1
          %s110 = scalar_select %p109, %s11, 1
          %s111 = smul.addr %s110, 3
          %s112 = smul.addr %s111, 8
          %s113 = scalar_lea.vmem %s1, %s112
        $region24: #{lcea_forward.1} parent=19 // pred_fallthru
          _
      $region20: #{lcea_forward.1} parent=5 // pred_fallthru
        _
      %p114 = scmp.le.s32.totalorder 1, %s11
      %p115 = scmp.lt.s32.totalorder %s11, 3
      %p116 = pnand %p114, %p115
      %p117 = pneg %p116
      // Predicated region
      $region25: #{lcea_forward.1} parent=5 // pred_check
        _
      $region26: #{lcea_forward.1} parent=5 // pred_check_branch
        %119 = sbr.rel (%p116) target = $region28
      $region27: #{lcea_forward.1} parent=5 // pred_region
        %s120 = ssub.s32 %s11, 1
        %p121 = pneg %p32
        %p122 = pneg %p29
        %p123 = scmp.lt.s32.totalorder %s16, 1
        %s124 = scalar_select %p123, %s16, 1
        %s125 = smul.addr %s124, 3
        %s126 = smul.addr %s125, 8
        %s127 = scalar_lea.vmem %s1, %s126
        %p128 = pneg %p58
        %p129 = pneg %p55
        %p130 = pneg %p84
        %p131 = pneg %p81
        %s132 = sand.u32 %s71, 1
        %s133 = scalar_lea.sflag [#allocation7], %s132
        %s134 = sand.u32 %s71, 1
        %s135 = smul.addr %s134, 64
        %s136 = scalar_lea.vmem [#allocation6], %s135
        %p137 = scmp.lt.s32.totalorder %s16, 1
        %s138 = scalar_select %p137, %s16, 1
        %s139 = smul.addr %s138, 3
        %s140 = smul.addr %s139, 8
        %s141 = scalar_lea.vmem %s1, %s140
        %v142 = vld [vmem:[%s141] sm:$0xff]
        %v143 = vld [vmem:[%s141 + $0x8] sm:$0xff]
        %v144 = vld [vmem:[%s141 + $0x10] sm:$0xff]
        %145 = vst [vmem:[#allocation2] sm:$0xff] %v142
        %146 = vst [vmem:[#allocation2 + $0x10] sm:$0xff] %v143
        %147 = vst [vmem:[#allocation2 + $0x20] sm:$0xff] %v144
        %148 = vst [vmem:[#allocation2 + $0x8] sm:$0xff] %v142
        %149 = vst [vmem:[#allocation2 + $0x18] sm:$0xff] %v143
        %150 = vst [vmem:[#allocation2 + $0x28] sm:$0xff] %v144
        %151 = vst [vmem:[#allocation3] sm:$0xff] %v142
        %152 = vst [vmem:[#allocation3 + $0x8] sm:$0xff] %v143
        %153 = vst [vmem:[#allocation3 + $0x10] sm:$0xff] %v144
        %v154 = vld [vmem:[#allocation2] sm:$0xff]
        %v155 = vld [vmem:[#allocation2 + $0x8] sm:$0xff]
        %v156 = vld [vmem:[#allocation2 + $0x10] sm:$0xff]
        %v157 = vld [vmem:[#allocation2 + $0x18] sm:$0xff]
        %v158 = vld [vmem:[#allocation2 + $0x20] sm:$0xff]
        %v159 = vld [vmem:[#allocation2 + $0x28] sm:$0xff]
        %166 = vrot.lane.b32.xlu0 %v154, 127
        %v167 = vpop.permute.xlu0 %166
        %168 = vrot.lane.b32.xlu0 %v155, 127
        %v169 = vpop.permute.xlu0 %168
        %170 = vrot.lane.b32.xlu0 %v156, 127
        %v171 = vpop.permute.xlu0 %170
        %172 = vrot.lane.b32.xlu0 %v157, 127
        %v173 = vpop.permute.xlu0 %172
        %174 = vrot.lane.b32.xlu0 %v158, 127
        %v175 = vpop.permute.xlu0 %174
        %176 = vrot.lane.b32.xlu0 %v159, 127
        %v177 = vpop.permute.xlu0 %176
        %vm178 = vcmask 1039360
        %v179 = vsel %vm178, %v167, %v169
        %v180 = vsel %vm178, %v171, %v173
        %v181 = vsel %vm178, %v175, %v177
        %s185 = scalar_lea.vmem [#allocation3], 24
        %186 = vst [vmem:[%s185] sm:$0xff] %v179
        %187 = vst [vmem:[%s185 + $0x8] sm:$0xff] %v180
        %188 = vst [vmem:[%s185 + $0x10] sm:$0xff] %v181
        %v189 = vld [vmem:[#allocation2] sm:$0xff]
        %v190 = vld [vmem:[#allocation2 + $0x8] sm:$0xff]
        %v191 = vld [vmem:[#allocation2 + $0x10] sm:$0xff]
        %v192 = vld [vmem:[#allocation2 + $0x18] sm:$0xff]
        %v193 = vld [vmem:[#allocation2 + $0x20] sm:$0xff]
        %v194 = vld [vmem:[#allocation2 + $0x28] sm:$0xff]
        %201 = vrot.lane.b32.xlu0 %v189, 126
        %v202 = vpop.permute.xlu0 %201
        %203 = vrot.lane.b32.xlu0 %v190, 126
        %v204 = vpop.permute.xlu0 %203
        %205 = vrot.lane.b32.xlu0 %v191, 126
        %v206 = vpop.permute.xlu0 %205
        %207 = vrot.lane.b32.xlu0 %v192, 126
        %v208 = vpop.permute.xlu0 %207
        %209 = vrot.lane.b32.xlu0 %v193, 126
        %v210 = vpop.permute.xlu0 %209
        %211 = vrot.lane.b32.xlu0 %v194, 126
        %v212 = vpop.permute.xlu0 %211
        %vm213 = vcmask 1031168
        %v214 = vsel %vm213, %v202, %v204
        %v215 = vsel %vm213, %v206, %v208
        %v216 = vsel %vm213, %v210, %v212
        %s220 = scalar_lea.vmem [#allocation3], 48
        %221 = vst [vmem:[%s220] sm:$0xff] %v214
        %222 = vst [vmem:[%s220 + $0x8] sm:$0xff] %v215
        %223 = vst [vmem:[%s220 + $0x10] sm:$0xff] %v216
        %v224 = vld [vmem:[#allocation2] sm:$0xff]
        %v225 = vld [vmem:[#allocation2 + $0x8] sm:$0xff]
        %v226 = vld [vmem:[#allocation2 + $0x10] sm:$0xff]
        %v227 = vld [vmem:[#allocation2 + $0x18] sm:$0xff]
        %v228 = vld [vmem:[#allocation2 + $0x20] sm:$0xff]
        %v229 = vld [vmem:[#allocation2 + $0x28] sm:$0xff]
        %236 = vrot.lane.b32.xlu0 %v224, 125
        %v237 = vpop.permute.xlu0 %236
        %238 = vrot.lane.b32.xlu0 %v225, 125
        %v239 = vpop.permute.xlu0 %238
        %240 = vrot.lane.b32.xlu0 %v226, 125
        %v241 = vpop.permute.xlu0 %240
        %242 = vrot.lane.b32.xlu0 %v227, 125
        %v243 = vpop.permute.xlu0 %242
        %244 = vrot.lane.b32.xlu0 %v228, 125
        %v245 = vpop.permute.xlu0 %244
        %246 = vrot.lane.b32.xlu0 %v229, 125
        %v247 = vpop.permute.xlu0 %246
        %vm248 = vcmask 1022976
        %v249 = vsel %vm248, %v237, %v239
        %v250 = vsel %vm248, %v241, %v243
        %v251 = vsel %vm248, %v245, %v247
        %s255 = scalar_lea.vmem [#allocation3], 72
        %256 = vst [vmem:[%s255] sm:$0xff] %v249
        %257 = vst [vmem:[%s255 + $0x8] sm:$0xff] %v250
        %258 = vst [vmem:[%s255 + $0x10] sm:$0xff] %v251
        %v259 = vld [vmem:[#allocation2] sm:$0xff]
        %v260 = vld [vmem:[#allocation2 + $0x8] sm:$0xff]
        %v261 = vld [vmem:[#allocation2 + $0x10] sm:$0xff]
        %v262 = vld [vmem:[#allocation2 + $0x18] sm:$0xff]
        %v263 = vld [vmem:[#allocation2 + $0x20] sm:$0xff]
        %v264 = vld [vmem:[#allocation2 + $0x28] sm:$0xff]
        %271 = vrot.lane.b32.xlu0 %v259, 124
        %v272 = vpop.permute.xlu0 %271
        %273 = vrot.lane.b32.xlu0 %v260, 124
        %v274 = vpop.permute.xlu0 %273
        %275 = vrot.lane.b32.xlu0 %v261, 124
        %v276 = vpop.permute.xlu0 %275
        %277 = vrot.lane.b32.xlu0 %v262, 124
        %v278 = vpop.permute.xlu0 %277
        %279 = vrot.lane.b32.xlu0 %v263, 124
        %v280 = vpop.permute.xlu0 %279
        %281 = vrot.lane.b32.xlu0 %v264, 124
        %v282 = vpop.permute.xlu0 %281
        %vm283 = vcmask 1014784
        %v284 = vsel %vm283, %v272, %v274
        %v285 = vsel %vm283, %v276, %v278
        %v286 = vsel %vm283, %v280, %v282
        %s290 = scalar_lea.vmem [#allocation3], 96
        %291 = vst [vmem:[%s290] sm:$0xff] %v284
        %292 = vst [vmem:[%s290 + $0x8] sm:$0xff] %v285
        %293 = vst [vmem:[%s290 + $0x10] sm:$0xff] %v286
        %v294 = vld [vmem:[#allocation2] sm:$0xff]
        %v295 = vld [vmem:[#allocation2 + $0x8] sm:$0xff]
        %v296 = vld [vmem:[#allocation2 + $0x10] sm:$0xff]
        %v297 = vld [vmem:[#allocation2 + $0x18] sm:$0xff]
        %v298 = vld [vmem:[#allocation2 + $0x20] sm:$0xff]
        %v299 = vld [vmem:[#allocation2 + $0x28] sm:$0xff]
        %306 = vrot.lane.b32.xlu0 %v294, 123
        %v307 = vpop.permute.xlu0 %306
        %308 = vrot.lane.b32.xlu0 %v295, 123
        %v309 = vpop.permute.xlu0 %308
        %310 = vrot.lane.b32.xlu0 %v296, 123
        %v311 = vpop.permute.xlu0 %310
        %312 = vrot.lane.b32.xlu0 %v297, 123
        %v313 = vpop.permute.xlu0 %312
        %314 = vrot.lane.b32.xlu0 %v298, 123
        %v315 = vpop.permute.xlu0 %314
        %316 = vrot.lane.b32.xlu0 %v299, 123
        %v317 = vpop.permute.xlu0 %316
        %vm318 = vcmask 1006592
        %v319 = vsel %vm318, %v307, %v309
        %v320 = vsel %vm318, %v311, %v313
        %v321 = vsel %vm318, %v315, %v317
        %s325 = scalar_lea.vmem [#allocation3], 120
        %326 = vst [vmem:[%s325] sm:$0xff] %v319
        %327 = vst [vmem:[%s325 + $0x8] sm:$0xff] %v320
        %328 = vst [vmem:[%s325 + $0x10] sm:$0xff] %v321
        %v329 = vld [vmem:[#allocation2] sm:$0xff]
        %v330 = vld [vmem:[#allocation2 + $0x8] sm:$0xff]
        %v331 = vld [vmem:[#allocation2 + $0x10] sm:$0xff]
        %v332 = vld [vmem:[#allocation2 + $0x18] sm:$0xff]
        %v333 = vld [vmem:[#allocation2 + $0x20] sm:$0xff]
        %v334 = vld [vmem:[#allocation2 + $0x28] sm:$0xff]
        %341 = vrot.lane.b32.xlu0 %v329, 122
        %v342 = vpop.permute.xlu0 %341
        %343 = vrot.lane.b32.xlu0 %v330, 122
        %v344 = vpop.permute.xlu0 %343
        %345 = vrot.lane.b32.xlu0 %v331, 122
        %v346 = vpop.permute.xlu0 %345
        %347 = vrot.lane.b32.xlu0 %v332, 122
        %v348 = vpop.permute.xlu0 %347
        %349 = vrot.lane.b32.xlu0 %v333, 122
        %v350 = vpop.permute.xlu0 %349
        %351 = vrot.lane.b32.xlu0 %v334, 122
        %v352 = vpop.permute.xlu0 %351
        %vm353 = vcmask 998400
        %v354 = vsel %vm353, %v342, %v344
        %v355 = vsel %vm353, %v346, %v348
        %v356 = vsel %vm353, %v350, %v352
        %s360 = scalar_lea.vmem [#allocation3], 144
        %361 = vst [vmem:[%s360] sm:$0xff] %v354
        %362 = vst [vmem:[%s360 + $0x8] sm:$0xff] %v355
        %363 = vst [vmem:[%s360 + $0x10] sm:$0xff] %v356
        %v364 = vld [vmem:[%s0 + $0x32] sm:$0x1]
        %v365 = vld [vmem:[%s255 + $0x3] sm:$0xff]
        %v366 = vld [vmem:[%s255 + $0xb] sm:$0xff]
        %v367 = vlaneseq
        %v368 = vshrl.u32 %v367, 7
        %v369 = vsub.s32 0, %v368
        %v370 = vrot.slane %v364, %v369
        %v371 = vmul.f32 %v370, %v365
        %v372 = vmul.f32 %v370, %v366
        %v373 = vld [vmem:[%s0 + $0x33] sm:$0x1]
        %v374 = vld [vmem:[%s290 + $0x3] sm:$0xff]
        %v375 = vld [vmem:[%s290 + $0xb] sm:$0xff]
        %v376 = vlaneseq
        %v377 = vshrl.u32 %v376, 7
        %v378 = vsub.s32 0, %v377
        %v379 = vrot.slane %v373, %v378
        %v380 = vmul.f32 %v379, %v374
        %v381 = vmul.f32 %v379, %v375
        %v382 = vld [vmem:[%s0 + $0x34] sm:$0x1]
        %v383 = vld [vmem:[%s325 + $0x3] sm:$0xff]
        %v384 = vld [vmem:[%s325 + $0xb] sm:$0xff]
        %v385 = vlaneseq
        %v386 = vshrl.u32 %v385, 7
        %v387 = vsub.s32 0, %v386
        %v388 = vrot.slane %v382, %v387
        %v389 = vmul.f32 %v388, %v383
        %v390 = vmul.f32 %v388, %v384
        %v391 = vadd.f32 %v371, %v389
        %v392 = vadd.f32 %v372, %v390
        %v393 = vld [vmem:[%s0 + $0x35] sm:$0x1]
        %v394 = vld [vmem:[%s255 + $0x4] sm:$0xff]
        %v395 = vld [vmem:[%s255 + $0xc] sm:$0xff]
        %v396 = vlaneseq
        %v397 = vshrl.u32 %v396, 7
        %v398 = vsub.s32 0, %v397
        %v399 = vrot.slane %v393, %v398
        %v400 = vmul.f32 %v399, %v394
        %v401 = vmul.f32 %v399, %v395
        %v402 = vadd.f32 %v380, %v400
        %v403 = vadd.f32 %v381, %v401
        %v404 = vld [vmem:[%s0 + $0x36] sm:$0x1]
        %v405 = vld [vmem:[%s290 + $0x4] sm:$0xff]
        %v406 = vld [vmem:[%s290 + $0xc] sm:$0xff]
        %v407 = vlaneseq
        %v408 = vshrl.u32 %v407, 7
        %v409 = vsub.s32 0, %v408
        %v410 = vrot.slane %v404, %v409
        %v411 = vmul.f32 %v410, %v405
        %v412 = vmul.f32 %v410, %v406
        %v413 = vadd.f32 %v391, %v411
        %v414 = vadd.f32 %v392, %v412
        %v415 = vld [vmem:[%s0 + $0x37] sm:$0x1]
        %v416 = vld [vmem:[%s325 + $0x4] sm:$0xff]
        %v417 = vld [vmem:[%s325 + $0xc] sm:$0xff]
        %v418 = vlaneseq
        %v419 = vshrl.u32 %v418, 7
        %v420 = vsub.s32 0, %v419
        %v421 = vrot.slane %v415, %v420
        %v422 = vmul.f32 %v421, %v416
        %v423 = vmul.f32 %v421, %v417
        %v424 = vadd.f32 %v402, %v422
        %v425 = vadd.f32 %v403, %v423
        %v426 = vld [vmem:[%s0 + $0x38] sm:$0x1]
        %v427 = vld [vmem:[%s255 + $0x5] sm:$0xff]
        %v428 = vld [vmem:[%s255 + $0xd] sm:$0xff]
        %v429 = vlaneseq
        %v430 = vshrl.u32 %v429, 7
        %v431 = vsub.s32 0, %v430
        %v432 = vrot.slane %v426, %v431
        %v433 = vmul.f32 %v432, %v427
        %v434 = vmul.f32 %v432, %v428
        %v435 = vadd.f32 %v413, %v433
        %v436 = vadd.f32 %v414, %v434
        %v437 = vld [vmem:[%s0 + $0x39] sm:$0x1]
        %v438 = vld [vmem:[%s290 + $0x5] sm:$0xff]
        %v439 = vld [vmem:[%s290 + $0xd] sm:$0xff]
        %v440 = vlaneseq
        %v441 = vshrl.u32 %v440, 7
        %v442 = vsub.s32 0, %v441
        %v443 = vrot.slane %v437, %v442
        %v444 = vmul.f32 %v443, %v438
        %v445 = vmul.f32 %v443, %v439
        %v446 = vadd.f32 %v424, %v444
        %v447 = vadd.f32 %v425, %v445
        %v448 = vld [vmem:[%s0 + $0x3a] sm:$0x1]
        %v449 = vld [vmem:[%s325 + $0x5] sm:$0xff]
        %v450 = vld [vmem:[%s325 + $0xd] sm:$0xff]
        %v451 = vlaneseq
        %v452 = vshrl.u32 %v451, 7
        %v453 = vsub.s32 0, %v452
        %v454 = vrot.slane %v448, %v453
        %v455 = vmul.f32 %v454, %v449
        %v456 = vmul.f32 %v454, %v450
        %v457 = vadd.f32 %v435, %v455
        %v458 = vadd.f32 %v436, %v456
        %v459 = vadd.f32 %v457, %v446
        %v460 = vadd.f32 %v458, %v447
        %v461 = vld [vmem:[%s0 + $0x3b] sm:$0x1]
        %v462 = vlaneseq
        %v463 = vshrl.u32 %v462, 7
        %v464 = vsub.s32 0, %v463
        %v465 = vrot.slane %v461, %v464
        %v466 = vadd.f32 %v459, %v465
        %v467 = vadd.f32 %v460, %v465
        %468 = vst [vmem:[#allocation4] sm:$0xff] %v466
        %469 = vst [vmem:[#allocation4 + $0x10] sm:$0xff] %v467
        %470 = vst [vmem:[#allocation4 + $0x8] sm:$0xff] %v466
        %471 = vst [vmem:[#allocation4 + $0x18] sm:$0xff] %v467
        %v472 = vld [vmem:[%s0 + $0x3c] sm:$0x1]
        %v473 = vlaneseq
        %v474 = vshrl.u32 %v473, 7
        %v475 = vsub.s32 0, %v474
        %v476 = vrot.slane %v472, %v475
        %v477 = vmul.f32 %v476, %v466
        %v478 = vmul.f32 %v476, %v467
        %v479 = vld [vmem:[%s0 + $0x3d] sm:$0x1]
        %v480 = vld [vmem:[#allocation4] sm:$0xff]
        %v481 = vld [vmem:[#allocation4 + $0x8] sm:$0xff]
        %v482 = vld [vmem:[#allocation4 + $0x10] sm:$0xff]
        %v483 = vld [vmem:[#allocation4 + $0x18] sm:$0xff]
        %v484 = vlaneseq
        %v485 = vshrl.u32 %v484, 7
        %v486 = vsub.s32 0, %v485
        %v487 = vrot.slane %v479, %v486
        %492 = vrot.lane.b32.xlu0 %v480, 96
        %v493 = vpop.permute.xlu0 %492
        %494 = vrot.lane.b32.xlu0 %v481, 96
        %v495 = vpop.permute.xlu0 %494
        %496 = vrot.lane.b32.xlu0 %v482, 96
        %v497 = vpop.permute.xlu0 %496
        %498 = vrot.lane.b32.xlu0 %v483, 96
        %v499 = vpop.permute.xlu0 %498
        %vm500 = vcmask 785408
        %v501 = vsel %vm500, %v493, %v495
        %v502 = vsel %vm500, %v497, %v499
        %v505 = vmul.f32 %v487, %v501
        %v506 = vmul.f32 %v487, %v502
        %v507 = vadd.f32 %v477, %v505
        %v508 = vadd.f32 %v478, %v506
        %v509 = vld [vmem:[%s0 + $0x3e] sm:$0x1]
        %v510 = vlaneseq
        %v511 = vshrl.u32 %v510, 7
        %v512 = vsub.s32 0, %v511
        %v513 = vrot.slane %v509, %v512
        %514 = vrot.lane.b32.xlu0 %v480, 64
        %v515 = vpop.permute.xlu0 %514
        %516 = vrot.lane.b32.xlu0 %v481, 64
        %v517 = vpop.permute.xlu0 %516
        %518 = vrot.lane.b32.xlu0 %v482, 64
        %v519 = vpop.permute.xlu0 %518
        %520 = vrot.lane.b32.xlu0 %v483, 64
        %v521 = vpop.permute.xlu0 %520
        %vm522 = vcmask 523264
        %v523 = vsel %vm522, %v515, %v517
        %v524 = vsel %vm522, %v519, %v521
        %v527 = vmul.f32 %v513, %v523
        %v528 = vmul.f32 %v513, %v524
        %v529 = vadd.f32 %v507, %v527
        %v530 = vadd.f32 %v508, %v528
        %v531 = vld [vmem:[%s0 + $0x3f] sm:$0x1]
        %v532 = vlaneseq
        %v533 = vshrl.u32 %v532, 7
        %v534 = vsub.s32 0, %v533
        %v535 = vrot.slane %v531, %v534
        %536 = vrot.lane.b32.xlu0 %v480, 32
        %v537 = vpop.permute.xlu0 %536
        %538 = vrot.lane.b32.xlu0 %v481, 32
        %v539 = vpop.permute.xlu0 %538
        %540 = vrot.lane.b32.xlu0 %v482, 32
        %v541 = vpop.permute.xlu0 %540
        %542 = vrot.lane.b32.xlu0 %v483, 32
        %v543 = vpop.permute.xlu0 %542
        %vm544 = vcmask 261120
        %v545 = vsel %vm544, %v537, %v539
        %v546 = vsel %vm544, %v541, %v543
        %v549 = vmul.f32 %v535, %v545
        %v550 = vmul.f32 %v535, %v546
        %v551 = vadd.f32 %v529, %v549
        %v552 = vadd.f32 %v530, %v550
        %v553 = vld [vmem:[%s0 + $0x40] sm:$0x1]
        %v554 = vlaneseq
        %v555 = vshrl.u32 %v554, 7
        %v556 = vsub.s32 0, %v555
        %v557 = vrot.slane %v553, %v556
        %v558 = vadd.f32 %v551, %v557
        %v559 = vadd.f32 %v552, %v557
        %v560 = vxor.u32 %v558, 2147483648
        %v561 = vxor.u32 %v559, 2147483648
        %v562 = vmul.f32 %v560, 1.442695
        %v563 = vpow.pop %v562
        %v564 = vmul.f32 %v561, 1.442695
        %v565 = vpow.pop %v564
        %v566 = vadd.f32 %v563, 1.0
        %v567 = vadd.f32 %v565, 1.0
        %v568 = vrcp.pop %v566
        %v569 = vmul.f32 1.0, %v568
        %v570 = vrcp.pop %v567
        %v571 = vmul.f32 1.0, %v570
        %v572 = vld [vmem:[%s0] sm:$0x1]
        %v573 = vld [vmem:[#allocation3] sm:$0xff]
        %v574 = vld [vmem:[#allocation3 + $0x8] sm:$0xff]
        %v575 = vld [vmem:[#allocation3 + $0x10] sm:$0x3]
        %v576 = vlaneseq
        %v577 = vshrl.u32 %v576, 7
        %v578 = vsub.s32 0, %v577
        %v579 = vrot.slane %v572, %v578
        %v580 = vmul.f32 %v579, %v573
        %v581 = vmul.f32 %v579, %v574
        %v582 = vmul.f32 %v579, %v575
        %v583 = vld [vmem:[%s0 + $0x1] sm:$0x1]
        %v584 = vld [vmem:[%s185] sm:$0xff]
        %v585 = vld [vmem:[%s185 + $0x8] sm:$0xff]
        %v586 = vld [vmem:[%s185 + $0x10] sm:$0x3]
        %v587 = vlaneseq
        %v588 = vshrl.u32 %v587, 7
        %v589 = vsub.s32 0, %v588
        %v590 = vrot.slane %v583, %v589
        %v591 = vmul.f32 %v590, %v584
        %v592 = vmul.f32 %v590, %v585
        %v593 = vmul.f32 %v590, %v586
        %v594 = vld [vmem:[%s0 + $0x2] sm:$0x1]
        %v595 = vld [vmem:[%s220] sm:$0xff]
        %v596 = vld [vmem:[%s220 + $0x8] sm:$0xff]
        %v597 = vld [vmem:[%s220 + $0x10] sm:$0x3]
        %v598 = vlaneseq
        %v599 = vshrl.u32 %v598, 7
        %v600 = vsub.s32 0, %v599
        %v601 = vrot.slane %v594, %v600
        %v602 = vmul.f32 %v601, %v595
        %v603 = vmul.f32 %v601, %v596
        %v604 = vmul.f32 %v601, %v597
        %v605 = vadd.f32 %v580, %v602
        %v606 = vadd.f32 %v581, %v603
        %v607 = vadd.f32 %v582, %v604
        %v608 = vld [vmem:[%s0 + $0x3] sm:$0x1]
        %v609 = vld [vmem:[%s255] sm:$0xff]
        %v610 = vld [vmem:[%s255 + $0x8] sm:$0xff]
        %v611 = vld [vmem:[%s255 + $0x10] sm:$0x3]
        %v612 = vlaneseq
        %v613 = vshrl.u32 %v612, 7
        %v614 = vsub.s32 0, %v613
        %v615 = vrot.slane %v608, %v614
        %v616 = vmul.f32 %v615, %v609
        %v617 = vmul.f32 %v615, %v610
        %v618 = vmul.f32 %v615, %v611
        %v619 = vadd.f32 %v591, %v616
        %v620 = vadd.f32 %v592, %v617
        %v621 = vadd.f32 %v593, %v618
        %v622 = vld [vmem:[%s0 + $0x4] sm:$0x1]
        %v623 = vld [vmem:[%s290] sm:$0xff]
        %v624 = vld [vmem:[%s290 + $0x8] sm:$0xff]
        %v625 = vld [vmem:[%s290 + $0x10] sm:$0x3]
        %v626 = vlaneseq
        %v627 = vshrl.u32 %v626, 7
        %v628 = vsub.s32 0, %v627
        %v629 = vrot.slane %v622, %v628
        %v630 = vmul.f32 %v629, %v623
        %v631 = vmul.f32 %v629, %v624
        %v632 = vmul.f32 %v629, %v625
        %v633 = vadd.f32 %v605, %v630
        %v634 = vadd.f32 %v606, %v631
        %v635 = vadd.f32 %v607, %v632
        %v636 = vld [vmem:[%s0 + $0x5] sm:$0x1]
        %v637 = vld [vmem:[%s325] sm:$0xff]
        %v638 = vld [vmem:[%s325 + $0x8] sm:$0xff]
        %v639 = vld [vmem:[%s325 + $0x10] sm:$0x3]
        %v640 = vlaneseq
        %v641 = vshrl.u32 %v640, 7
        %v642 = vsub.s32 0, %v641
        %v643 = vrot.slane %v636, %v642
        %v644 = vmul.f32 %v643, %v637
        %v645 = vmul.f32 %v643, %v638
        %v646 = vmul.f32 %v643, %v639
        %v647 = vadd.f32 %v619, %v644
        %v648 = vadd.f32 %v620, %v645
        %v649 = vadd.f32 %v621, %v646
        %v650 = vld [vmem:[%s0 + $0x6] sm:$0x1]
        %v651 = vld [vmem:[%s360] sm:$0xff]
        %v652 = vld [vmem:[%s360 + $0x8] sm:$0xff]
        %v653 = vld [vmem:[%s360 + $0x10] sm:$0x3]
        %v654 = vlaneseq
        %v655 = vshrl.u32 %v654, 7
        %v656 = vsub.s32 0, %v655
        %v657 = vrot.slane %v650, %v656
        %v658 = vmul.f32 %v657, %v651
        %v659 = vmul.f32 %v657, %v652
        %v660 = vmul.f32 %v657, %v653
        %v661 = vadd.f32 %v633, %v658
        %v662 = vadd.f32 %v634, %v659
        %v663 = vadd.f32 %v635, %v660
        %v664 = vld [vmem:[%s0 + $0x7] sm:$0x1]
        %v665 = vld [vmem:[#allocation3 + $0x1] sm:$0xff]
        %v666 = vld [vmem:[#allocation3 + $0x9] sm:$0xff]
        %v667 = vld [vmem:[#allocation3 + $0x11] sm:$0x3]
        %v668 = vlaneseq
        %v669 = vshrl.u32 %v668, 7
        %v670 = vsub.s32 0, %v669
        %v671 = vrot.slane %v664, %v670
        %v672 = vmul.f32 %v671, %v665
        %v673 = vmul.f32 %v671, %v666
        %v674 = vmul.f32 %v671, %v667
        %v675 = vadd.f32 %v647, %v672
        %v676 = vadd.f32 %v648, %v673
        %v677 = vadd.f32 %v649, %v674
        %v678 = vld [vmem:[%s0 + $0x8] sm:$0x1]
        %v679 = vld [vmem:[%s185 + $0x1] sm:$0xff]
        %v680 = vld [vmem:[%s185 + $0x9] sm:$0xff]
        %v681 = vld [vmem:[%s185 + $0x11] sm:$0x3]
        %v682 = vlaneseq
        %v683 = vshrl.u32 %v682, 7
        %v684 = vsub.s32 0, %v683
        %v685 = vrot.slane %v678, %v684
        %v686 = vmul.f32 %v685, %v679
        %v687 = vmul.f32 %v685, %v680
        %v688 = vmul.f32 %v685, %v681
        %v689 = vadd.f32 %v661, %v686
        %v690 = vadd.f32 %v662, %v687
        %v691 = vadd.f32 %v663, %v688
        %v692 = vld [vmem:[%s0 + $0x9] sm:$0x1]
        %v693 = vld [vmem:[%s220 + $0x1] sm:$0xff]
        %v694 = vld [vmem:[%s220 + $0x9] sm:$0xff]
        %v695 = vld [vmem:[%s220 + $0x11] sm:$0x3]
        %v696 = vlaneseq
        %v697 = vshrl.u32 %v696, 7
        %v698 = vsub.s32 0, %v697
        %v699 = vrot.slane %v692, %v698
        %v700 = vmul.f32 %v699, %v693
        %v701 = vmul.f32 %v699, %v694
        %v702 = vmul.f32 %v699, %v695
        %v703 = vadd.f32 %v675, %v700
        %v704 = vadd.f32 %v676, %v701
        %v705 = vadd.f32 %v677, %v702
        %v706 = vld [vmem:[%s0 + $0xa] sm:$0x1]
        %v707 = vld [vmem:[%s255 + $0x1] sm:$0xff]
        %v708 = vld [vmem:[%s255 + $0x9] sm:$0xff]
        %v709 = vld [vmem:[%s255 + $0x11] sm:$0x3]
        %v710 = vlaneseq
        %v711 = vshrl.u32 %v710, 7
        %v712 = vsub.s32 0, %v711
        %v713 = vrot.slane %v706, %v712
        %v714 = vmul.f32 %v713, %v707
        %v715 = vmul.f32 %v713, %v708
        %v716 = vmul.f32 %v713, %v709
        %v717 = vadd.f32 %v689, %v714
        %v718 = vadd.f32 %v690, %v715
        %v719 = vadd.f32 %v691, %v716
        %v720 = vld [vmem:[%s0 + $0xb] sm:$0x1]
        %v721 = vld [vmem:[%s290 + $0x1] sm:$0xff]
        %v722 = vld [vmem:[%s290 + $0x9] sm:$0xff]
        %v723 = vld [vmem:[%s290 + $0x11] sm:$0x3]
        %v724 = vlaneseq
        %v725 = vshrl.u32 %v724, 7
        %v726 = vsub.s32 0, %v725
        %v727 = vrot.slane %v720, %v726
        %v728 = vmul.f32 %v727, %v721
        %v729 = vmul.f32 %v727, %v722
        %v730 = vmul.f32 %v727, %v723
        %v731 = vadd.f32 %v703, %v728
        %v732 = vadd.f32 %v704, %v729
        %v733 = vadd.f32 %v705, %v730
        %v734 = vld [vmem:[%s0 + $0xc] sm:$0x1]
        %v735 = vld [vmem:[%s325 + $0x1] sm:$0xff]
        %v736 = vld [vmem:[%s325 + $0x9] sm:$0xff]
        %v737 = vld [vmem:[%s325 + $0x11] sm:$0x3]
        %v738 = vlaneseq
        %v739 = vshrl.u32 %v738, 7
        %v740 = vsub.s32 0, %v739
        %v741 = vrot.slane %v734, %v740
        %v742 = vmul.f32 %v741, %v735
        %v743 = vmul.f32 %v741, %v736
        %v744 = vmul.f32 %v741, %v737
        %v745 = vadd.f32 %v717, %v742
        %v746 = vadd.f32 %v718, %v743
        %v747 = vadd.f32 %v719, %v744
        %v748 = vld [vmem:[%s0 + $0xd] sm:$0x1]
        %v749 = vld [vmem:[%s360 + $0x1] sm:$0xff]
        %v750 = vld [vmem:[%s360 + $0x9] sm:$0xff]
        %v751 = vld [vmem:[%s360 + $0x11] sm:$0x3]
        %v752 = vlaneseq
        %v753 = vshrl.u32 %v752, 7
        %v754 = vsub.s32 0, %v753
        %v755 = vrot.slane %v748, %v754
        %v756 = vmul.f32 %v755, %v749
        %v757 = vmul.f32 %v755, %v750
        %v758 = vmul.f32 %v755, %v751
        %v759 = vadd.f32 %v731, %v756
        %v760 = vadd.f32 %v732, %v757
        %v761 = vadd.f32 %v733, %v758
        %v762 = vld [vmem:[%s0 + $0xe] sm:$0x1]
        %v763 = vld [vmem:[#allocation3 + $0x2] sm:$0xff]
        %v764 = vld [vmem:[#allocation3 + $0xa] sm:$0xff]
        %v765 = vld [vmem:[#allocation3 + $0x12] sm:$0x3]
        %v766 = vlaneseq
        %v767 = vshrl.u32 %v766, 7
        %v768 = vsub.s32 0, %v767
        %v769 = vrot.slane %v762, %v768
        %v770 = vmul.f32 %v769, %v763
        %v771 = vmul.f32 %v769, %v764
        %v772 = vmul.f32 %v769, %v765
        %v773 = vadd.f32 %v745, %v770
        %v774 = vadd.f32 %v746, %v771
        %v775 = vadd.f32 %v747, %v772
        %v776 = vld [vmem:[%s0 + $0xf] sm:$0x1]
        %v777 = vld [vmem:[%s185 + $0x2] sm:$0xff]
        %v778 = vld [vmem:[%s185 + $0xa] sm:$0xff]
        %v779 = vld [vmem:[%s185 + $0x12] sm:$0x3]
        %v780 = vlaneseq
        %v781 = vshrl.u32 %v780, 7
        %v782 = vsub.s32 0, %v781
        %v783 = vrot.slane %v776, %v782
        %v784 = vmul.f32 %v783, %v777
        %v785 = vmul.f32 %v783, %v778
        %v786 = vmul.f32 %v783, %v779
        %v787 = vadd.f32 %v759, %v784
        %v788 = vadd.f32 %v760, %v785
        %v789 = vadd.f32 %v761, %v786
        %v790 = vld [vmem:[%s0 + $0x10] sm:$0x1]
        %v791 = vld [vmem:[%s220 + $0x2] sm:$0xff]
        %v792 = vld [vmem:[%s220 + $0xa] sm:$0xff]
        %v793 = vld [vmem:[%s220 + $0x12] sm:$0x3]
        %v794 = vlaneseq
        %v795 = vshrl.u32 %v794, 7
        %v796 = vsub.s32 0, %v795
        %v797 = vrot.slane %v790, %v796
        %v798 = vmul.f32 %v797, %v791
        %v799 = vmul.f32 %v797, %v792
        %v800 = vmul.f32 %v797, %v793
        %v801 = vadd.f32 %v773, %v798
        %v802 = vadd.f32 %v774, %v799
        %v803 = vadd.f32 %v775, %v800
        %v804 = vld [vmem:[%s0 + $0x11] sm:$0x1]
        %v805 = vld [vmem:[%s255 + $0x2] sm:$0xff]
        %v806 = vld [vmem:[%s255 + $0xa] sm:$0xff]
        %v807 = vld [vmem:[%s255 + $0x12] sm:$0x3]
        %v808 = vlaneseq
        %v809 = vshrl.u32 %v808, 7
        %v810 = vsub.s32 0, %v809
        %v811 = vrot.slane %v804, %v810
        %v812 = vmul.f32 %v811, %v805
        %v813 = vmul.f32 %v811, %v806
        %v814 = vmul.f32 %v811, %v807
        %v815 = vadd.f32 %v787, %v812
        %v816 = vadd.f32 %v788, %v813
        %v817 = vadd.f32 %v789, %v814
        %v818 = vld [vmem:[%s0 + $0x12] sm:$0x1]
        %v819 = vld [vmem:[%s290 + $0x2] sm:$0xff]
        %v820 = vld [vmem:[%s290 + $0xa] sm:$0xff]
        %v821 = vld [vmem:[%s290 + $0x12] sm:$0x3]
        %v822 = vlaneseq
        %v823 = vshrl.u32 %v822, 7
        %v824 = vsub.s32 0, %v823
        %v825 = vrot.slane %v818, %v824
        %v826 = vmul.f32 %v825, %v819
        %v827 = vmul.f32 %v825, %v820
        %v828 = vmul.f32 %v825, %v821
        %v829 = vadd.f32 %v801, %v826
        %v830 = vadd.f32 %v802, %v827
        %v831 = vadd.f32 %v803, %v828
        %v832 = vld [vmem:[%s0 + $0x13] sm:$0x1]
        %v833 = vld [vmem:[%s325 + $0x2] sm:$0xff]
        %v834 = vld [vmem:[%s325 + $0xa] sm:$0xff]
        %v835 = vld [vmem:[%s325 + $0x12] sm:$0x3]
        %v836 = vlaneseq
        %v837 = vshrl.u32 %v836, 7
        %v838 = vsub.s32 0, %v837
        %v839 = vrot.slane %v832, %v838
        %v840 = vmul.f32 %v839, %v833
        %v841 = vmul.f32 %v839, %v834
        %v842 = vmul.f32 %v839, %v835
        %v843 = vadd.f32 %v815, %v840
        %v844 = vadd.f32 %v816, %v841
        %v845 = vadd.f32 %v817, %v842
        %v846 = vld [vmem:[%s0 + $0x14] sm:$0x1]
        %v847 = vld [vmem:[%s360 + $0x2] sm:$0xff]
        %v848 = vld [vmem:[%s360 + $0xa] sm:$0xff]
        %v849 = vld [vmem:[%s360 + $0x12] sm:$0x3]
        %v850 = vlaneseq
        %v851 = vshrl.u32 %v850, 7
        %v852 = vsub.s32 0, %v851
        %v853 = vrot.slane %v846, %v852
        %v854 = vmul.f32 %v853, %v847
        %v855 = vmul.f32 %v853, %v848
        %v856 = vmul.f32 %v853, %v849
        %v857 = vadd.f32 %v829, %v854
        %v858 = vadd.f32 %v830, %v855
        %v859 = vadd.f32 %v831, %v856
        %v860 = vld [vmem:[%s0 + $0x15] sm:$0x1]
        %v861 = vld [vmem:[#allocation3 + $0x3] sm:$0xff]
        %v862 = vld [vmem:[#allocation3 + $0xb] sm:$0xff]
        %v863 = vld [vmem:[#allocation3 + $0x13] sm:$0x3]
        %v864 = vlaneseq
        %v865 = vshrl.u32 %v864, 7
        %v866 = vsub.s32 0, %v865
        %v867 = vrot.slane %v860, %v866
        %v868 = vmul.f32 %v867, %v861
        %v869 = vmul.f32 %v867, %v862
        %v870 = vmul.f32 %v867, %v863
        %v871 = vadd.f32 %v843, %v868
        %v872 = vadd.f32 %v844, %v869
        %v873 = vadd.f32 %v845, %v870
        %v874 = vld [vmem:[%s0 + $0x16] sm:$0x1]
        %v875 = vld [vmem:[%s185 + $0x3] sm:$0xff]
        %v876 = vld [vmem:[%s185 + $0xb] sm:$0xff]
        %v877 = vld [vmem:[%s185 + $0x13] sm:$0x3]
        %v878 = vlaneseq
        %v879 = vshrl.u32 %v878, 7
        %v880 = vsub.s32 0, %v879
        %v881 = vrot.slane %v874, %v880
        %v882 = vmul.f32 %v881, %v875
        %v883 = vmul.f32 %v881, %v876
        %v884 = vmul.f32 %v881, %v877
        %v885 = vadd.f32 %v857, %v882
        %v886 = vadd.f32 %v858, %v883
        %v887 = vadd.f32 %v859, %v884
        %v888 = vld [vmem:[%s0 + $0x17] sm:$0x1]
        %v889 = vld [vmem:[%s220 + $0x3] sm:$0xff]
        %v890 = vld [vmem:[%s220 + $0xb] sm:$0xff]
        %v891 = vld [vmem:[%s220 + $0x13] sm:$0x3]
        %v892 = vlaneseq
        %v893 = vshrl.u32 %v892, 7
        %v894 = vsub.s32 0, %v893
        %v895 = vrot.slane %v888, %v894
        %v896 = vmul.f32 %v895, %v889
        %v897 = vmul.f32 %v895, %v890
        %v898 = vmul.f32 %v895, %v891
        %v899 = vadd.f32 %v871, %v896
        %v900 = vadd.f32 %v872, %v897
        %v901 = vadd.f32 %v873, %v898
        %v902 = vld [vmem:[%s0 + $0x18] sm:$0x1]
        %v903 = vld [vmem:[%s255 + $0x3] sm:$0xff]
        %v904 = vld [vmem:[%s255 + $0xb] sm:$0xff]
        %v905 = vld [vmem:[%s255 + $0x13] sm:$0x3]
        %v906 = vlaneseq
        %v907 = vshrl.u32 %v906, 7
        %v908 = vsub.s32 0, %v907
        %v909 = vrot.slane %v902, %v908
        %v910 = vmul.f32 %v909, %v903
        %v911 = vmul.f32 %v909, %v904
        %v912 = vmul.f32 %v909, %v905
        %v913 = vadd.f32 %v885, %v910
        %v914 = vadd.f32 %v886, %v911
        %v915 = vadd.f32 %v887, %v912
        %v916 = vld [vmem:[%s0 + $0x19] sm:$0x1]
        %v917 = vld [vmem:[%s290 + $0x3] sm:$0xff]
        %v918 = vld [vmem:[%s290 + $0xb] sm:$0xff]
        %v919 = vld [vmem:[%s290 + $0x13] sm:$0x3]
        %v920 = vlaneseq
        %v921 = vshrl.u32 %v920, 7
        %v922 = vsub.s32 0, %v921
        %v923 = vrot.slane %v916, %v922
        %v924 = vmul.f32 %v923, %v917
        %v925 = vmul.f32 %v923, %v918
        %v926 = vmul.f32 %v923, %v919
        %v927 = vadd.f32 %v899, %v924
        %v928 = vadd.f32 %v900, %v925
        %v929 = vadd.f32 %v901, %v926
        %v930 = vld [vmem:[%s0 + $0x1a] sm:$0x1]
        %v931 = vld [vmem:[%s325 + $0x3] sm:$0xff]
        %v932 = vld [vmem:[%s325 + $0xb] sm:$0xff]
        %v933 = vld [vmem:[%s325 + $0x13] sm:$0x3]
        %v934 = vlaneseq
        %v935 = vshrl.u32 %v934, 7
        %v936 = vsub.s32 0, %v935
        %v937 = vrot.slane %v930, %v936
        %v938 = vmul.f32 %v937, %v931
        %v939 = vmul.f32 %v937, %v932
        %v940 = vmul.f32 %v937, %v933
        %v941 = vadd.f32 %v913, %v938
        %v942 = vadd.f32 %v914, %v939
        %v943 = vadd.f32 %v915, %v940
        %v944 = vld [vmem:[%s0 + $0x1b] sm:$0x1]
        %v945 = vld [vmem:[%s360 + $0x3] sm:$0xff]
        %v946 = vld [vmem:[%s360 + $0xb] sm:$0xff]
        %v947 = vld [vmem:[%s360 + $0x13] sm:$0x3]
        %v948 = vlaneseq
        %v949 = vshrl.u32 %v948, 7
        %v950 = vsub.s32 0, %v949
        %v951 = vrot.slane %v944, %v950
        %v952 = vmul.f32 %v951, %v945
        %v953 = vmul.f32 %v951, %v946
        %v954 = vmul.f32 %v951, %v947
        %v955 = vadd.f32 %v927, %v952
        %v956 = vadd.f32 %v928, %v953
        %v957 = vadd.f32 %v929, %v954
        %v958 = vld [vmem:[%s0 + $0x1c] sm:$0x1]
        %v959 = vld [vmem:[#allocation3 + $0x4] sm:$0xff]
        %v960 = vld [vmem:[#allocation3 + $0xc] sm:$0xff]
        %v961 = vld [vmem:[#allocation3 + $0x14] sm:$0x3]
        %v962 = vlaneseq
        %v963 = vshrl.u32 %v962, 7
        %v964 = vsub.s32 0, %v963
        %v965 = vrot.slane %v958, %v964
        %v966 = vmul.f32 %v965, %v959
        %v967 = vmul.f32 %v965, %v960
        %v968 = vmul.f32 %v965, %v961
        %v969 = vadd.f32 %v941, %v966
        %v970 = vadd.f32 %v942, %v967
        %v971 = vadd.f32 %v943, %v968
        %v972 = vld [vmem:[%s0 + $0x1d] sm:$0x1]
        %v973 = vld [vmem:[%s185 + $0x4] sm:$0xff]
        %v974 = vld [vmem:[%s185 + $0xc] sm:$0xff]
        %v975 = vld [vmem:[%s185 + $0x14] sm:$0x3]
        %v976 = vlaneseq
        %v977 = vshrl.u32 %v976, 7
        %v978 = vsub.s32 0, %v977
        %v979 = vrot.slane %v972, %v978
        %v980 = vmul.f32 %v979, %v973
        %v981 = vmul.f32 %v979, %v974
        %v982 = vmul.f32 %v979, %v975
        %v983 = vadd.f32 %v955, %v980
        %v984 = vadd.f32 %v956, %v981
        %v985 = vadd.f32 %v957, %v982
        %v986 = vld [vmem:[%s0 + $0x1e] sm:$0x1]
        %v987 = vld [vmem:[%s220 + $0x4] sm:$0xff]
        %v988 = vld [vmem:[%s220 + $0xc] sm:$0xff]
        %v989 = vld [vmem:[%s220 + $0x14] sm:$0x3]
        %v990 = vlaneseq
        %v991 = vshrl.u32 %v990, 7
        %v992 = vsub.s32 0, %v991
        %v993 = vrot.slane %v986, %v992
        %v994 = vmul.f32 %v993, %v987
        %v995 = vmul.f32 %v993, %v988
        %v996 = vmul.f32 %v993, %v989
        %v997 = vadd.f32 %v969, %v994
        %v998 = vadd.f32 %v970, %v995
        %v999 = vadd.f32 %v971, %v996
        %v1000 = vld [vmem:[%s0 + $0x1f] sm:$0x1]
        %v1001 = vld [vmem:[%s255 + $0x4] sm:$0xff]
        %v1002 = vld [vmem:[%s255 + $0xc] sm:$0xff]
        %v1003 = vld [vmem:[%s255 + $0x14] sm:$0x3]
        %v1004 = vlaneseq
        %v1005 = vshrl.u32 %v1004, 7
        %v1006 = vsub.s32 0, %v1005
        %v1007 = vrot.slane %v1000, %v1006
        %v1008 = vmul.f32 %v1007, %v1001
        %v1009 = vmul.f32 %v1007, %v1002
        %v1010 = vmul.f32 %v1007, %v1003
        %v1011 = vadd.f32 %v983, %v1008
        %v1012 = vadd.f32 %v984, %v1009
        %v1013 = vadd.f32 %v985, %v1010
        %v1014 = vld [vmem:[%s0 + $0x20] sm:$0x1]
        %v1015 = vld [vmem:[%s290 + $0x4] sm:$0xff]
        %v1016 = vld [vmem:[%s290 + $0xc] sm:$0xff]
        %v1017 = vld [vmem:[%s290 + $0x14] sm:$0x3]
        %v1018 = vlaneseq
        %v1019 = vshrl.u32 %v1018, 7
        %v1020 = vsub.s32 0, %v1019
        %v1021 = vrot.slane %v1014, %v1020
        %v1022 = vmul.f32 %v1021, %v1015
        %v1023 = vmul.f32 %v1021, %v1016
        %v1024 = vmul.f32 %v1021, %v1017
        %v1025 = vadd.f32 %v997, %v1022
        %v1026 = vadd.f32 %v998, %v1023
        %v1027 = vadd.f32 %v999, %v1024
        %v1028 = vld [vmem:[%s0 + $0x21] sm:$0x1]
        %v1029 = vld [vmem:[%s325 + $0x4] sm:$0xff]
        %v1030 = vld [vmem:[%s325 + $0xc] sm:$0xff]
        %v1031 = vld [vmem:[%s325 + $0x14] sm:$0x3]
        %v1032 = vlaneseq
        %v1033 = vshrl.u32 %v1032, 7
        %v1034 = vsub.s32 0, %v1033
        %v1035 = vrot.slane %v1028, %v1034
        %v1036 = vmul.f32 %v1035, %v1029
        %v1037 = vmul.f32 %v1035, %v1030
        %v1038 = vmul.f32 %v1035, %v1031
        %v1039 = vadd.f32 %v1011, %v1036
        %v1040 = vadd.f32 %v1012, %v1037
        %v1041 = vadd.f32 %v1013, %v1038
        %v1042 = vld [vmem:[%s0 + $0x22] sm:$0x1]
        %v1043 = vld [vmem:[%s360 + $0x4] sm:$0xff]
        %v1044 = vld [vmem:[%s360 + $0xc] sm:$0xff]
        %v1045 = vld [vmem:[%s360 + $0x14] sm:$0x3]
        %v1046 = vlaneseq
        %v1047 = vshrl.u32 %v1046, 7
        %v1048 = vsub.s32 0, %v1047
        %v1049 = vrot.slane %v1042, %v1048
        %v1050 = vmul.f32 %v1049, %v1043
        %v1051 = vmul.f32 %v1049, %v1044
        %v1052 = vmul.f32 %v1049, %v1045
        %v1053 = vadd.f32 %v1025, %v1050
        %v1054 = vadd.f32 %v1026, %v1051
        %v1055 = vadd.f32 %v1027, %v1052
        %v1056 = vld [vmem:[%s0 + $0x23] sm:$0x1]
        %v1057 = vld [vmem:[#allocation3 + $0x5] sm:$0xff]
        %v1058 = vld [vmem:[#allocation3 + $0xd] sm:$0xff]
        %v1059 = vld [vmem:[#allocation3 + $0x15] sm:$0x3]
        %v1060 = vlaneseq
        %v1061 = vshrl.u32 %v1060, 7
        %v1062 = vsub.s32 0, %v1061
        %v1063 = vrot.slane %v1056, %v1062
        %v1064 = vmul.f32 %v1063, %v1057
        %v1065 = vmul.f32 %v1063, %v1058
        %v1066 = vmul.f32 %v1063, %v1059
        %v1067 = vadd.f32 %v1039, %v1064
        %v1068 = vadd.f32 %v1040, %v1065
        %v1069 = vadd.f32 %v1041, %v1066
        %v1070 = vld [vmem:[%s0 + $0x24] sm:$0x1]
        %v1071 = vld [vmem:[%s185 + $0x5] sm:$0xff]
        %v1072 = vld [vmem:[%s185 + $0xd] sm:$0xff]
        %v1073 = vld [vmem:[%s185 + $0x15] sm:$0x3]
        %v1074 = vlaneseq
        %v1075 = vshrl.u32 %v1074, 7
        %v1076 = vsub.s32 0, %v1075
        %v1077 = vrot.slane %v1070, %v1076
        %v1078 = vmul.f32 %v1077, %v1071
        %v1079 = vmul.f32 %v1077, %v1072
        %v1080 = vmul.f32 %v1077, %v1073
        %v1081 = vadd.f32 %v1053, %v1078
        %v1082 = vadd.f32 %v1054, %v1079
        %v1083 = vadd.f32 %v1055, %v1080
        %v1084 = vld [vmem:[%s0 + $0x25] sm:$0x1]
        %v1085 = vld [vmem:[%s220 + $0x5] sm:$0xff]
        %v1086 = vld [vmem:[%s220 + $0xd] sm:$0xff]
        %v1087 = vld [vmem:[%s220 + $0x15] sm:$0x3]
        %v1088 = vlaneseq
        %v1089 = vshrl.u32 %v1088, 7
        %v1090 = vsub.s32 0, %v1089
        %v1091 = vrot.slane %v1084, %v1090
        %v1092 = vmul.f32 %v1091, %v1085
        %v1093 = vmul.f32 %v1091, %v1086
        %v1094 = vmul.f32 %v1091, %v1087
        %v1095 = vadd.f32 %v1067, %v1092
        %v1096 = vadd.f32 %v1068, %v1093
        %v1097 = vadd.f32 %v1069, %v1094
        %v1098 = vld [vmem:[%s0 + $0x26] sm:$0x1]
        %v1099 = vld [vmem:[%s255 + $0x5] sm:$0xff]
        %v1100 = vld [vmem:[%s255 + $0xd] sm:$0xff]
        %v1101 = vld [vmem:[%s255 + $0x15] sm:$0x3]
        %v1102 = vlaneseq
        %v1103 = vshrl.u32 %v1102, 7
        %v1104 = vsub.s32 0, %v1103
        %v1105 = vrot.slane %v1098, %v1104
        %v1106 = vmul.f32 %v1105, %v1099
        %v1107 = vmul.f32 %v1105, %v1100
        %v1108 = vmul.f32 %v1105, %v1101
        %v1109 = vadd.f32 %v1081, %v1106
        %v1110 = vadd.f32 %v1082, %v1107
        %v1111 = vadd.f32 %v1083, %v1108
        %v1112 = vld [vmem:[%s0 + $0x27] sm:$0x1]
        %v1113 = vld [vmem:[%s290 + $0x5] sm:$0xff]
        %v1114 = vld [vmem:[%s290 + $0xd] sm:$0xff]
        %v1115 = vld [vmem:[%s290 + $0x15] sm:$0x3]
        %v1116 = vlaneseq
        %v1117 = vshrl.u32 %v1116, 7
        %v1118 = vsub.s32 0, %v1117
        %v1119 = vrot.slane %v1112, %v1118
        %v1120 = vmul.f32 %v1119, %v1113
        %v1121 = vmul.f32 %v1119, %v1114
        %v1122 = vmul.f32 %v1119, %v1115
        %v1123 = vadd.f32 %v1095, %v1120
        %v1124 = vadd.f32 %v1096, %v1121
        %v1125 = vadd.f32 %v1097, %v1122
        %v1126 = vld [vmem:[%s0 + $0x28] sm:$0x1]
        %v1127 = vld [vmem:[%s325 + $0x5] sm:$0xff]
        %v1128 = vld [vmem:[%s325 + $0xd] sm:$0xff]
        %v1129 = vld [vmem:[%s325 + $0x15] sm:$0x3]
        %v1130 = vlaneseq
        %v1131 = vshrl.u32 %v1130, 7
        %v1132 = vsub.s32 0, %v1131
        %v1133 = vrot.slane %v1126, %v1132
        %v1134 = vmul.f32 %v1133, %v1127
        %v1135 = vmul.f32 %v1133, %v1128
        %v1136 = vmul.f32 %v1133, %v1129
        %v1137 = vadd.f32 %v1109, %v1134
        %v1138 = vadd.f32 %v1110, %v1135
        %v1139 = vadd.f32 %v1111, %v1136
        %v1140 = vld [vmem:[%s0 + $0x29] sm:$0x1]
        %v1141 = vld [vmem:[%s360 + $0x5] sm:$0xff]
        %v1142 = vld [vmem:[%s360 + $0xd] sm:$0xff]
        %v1143 = vld [vmem:[%s360 + $0x15] sm:$0x3]
        %v1144 = vlaneseq
        %v1145 = vshrl.u32 %v1144, 7
        %v1146 = vsub.s32 0, %v1145
        %v1147 = vrot.slane %v1140, %v1146
        %v1148 = vmul.f32 %v1147, %v1141
        %v1149 = vmul.f32 %v1147, %v1142
        %v1150 = vmul.f32 %v1147, %v1143
        %v1151 = vadd.f32 %v1123, %v1148
        %v1152 = vadd.f32 %v1124, %v1149
        %v1153 = vadd.f32 %v1125, %v1150
        %v1154 = vld [vmem:[%s0 + $0x2a] sm:$0x1]
        %v1155 = vld [vmem:[#allocation3 + $0x6] sm:$0xff]
        %v1156 = vld [vmem:[#allocation3 + $0xe] sm:$0xff]
        %v1157 = vld [vmem:[#allocation3 + $0x16] sm:$0x3]
        %v1158 = vlaneseq
        %v1159 = vshrl.u32 %v1158, 7
        %v1160 = vsub.s32 0, %v1159
        %v1161 = vrot.slane %v1154, %v1160
        %v1162 = vmul.f32 %v1161, %v1155
        %v1163 = vmul.f32 %v1161, %v1156
        %v1164 = vmul.f32 %v1161, %v1157
        %v1165 = vadd.f32 %v1137, %v1162
        %v1166 = vadd.f32 %v1138, %v1163
        %v1167 = vadd.f32 %v1139, %v1164
        %v1168 = vld [vmem:[%s0 + $0x2b] sm:$0x1]
        %v1169 = vld [vmem:[%s185 + $0x6] sm:$0xff]
        %v1170 = vld [vmem:[%s185 + $0xe] sm:$0xff]
        %v1171 = vld [vmem:[%s185 + $0x16] sm:$0x3]
        %v1172 = vlaneseq
        %v1173 = vshrl.u32 %v1172, 7
        %v1174 = vsub.s32 0, %v1173
        %v1175 = vrot.slane %v1168, %v1174
        %v1176 = vmul.f32 %v1175, %v1169
        %v1177 = vmul.f32 %v1175, %v1170
        %v1178 = vmul.f32 %v1175, %v1171
        %v1179 = vadd.f32 %v1151, %v1176
        %v1180 = vadd.f32 %v1152, %v1177
        %v1181 = vadd.f32 %v1153, %v1178
        %v1182 = vld [vmem:[%s0 + $0x2c] sm:$0x1]
        %v1183 = vld [vmem:[%s220 + $0x6] sm:$0xff]
        %v1184 = vld [vmem:[%s220 + $0xe] sm:$0xff]
        %v1185 = vld [vmem:[%s220 + $0x16] sm:$0x3]
        %v1186 = vlaneseq
        %v1187 = vshrl.u32 %v1186, 7
        %v1188 = vsub.s32 0, %v1187
        %v1189 = vrot.slane %v1182, %v1188
        %v1190 = vmul.f32 %v1189, %v1183
        %v1191 = vmul.f32 %v1189, %v1184
        %v1192 = vmul.f32 %v1189, %v1185
        %v1193 = vadd.f32 %v1165, %v1190
        %v1194 = vadd.f32 %v1166, %v1191
        %v1195 = vadd.f32 %v1167, %v1192
        %v1196 = vld [vmem:[%s0 + $0x2d] sm:$0x1]
        %v1197 = vld [vmem:[%s255 + $0x6] sm:$0xff]
        %v1198 = vld [vmem:[%s255 + $0xe] sm:$0xff]
        %v1199 = vld [vmem:[%s255 + $0x16] sm:$0x3]
        %v1200 = vlaneseq
        %v1201 = vshrl.u32 %v1200, 7
        %v1202 = vsub.s32 0, %v1201
        %v1203 = vrot.slane %v1196, %v1202
        %v1204 = vmul.f32 %v1203, %v1197
        %v1205 = vmul.f32 %v1203, %v1198
        %v1206 = vmul.f32 %v1203, %v1199
        %v1207 = vadd.f32 %v1179, %v1204
        %v1208 = vadd.f32 %v1180, %v1205
        %v1209 = vadd.f32 %v1181, %v1206
        %v1210 = vld [vmem:[%s0 + $0x2e] sm:$0x1]
        %v1211 = vld [vmem:[%s290 + $0x6] sm:$0xff]
        %v1212 = vld [vmem:[%s290 + $0xe] sm:$0xff]
        %v1213 = vld [vmem:[%s290 + $0x16] sm:$0x3]
        %v1214 = vlaneseq
        %v1215 = vshrl.u32 %v1214, 7
        %v1216 = vsub.s32 0, %v1215
        %v1217 = vrot.slane %v1210, %v1216
        %v1218 = vmul.f32 %v1217, %v1211
        %v1219 = vmul.f32 %v1217, %v1212
        %v1220 = vmul.f32 %v1217, %v1213
        %v1221 = vadd.f32 %v1193, %v1218
        %v1222 = vadd.f32 %v1194, %v1219
        %v1223 = vadd.f32 %v1195, %v1220
        %v1224 = vld [vmem:[%s0 + $0x2f] sm:$0x1]
        %v1225 = vld [vmem:[%s325 + $0x6] sm:$0xff]
        %v1226 = vld [vmem:[%s325 + $0xe] sm:$0xff]
        %v1227 = vld [vmem:[%s325 + $0x16] sm:$0x3]
        %v1228 = vlaneseq
        %v1229 = vshrl.u32 %v1228, 7
        %v1230 = vsub.s32 0, %v1229
        %v1231 = vrot.slane %v1224, %v1230
        %v1232 = vmul.f32 %v1231, %v1225
        %v1233 = vmul.f32 %v1231, %v1226
        %v1234 = vmul.f32 %v1231, %v1227
        %v1235 = vadd.f32 %v1207, %v1232
        %v1236 = vadd.f32 %v1208, %v1233
        %v1237 = vadd.f32 %v1209, %v1234
        %v1238 = vld [vmem:[%s0 + $0x30] sm:$0x1]
        %v1239 = vld [vmem:[%s360 + $0x6] sm:$0xff]
        %v1240 = vld [vmem:[%s360 + $0xe] sm:$0xff]
        %v1241 = vld [vmem:[%s360 + $0x16] sm:$0x3]
        %v1242 = vlaneseq
        %v1243 = vshrl.u32 %v1242, 7
        %v1244 = vsub.s32 0, %v1243
        %v1245 = vrot.slane %v1238, %v1244
        %v1246 = vmul.f32 %v1245, %v1239
        %v1247 = vmul.f32 %v1245, %v1240
        %v1248 = vmul.f32 %v1245, %v1241
        %v1249 = vadd.f32 %v1221, %v1246
        %v1250 = vadd.f32 %v1222, %v1247
        %v1251 = vadd.f32 %v1223, %v1248
        %v1252 = vadd.f32 %v1249, %v1235
        %v1253 = vadd.f32 %v1250, %v1236
        %v1254 = vadd.f32 %v1251, %v1237
        %v1255 = vld [vmem:[%s0 + $0x31] sm:$0x1]
        %v1256 = vlaneseq
        %v1257 = vshrl.u32 %v1256, 7
        %v1258 = vsub.s32 0, %v1257
        %v1259 = vrot.slane %v1255, %v1258
        %v1260 = vadd.f32 %v1252, %v1259
        %v1261 = vadd.f32 %v1253, %v1259
        %v1262 = vadd.f32 %v1254, %v1259
        %1263 = vst [vmem:[#allocation4] sm:$0xff] %v1260
        %1264 = vst [vmem:[#allocation4 + $0x10] sm:$0xff] %v1261
        %1265 = vst [vmem:[#allocation4 + $0x20] sm:$0x3] %v1262
        %1266 = vst [vmem:[#allocation4 + $0x8] sm:$0xff] %v1260
        %1267 = vst [vmem:[#allocation4 + $0x18] sm:$0xff] %v1261
        %1268 = vst [vmem:[#allocation4 + $0x28] sm:$0x3] %v1262
        %v1269 = vld [vmem:[%s0 + $0x41] sm:$0x1]
        %v1270 = vld [vmem:[%s255 + $0x3] sm:$0xff]
        %v1271 = vld [vmem:[%s255 + $0xb] sm:$0xff]
        %v1272 = vld [vmem:[%s255 + $0x13] sm:$0x3]
        %v1273 = vlaneseq
        %v1274 = vshrl.u32 %v1273, 7
        %v1275 = vsub.s32 0, %v1274
        %v1276 = vrot.slane %v1269, %v1275
        %v1277 = vmul.f32 %v1276, %v1270
        %v1278 = vmul.f32 %v1276, %v1271
        %v1279 = vmul.f32 %v1276, %v1272
        %v1280 = vld [vmem:[%s0 + $0x45] sm:$0x1]
        %v1281 = vlaneseq
        %v1282 = vshrl.u32 %v1281, 7
        %v1283 = vsub.s32 0, %v1282
        %v1284 = vrot.slane %v1280, %v1283
        %v1285 = vmul.f32 %v1284, %v1260
        %v1286 = vmul.f32 %v1284, %v1261
        %v1287 = vmul.f32 %v1284, %v1262
        %v1288 = vld [vmem:[%s0 + $0x42] sm:$0x1]
        %v1289 = vld [vmem:[#allocation2] sm:$0xf8]
        %v1290 = vld [vmem:[#allocation2 + $0x8] sm:$0xf8]
        %v1291 = vld [vmem:[#allocation2 + $0x10] sm:$0xff]
        %v1292 = vld [vmem:[#allocation2 + $0x18] sm:$0xff]
        %v1293 = vld [vmem:[#allocation2 + $0x20] sm:$0x1f]
        %v1294 = vld [vmem:[#allocation2 + $0x28] sm:$0x1f]
        %v1295 = vlaneseq
        %v1296 = vshrl.u32 %v1295, 7
        %v1297 = vsub.s32 0, %v1296
        %v1298 = vrot.slane %v1288, %v1297
        %vm1305 = vcmask 1044480
        %v1306 = vrot.slane %v1289, 3
        %v1307 = vrot.slane %v1291, 3
        %v1308 = vsel %vm1305, %v1306, %v1307
        %v1309 = vrot.slane %v1290, 3
        %v1310 = vrot.slane %v1292, 3
        %v1311 = vsel %vm1305, %v1309, %v1310
        %v1312 = vrot.slane %v1293, 3
        %v1313 = vsel %vm1305, %v1307, %v1312
        %v1314 = vrot.slane %v1294, 3
        %v1315 = vsel %vm1305, %v1310, %v1314
        %1316 = vrot.lane.b32.xlu0 %v1308, 93
        %v1317 = vpop.permute.xlu0 %1316
        %1318 = vrot.lane.b32.xlu0 %v1311, 93
        %v1319 = vpop.permute.xlu0 %1318
        %1320 = vrot.lane.b32.xlu0 %v1313, 93
        %v1321 = vpop.permute.xlu0 %1320
        %1322 = vrot.lane.b32.xlu0 %v1315, 93
        %v1323 = vpop.permute.xlu0 %1322
        %1324 = vrot.lane.b32.xlu0 %v1312, 93
        %v1325 = vpop.permute.xlu0 %1324
        %1326 = vrot.lane.b32.xlu0 %v1314, 93
        %v1327 = vpop.permute.xlu0 %1326
        %vm1328 = vcmask 760832
        %v1329 = vsel %vm1328, %v1317, %v1319
        %v1330 = vsel %vm1328, %v1321, %v1323
        %v1331 = vsel %vm1328, %v1325, %v1327
        %v1335 = vmul.f32 %v1298, %v1329
        %v1336 = vmul.f32 %v1298, %v1330
        %v1337 = vmul.f32 %v1298, %v1331
        %v1338 = vadd.f32 %v1277, %v1335
        %v1339 = vadd.f32 %v1278, %v1336
        %v1340 = vadd.f32 %v1279, %v1337
        %v1341 = vld [vmem:[%s0 + $0x46] sm:$0x1]
        %v1342 = vld [vmem:[#allocation4] sm:$0xff]
        %v1343 = vld [vmem:[#allocation4 + $0x8] sm:$0xff]
        %v1344 = vld [vmem:[#allocation4 + $0x10] sm:$0xff]
        %v1345 = vld [vmem:[#allocation4 + $0x18] sm:$0xff]
        %v1346 = vld [vmem:[#allocation4 + $0x20] sm:$0x3]
        %v1347 = vld [vmem:[#allocation4 + $0x28] sm:$0x3]
        %v1348 = vlaneseq
        %v1349 = vshrl.u32 %v1348, 7
        %v1350 = vsub.s32 0, %v1349
        %v1351 = vrot.slane %v1341, %v1350
        %1358 = vrot.lane.b32.xlu0 %v1342, 96
        %v1359 = vpop.permute.xlu0 %1358
        %1360 = vrot.lane.b32.xlu0 %v1343, 96
        %v1361 = vpop.permute.xlu0 %1360
        %1362 = vrot.lane.b32.xlu0 %v1344, 96
        %v1363 = vpop.permute.xlu0 %1362
        %1364 = vrot.lane.b32.xlu0 %v1345, 96
        %v1365 = vpop.permute.xlu0 %1364
        %1366 = vrot.lane.b32.xlu0 %v1346, 96
        %v1367 = vpop.permute.xlu0 %1366
        %1368 = vrot.lane.b32.xlu0 %v1347, 96
        %v1369 = vpop.permute.xlu0 %1368
        %v1370 = vsel %vm500, %v1359, %v1361
        %v1371 = vsel %vm500, %v1363, %v1365
        %v1372 = vsel %vm500, %v1367, %v1369
        %v1376 = vmul.f32 %v1351, %v1370
        %v1377 = vmul.f32 %v1351, %v1371
        %v1378 = vmul.f32 %v1351, %v1372
        %v1379 = vadd.f32 %v1285, %v1376
        %v1380 = vadd.f32 %v1286, %v1377
        %v1381 = vadd.f32 %v1287, %v1378
        %v1382 = vld [vmem:[%s0 + $0x43] sm:$0x1]
        %v1383 = vlaneseq
        %v1384 = vshrl.u32 %v1383, 7
        %v1385 = vsub.s32 0, %v1384
        %v1386 = vrot.slane %v1382, %v1385
        %1387 = vrot.lane.b32.xlu0 %v1308, 61
        %v1388 = vpop.permute.xlu0 %1387
        %1389 = vrot.lane.b32.xlu0 %v1311, 61
        %v1390 = vpop.permute.xlu0 %1389
        %1391 = vrot.lane.b32.xlu0 %v1313, 61
        %v1392 = vpop.permute.xlu0 %1391
        %1393 = vrot.lane.b32.xlu0 %v1315, 61
        %v1394 = vpop.permute.xlu0 %1393
        %1395 = vrot.lane.b32.xlu0 %v1312, 61
        %v1396 = vpop.permute.xlu0 %1395
        %1397 = vrot.lane.b32.xlu0 %v1314, 61
        %v1398 = vpop.permute.xlu0 %1397
        %vm1399 = vcmask 498688
        %v1400 = vsel %vm1399, %v1388, %v1390
        %v1401 = vsel %vm1399, %v1392, %v1394
        %v1402 = vsel %vm1399, %v1396, %v1398
        %v1406 = vmul.f32 %v1386, %v1400
        %v1407 = vmul.f32 %v1386, %v1401
        %v1408 = vmul.f32 %v1386, %v1402
        %v1409 = vadd.f32 %v1338, %v1406
        %v1410 = vadd.f32 %v1339, %v1407
        %v1411 = vadd.f32 %v1340, %v1408
        %v1412 = vld [vmem:[%s0 + $0x47] sm:$0x1]
        %v1413 = vlaneseq
        %v1414 = vshrl.u32 %v1413, 7
        %v1415 = vsub.s32 0, %v1414
        %v1416 = vrot.slane %v1412, %v1415
        %1417 = vrot.lane.b32.xlu0 %v1342, 64
        %v1418 = vpop.permute.xlu0 %1417
        %1419 = vrot.lane.b32.xlu0 %v1343, 64
        %v1420 = vpop.permute.xlu0 %1419
        %1421 = vrot.lane.b32.xlu0 %v1344, 64
        %v1422 = vpop.permute.xlu0 %1421
        %1423 = vrot.lane.b32.xlu0 %v1345, 64
        %v1424 = vpop.permute.xlu0 %1423
        %1425 = vrot.lane.b32.xlu0 %v1346, 64
        %v1426 = vpop.permute.xlu0 %1425
        %1427 = vrot.lane.b32.xlu0 %v1347, 64
        %v1428 = vpop.permute.xlu0 %1427
        %v1429 = vsel %vm522, %v1418, %v1420
        %v1430 = vsel %vm522, %v1422, %v1424
        %v1431 = vsel %vm522, %v1426, %v1428
        %v1435 = vmul.f32 %v1416, %v1429
        %v1436 = vmul.f32 %v1416, %v1430
        %v1437 = vmul.f32 %v1416, %v1431
        %v1438 = vadd.f32 %v1379, %v1435
        %v1439 = vadd.f32 %v1380, %v1436
        %v1440 = vadd.f32 %v1381, %v1437
        %v1441 = vld [vmem:[%s0 + $0x44] sm:$0x1]
        %v1442 = vlaneseq
        %v1443 = vshrl.u32 %v1442, 7
        %v1444 = vsub.s32 0, %v1443
        %v1445 = vrot.slane %v1441, %v1444
        %1446 = vrot.lane.b32.xlu0 %v1308, 29
        %v1447 = vpop.permute.xlu0 %1446
        %1448 = vrot.lane.b32.xlu0 %v1311, 29
        %v1449 = vpop.permute.xlu0 %1448
        %1450 = vrot.lane.b32.xlu0 %v1313, 29
        %v1451 = vpop.permute.xlu0 %1450
        %1452 = vrot.lane.b32.xlu0 %v1315, 29
        %v1453 = vpop.permute.xlu0 %1452
        %1454 = vrot.lane.b32.xlu0 %v1312, 29
        %v1455 = vpop.permute.xlu0 %1454
        %1456 = vrot.lane.b32.xlu0 %v1314, 29
        %v1457 = vpop.permute.xlu0 %1456
        %vm1458 = vcmask 236544
        %v1459 = vsel %vm1458, %v1447, %v1449
        %v1460 = vsel %vm1458, %v1451, %v1453
        %v1461 = vsel %vm1458, %v1455, %v1457
        %v1465 = vmul.f32 %v1445, %v1459
        %v1466 = vmul.f32 %v1445, %v1460
        %v1467 = vmul.f32 %v1445, %v1461
        %v1468 = vadd.f32 %v1409, %v1465
        %v1469 = vadd.f32 %v1410, %v1466
        %v1470 = vadd.f32 %v1411, %v1467
        %v1471 = vld [vmem:[%s0 + $0x48] sm:$0x1]
        %v1472 = vlaneseq
        %v1473 = vshrl.u32 %v1472, 7
        %v1474 = vsub.s32 0, %v1473
        %v1475 = vrot.slane %v1471, %v1474
        %1476 = vrot.lane.b32.xlu0 %v1342, 32
        %v1477 = vpop.permute.xlu0 %1476
        %1478 = vrot.lane.b32.xlu0 %v1343, 32
        %v1479 = vpop.permute.xlu0 %1478
        %1480 = vrot.lane.b32.xlu0 %v1344, 32
        %v1481 = vpop.permute.xlu0 %1480
        %1482 = vrot.lane.b32.xlu0 %v1345, 32
        %v1483 = vpop.permute.xlu0 %1482
        %1484 = vrot.lane.b32.xlu0 %v1346, 32
        %v1485 = vpop.permute.xlu0 %1484
        %1486 = vrot.lane.b32.xlu0 %v1347, 32
        %v1487 = vpop.permute.xlu0 %1486
        %v1488 = vsel %vm544, %v1477, %v1479
        %v1489 = vsel %vm544, %v1481, %v1483
        %v1490 = vsel %vm544, %v1485, %v1487
        %v1494 = vmul.f32 %v1475, %v1488
        %v1495 = vmul.f32 %v1475, %v1489
        %v1496 = vmul.f32 %v1475, %v1490
        %v1497 = vadd.f32 %v1438, %v1494
        %v1498 = vadd.f32 %v1439, %v1495
        %v1499 = vadd.f32 %v1440, %v1496
        %v1500 = vlaneseq
        %v1501 = vshrl.u32 %v1500, 7
        %v1502 = vadd.s32 %v1501, 8
        %v1503 = vadd.s32 %v1501, 16
        %vm1504 = vcmp.ge.s32.totalorder %v1501, 1
        %vm1505 = vcmp.ge.s32.totalorder %v1502, 1
        %vm1506 = vcmp.ge.s32.totalorder %v1503, 1
        %vm1507 = vcmp.le.s32.totalorder %v1501, 16
        %vm1508 = vcmp.le.s32.totalorder %v1502, 16
        %vm1509 = vcmp.le.s32.totalorder %v1503, 16
        %vm1510 = vmand %vm1504, %vm1507
        %vm1511 = vmand %vm1505, %vm1508
        %vm1512 = vmand %vm1506, %vm1509
        %v1513 = vsel %vm1510, 1, 0
        %v1514 = vsel %vm1511, 1, 0
        %v1515 = vsel %vm1512, 1, 0
        %v1516 = vcvt.s32.f32 %v1513
        %v1517 = vcvt.s32.f32 %v1514
        %v1518 = vcvt.s32.f32 %v1515
        %v1519 = vld [vmem:[%s0 + $0x74] sm:$0x1]
        %v1520 = vlaneseq
        %v1521 = vshrl.u32 %v1520, 7
        %v1522 = vsub.s32 0, %v1521
        %v1523 = vrot.slane %v1519, %v1522
        %v1524 = vmul.f32 %v1516, %v1523
        %v1525 = vmul.f32 %v1517, %v1523
        %v1526 = vmul.f32 %v1518, %v1523
        %v1527 = vadd.f32 %v1468, %v1497
        %v1528 = vadd.f32 %v1469, %v1498
        %v1529 = vadd.f32 %v1470, %v1499
        %v1530 = vld [vmem:[%s0 + $0x49] sm:$0x1]
        %v1531 = vlaneseq
        %v1532 = vshrl.u32 %v1531, 7
        %v1533 = vsub.s32 0, %v1532
        %v1534 = vrot.slane %v1530, %v1533
        %v1535 = vadd.f32 %v1527, %v1534
        %v1536 = vadd.f32 %v1528, %v1534
        %v1537 = vadd.f32 %v1529, %v1534
        %v1538 = vmax.f32 %v1535, 0.0
        %v1539 = vmax.f32 %v1536, 0.0
        %v1540 = vmax.f32 %v1537, 0.0
        %v1541 = vmul.f32 %v1538, %v1524
        %v1542 = vmul.f32 %v1539, %v1525
        %v1543 = vmul.f32 %v1540, %v1526
        %1544 = vst [vmem:[#allocation5] sm:$0xff] %v1541
        %1545 = vst [vmem:[#allocation5 + $0x10] sm:$0xff] %v1542
        %1546 = vst [vmem:[#allocation5 + $0x20] sm:$0x3] %v1543
        %1547 = vst [vmem:[#allocation5 + $0x8] sm:$0xff] %v1541
        %1548 = vst [vmem:[#allocation5 + $0x18] sm:$0xff] %v1542
        %1549 = vst [vmem:[#allocation5 + $0x28] sm:$0x3] %v1543
        %v1550 = vld [vmem:[%s0 + $0x4a] sm:$0x1]
        %v1551 = vld [vmem:[#allocation5] sm:$0xff]
        %v1552 = vld [vmem:[#allocation5 + $0x10] sm:$0xff]
        %v1553 = vlaneseq
        %v1554 = vshrl.u32 %v1553, 7
        %v1555 = vsub.s32 0, %v1554
        %v1556 = vrot.slane %v1550, %v1555
        %v1557 = vmul.f32 %v1556, %v1551
        %v1558 = vmul.f32 %v1556, %v1552
        %v1559 = vld [vmem:[%s0 + $0x4b] sm:$0x1]
        %v1560 = vld [vmem:[#allocation5 + $0x8] sm:$0xff]
        %v1561 = vld [vmem:[#allocation5 + $0x18] sm:$0xff]
        %v1562 = vlaneseq
        %v1563 = vshrl.u32 %v1562, 7
        %v1564 = vsub.s32 0, %v1563
        %v1565 = vrot.slane %v1559, %v1564
        %1570 = vrot.lane.b32.xlu0 %v1551, 127
        %v1571 = vpop.permute.xlu0 %1570
        %1572 = vrot.lane.b32.xlu0 %v1560, 127
        %v1573 = vpop.permute.xlu0 %1572
        %1574 = vrot.lane.b32.xlu0 %v1552, 127
        %v1575 = vpop.permute.xlu0 %1574
        %1576 = vrot.lane.b32.xlu0 %v1561, 127
        %v1577 = vpop.permute.xlu0 %1576
        %v1578 = vsel %vm178, %v1571, %v1573
        %v1579 = vsel %vm178, %v1575, %v1577
        %v1582 = vmul.f32 %v1565, %v1578
        %v1583 = vmul.f32 %v1565, %v1579
        %v1584 = vld [vmem:[%s0 + $0x4c] sm:$0x1]
        %v1585 = vlaneseq
        %v1586 = vshrl.u32 %v1585, 7
        %v1587 = vsub.s32 0, %v1586
        %v1588 = vrot.slane %v1584, %v1587
        %1589 = vrot.lane.b32.xlu0 %v1551, 126
        %v1590 = vpop.permute.xlu0 %1589
        %1591 = vrot.lane.b32.xlu0 %v1560, 126
        %v1592 = vpop.permute.xlu0 %1591
        %1593 = vrot.lane.b32.xlu0 %v1552, 126
        %v1594 = vpop.permute.xlu0 %1593
        %1595 = vrot.lane.b32.xlu0 %v1561, 126
        %v1596 = vpop.permute.xlu0 %1595
        %v1597 = vsel %vm213, %v1590, %v1592
        %v1598 = vsel %vm213, %v1594, %v1596
        %v1601 = vmul.f32 %v1588, %v1597
        %v1602 = vmul.f32 %v1588, %v1598
        %v1603 = vadd.f32 %v1557, %v1601
        %v1604 = vadd.f32 %v1558, %v1602
        %v1605 = vld [vmem:[%s0 + $0x4d] sm:$0x1]
        %v1606 = vld [vmem:[#allocation5] sm:$0xfe]
        %v1607 = vld [vmem:[#allocation5 + $0x20] sm:$0x1]
        %v1608 = vlaneseq
        %v1609 = vshrl.u32 %v1608, 7
        %v1610 = vsub.s32 0, %v1609
        %v1611 = vrot.slane %v1605, %v1610
        %v1612 = vmul.f32 %v1611, %v1606
        %v1613 = vmul.f32 %v1611, %v1552
        %v1614 = vmul.f32 %v1611, %v1607
        %vm1618 = vcmask 1046528
        %v1619 = vrot.slane %v1612, 1
        %v1620 = vrot.slane %v1613, 1
        %v1621 = vsel %vm1618, %v1619, %v1620
        %v1622 = vrot.slane %v1614, 1
        %v1623 = vsel %vm1618, %v1620, %v1622
        %v1626 = vadd.f32 %v1582, %v1621
        %v1627 = vadd.f32 %v1583, %v1623
        %v1628 = vld [vmem:[%s0 + $0x4e] sm:$0x1]
        %v1629 = vld [vmem:[#allocation5 + $0x8] sm:$0xfe]
        %v1630 = vld [vmem:[#allocation5 + $0x28] sm:$0x1]
        %v1631 = vlaneseq
        %v1632 = vshrl.u32 %v1631, 7
        %v1633 = vsub.s32 0, %v1632
        %v1634 = vrot.slane %v1628, %v1633
        %v1639 = vrot.slane %v1606, 1
        %v1640 = vrot.slane %v1552, 1
        %v1641 = vsel %vm1618, %v1639, %v1640
        %v1642 = vrot.slane %v1629, 1
        %v1643 = vrot.slane %v1561, 1
        %v1644 = vsel %vm1618, %v1642, %v1643
        %v1645 = vrot.slane %v1607, 1
        %v1646 = vsel %vm1618, %v1640, %v1645
        %v1647 = vrot.slane %v1630, 1
        %v1648 = vsel %vm1618, %v1643, %v1647
        %1649 = vrot.lane.b32.xlu0 %v1641, 127
        %v1650 = vpop.permute.xlu0 %1649
        %1651 = vrot.lane.b32.xlu0 %v1644, 127
        %v1652 = vpop.permute.xlu0 %1651
        %1653 = vrot.lane.b32.xlu0 %v1646, 127
        %v1654 = vpop.permute.xlu0 %1653
        %1655 = vrot.lane.b32.xlu0 %v1648, 127
        %v1656 = vpop.permute.xlu0 %1655
        %v1657 = vsel %vm178, %v1650, %v1652
        %v1658 = vsel %vm178, %v1654, %v1656
        %v1661 = vmul.f32 %v1634, %v1657
        %v1662 = vmul.f32 %v1634, %v1658
        %v1663 = vadd.f32 %v1603, %v1661
        %v1664 = vadd.f32 %v1604, %v1662
        %v1665 = vld [vmem:[%s0 + $0x4f] sm:$0x1]
        %v1666 = vlaneseq
        %v1667 = vshrl.u32 %v1666, 7
        %v1668 = vsub.s32 0, %v1667
        %v1669 = vrot.slane %v1665, %v1668
        %1670 = vrot.lane.b32.xlu0 %v1641, 126
        %v1671 = vpop.permute.xlu0 %1670
        %1672 = vrot.lane.b32.xlu0 %v1644, 126
        %v1673 = vpop.permute.xlu0 %1672
        %1674 = vrot.lane.b32.xlu0 %v1646, 126
        %v1675 = vpop.permute.xlu0 %1674
        %1676 = vrot.lane.b32.xlu0 %v1648, 126
        %v1677 = vpop.permute.xlu0 %1676
        %v1678 = vsel %vm213, %v1671, %v1673
        %v1679 = vsel %vm213, %v1675, %v1677
        %v1682 = vmul.f32 %v1669, %v1678
        %v1683 = vmul.f32 %v1669, %v1679
        %v1684 = vadd.f32 %v1626, %v1682
        %v1685 = vadd.f32 %v1627, %v1683
        %v1686 = vld [vmem:[%s0 + $0x50] sm:$0x1]
        %v1687 = vld [vmem:[#allocation5] sm:$0xfc]
        %v1688 = vld [vmem:[#allocation5 + $0x20] sm:$0x3]
        %v1689 = vlaneseq
        %v1690 = vshrl.u32 %v1689, 7
        %v1691 = vsub.s32 0, %v1690
        %v1692 = vrot.slane %v1686, %v1691
        %v1693 = vmul.f32 %v1692, %v1687
        %v1694 = vmul.f32 %v1692, %v1552
        %v1695 = vmul.f32 %v1692, %v1688
        %vm1699 = vcmask 1045504
        %v1700 = vrot.slane %v1693, 2
        %v1701 = vrot.slane %v1694, 2
        %v1702 = vsel %vm1699, %v1700, %v1701
        %v1703 = vrot.slane %v1695, 2
        %v1704 = vsel %vm1699, %v1701, %v1703
        %v1707 = vadd.f32 %v1663, %v1702
        %v1708 = vadd.f32 %v1664, %v1704
        %v1709 = vld [vmem:[%s0 + $0x51] sm:$0x1]
        %v1710 = vld [vmem:[#allocation5 + $0x8] sm:$0xfc]
        %v1711 = vld [vmem:[#allocation5 + $0x28] sm:$0x3]
        %v1712 = vlaneseq
        %v1713 = vshrl.u32 %v1712, 7
        %v1714 = vsub.s32 0, %v1713
        %v1715 = vrot.slane %v1709, %v1714
        %v1720 = vrot.slane %v1687, 2
        %v1721 = vrot.slane %v1552, 2
        %v1722 = vsel %vm1699, %v1720, %v1721
        %v1723 = vrot.slane %v1710, 2
        %v1724 = vrot.slane %v1561, 2
        %v1725 = vsel %vm1699, %v1723, %v1724
        %v1726 = vrot.slane %v1688, 2
        %v1727 = vsel %vm1699, %v1721, %v1726
        %v1728 = vrot.slane %v1711, 2
        %v1729 = vsel %vm1699, %v1724, %v1728
        %1730 = vrot.lane.b32.xlu0 %v1722, 127
        %v1731 = vpop.permute.xlu0 %1730
        %1732 = vrot.lane.b32.xlu0 %v1725, 127
        %v1733 = vpop.permute.xlu0 %1732
        %1734 = vrot.lane.b32.xlu0 %v1727, 127
        %v1735 = vpop.permute.xlu0 %1734
        %1736 = vrot.lane.b32.xlu0 %v1729, 127
        %v1737 = vpop.permute.xlu0 %1736
        %v1738 = vsel %vm178, %v1731, %v1733
        %v1739 = vsel %vm178, %v1735, %v1737
        %v1742 = vmul.f32 %v1715, %v1738
        %v1743 = vmul.f32 %v1715, %v1739
        %v1744 = vadd.f32 %v1684, %v1742
        %v1745 = vadd.f32 %v1685, %v1743
        %v1746 = vld [vmem:[%s0 + $0x52] sm:$0x1]
        %v1747 = vlaneseq
        %v1748 = vshrl.u32 %v1747, 7
        %v1749 = vsub.s32 0, %v1748
        %v1750 = vrot.slane %v1746, %v1749
        %1751 = vrot.lane.b32.xlu0 %v1722, 126
        %v1752 = vpop.permute.xlu0 %1751
        %1753 = vrot.lane.b32.xlu0 %v1725, 126
        %v1754 = vpop.permute.xlu0 %1753
        %1755 = vrot.lane.b32.xlu0 %v1727, 126
        %v1756 = vpop.permute.xlu0 %1755
        %1757 = vrot.lane.b32.xlu0 %v1729, 126
        %v1758 = vpop.permute.xlu0 %1757
        %v1759 = vsel %vm213, %v1752, %v1754
        %v1760 = vsel %vm213, %v1756, %v1758
        %v1763 = vmul.f32 %v1750, %v1759
        %v1764 = vmul.f32 %v1750, %v1760
        %v1765 = vadd.f32 %v1707, %v1763
        %v1766 = vadd.f32 %v1708, %v1764
        %v1767 = vld [vmem:[%s0 + $0x53] sm:$0x1]
        %v1768 = vlaneseq
        %v1769 = vshrl.u32 %v1768, 7
        %v1770 = vsub.s32 0, %v1769
        %v1771 = vrot.slane %v1767, %v1770
        %1772 = vrot.lane.b32.xlu0 %v1551, 96
        %v1773 = vpop.permute.xlu0 %1772
        %1774 = vrot.lane.b32.xlu0 %v1560, 96
        %v1775 = vpop.permute.xlu0 %1774
        %1776 = vrot.lane.b32.xlu0 %v1552, 96
        %v1777 = vpop.permute.xlu0 %1776
        %1778 = vrot.lane.b32.xlu0 %v1561, 96
        %v1779 = vpop.permute.xlu0 %1778
        %v1780 = vsel %vm500, %v1773, %v1775
        %v1781 = vsel %vm500, %v1777, %v1779
        %v1784 = vmul.f32 %v1771, %v1780
        %v1785 = vmul.f32 %v1771, %v1781
        %v1786 = vadd.f32 %v1744, %v1784
        %v1787 = vadd.f32 %v1745, %v1785
        %v1788 = vld [vmem:[%s0 + $0x54] sm:$0x1]
        %v1789 = vlaneseq
        %v1790 = vshrl.u32 %v1789, 7
        %v1791 = vsub.s32 0, %v1790
        %v1792 = vrot.slane %v1788, %v1791
        %1793 = vrot.lane.b32.xlu0 %v1551, 95
        %v1794 = vpop.permute.xlu0 %1793
        %1795 = vrot.lane.b32.xlu0 %v1560, 95
        %v1796 = vpop.permute.xlu0 %1795
        %1797 = vrot.lane.b32.xlu0 %v1552, 95
        %v1798 = vpop.permute.xlu0 %1797
        %1799 = vrot.lane.b32.xlu0 %v1561, 95
        %v1800 = vpop.permute.xlu0 %1799
        %vm1801 = vcmask 777216
        %v1802 = vsel %vm1801, %v1794, %v1796
        %v1803 = vsel %vm1801, %v1798, %v1800
        %v1806 = vmul.f32 %v1792, %v1802
        %v1807 = vmul.f32 %v1792, %v1803
        %v1808 = vadd.f32 %v1765, %v1806
        %v1809 = vadd.f32 %v1766, %v1807
        %v1810 = vld [vmem:[%s0 + $0x55] sm:$0x1]
        %v1811 = vlaneseq
        %v1812 = vshrl.u32 %v1811, 7
        %v1813 = vsub.s32 0, %v1812
        %v1814 = vrot.slane %v1810, %v1813
        %1815 = vrot.lane.b32.xlu0 %v1551, 94
        %v1816 = vpop.permute.xlu0 %1815
        %1817 = vrot.lane.b32.xlu0 %v1560, 94
        %v1818 = vpop.permute.xlu0 %1817
        %1819 = vrot.lane.b32.xlu0 %v1552, 94
        %v1820 = vpop.permute.xlu0 %1819
        %1821 = vrot.lane.b32.xlu0 %v1561, 94
        %v1822 = vpop.permute.xlu0 %1821
        %vm1823 = vcmask 769024
        %v1824 = vsel %vm1823, %v1816, %v1818
        %v1825 = vsel %vm1823, %v1820, %v1822
        %v1828 = vmul.f32 %v1814, %v1824
        %v1829 = vmul.f32 %v1814, %v1825
        %v1830 = vadd.f32 %v1786, %v1828
        %v1831 = vadd.f32 %v1787, %v1829
        %v1832 = vld [vmem:[%s0 + $0x56] sm:$0x1]
        %v1833 = vlaneseq
        %v1834 = vshrl.u32 %v1833, 7
        %v1835 = vsub.s32 0, %v1834
        %v1836 = vrot.slane %v1832, %v1835
        %1837 = vrot.lane.b32.xlu0 %v1641, 96
        %v1838 = vpop.permute.xlu0 %1837
        %1839 = vrot.lane.b32.xlu0 %v1644, 96
        %v1840 = vpop.permute.xlu0 %1839
        %1841 = vrot.lane.b32.xlu0 %v1646, 96
        %v1842 = vpop.permute.xlu0 %1841
        %1843 = vrot.lane.b32.xlu0 %v1648, 96
        %v1844 = vpop.permute.xlu0 %1843
        %v1845 = vsel %vm500, %v1838, %v1840
        %v1846 = vsel %vm500, %v1842, %v1844
        %v1849 = vmul.f32 %v1836, %v1845
        %v1850 = vmul.f32 %v1836, %v1846
        %v1851 = vadd.f32 %v1808, %v1849
        %v1852 = vadd.f32 %v1809, %v1850
        %v1853 = vld [vmem:[%s0 + $0x57] sm:$0x1]
        %v1854 = vlaneseq
        %v1855 = vshrl.u32 %v1854, 7
        %v1856 = vsub.s32 0, %v1855
        %v1857 = vrot.slane %v1853, %v1856
        %1858 = vrot.lane.b32.xlu0 %v1641, 95
        %v1859 = vpop.permute.xlu0 %1858
        %1860 = vrot.lane.b32.xlu0 %v1644, 95
        %v1861 = vpop.permute.xlu0 %1860
        %1862 = vrot.lane.b32.xlu0 %v1646, 95
        %v1863 = vpop.permute.xlu0 %1862
        %1864 = vrot.lane.b32.xlu0 %v1648, 95
        %v1865 = vpop.permute.xlu0 %1864
        %v1866 = vsel %vm1801, %v1859, %v1861
        %v1867 = vsel %vm1801, %v1863, %v1865
        %v1870 = vmul.f32 %v1857, %v1866
        %v1871 = vmul.f32 %v1857, %v1867
        %v1872 = vadd.f32 %v1830, %v1870
        %v1873 = vadd.f32 %v1831, %v1871
        %v1874 = vld [vmem:[%s0 + $0x58] sm:$0x1]
        %v1875 = vlaneseq
        %v1876 = vshrl.u32 %v1875, 7
        %v1877 = vsub.s32 0, %v1876
        %v1878 = vrot.slane %v1874, %v1877
        %1879 = vrot.lane.b32.xlu0 %v1641, 94
        %v1880 = vpop.permute.xlu0 %1879
        %1881 = vrot.lane.b32.xlu0 %v1644, 94
        %v1882 = vpop.permute.xlu0 %1881
        %1883 = vrot.lane.b32.xlu0 %v1646, 94
        %v1884 = vpop.permute.xlu0 %1883
        %1885 = vrot.lane.b32.xlu0 %v1648, 94
        %v1886 = vpop.permute.xlu0 %1885
        %v1887 = vsel %vm1823, %v1880, %v1882
        %v1888 = vsel %vm1823, %v1884, %v1886
        %v1891 = vmul.f32 %v1878, %v1887
        %v1892 = vmul.f32 %v1878, %v1888
        %v1893 = vadd.f32 %v1851, %v1891
        %v1894 = vadd.f32 %v1852, %v1892
        %v1895 = vld [vmem:[%s0 + $0x59] sm:$0x1]
        %v1896 = vlaneseq
        %v1897 = vshrl.u32 %v1896, 7
        %v1898 = vsub.s32 0, %v1897
        %v1899 = vrot.slane %v1895, %v1898
        %1900 = vrot.lane.b32.xlu0 %v1722, 96
        %v1901 = vpop.permute.xlu0 %1900
        %1902 = vrot.lane.b32.xlu0 %v1725, 96
        %v1903 = vpop.permute.xlu0 %1902
        %1904 = vrot.lane.b32.xlu0 %v1727, 96
        %v1905 = vpop.permute.xlu0 %1904
        %1906 = vrot.lane.b32.xlu0 %v1729, 96
        %v1907 = vpop.permute.xlu0 %1906
        %v1908 = vsel %vm500, %v1901, %v1903
        %v1909 = vsel %vm500, %v1905, %v1907
        %v1912 = vmul.f32 %v1899, %v1908
        %v1913 = vmul.f32 %v1899, %v1909
        %v1914 = vadd.f32 %v1872, %v1912
        %v1915 = vadd.f32 %v1873, %v1913
        %v1916 = vld [vmem:[%s0 + $0x5a] sm:$0x1]
        %v1917 = vlaneseq
        %v1918 = vshrl.u32 %v1917, 7
        %v1919 = vsub.s32 0, %v1918
        %v1920 = vrot.slane %v1916, %v1919
        %1921 = vrot.lane.b32.xlu0 %v1722, 95
        %v1922 = vpop.permute.xlu0 %1921
        %1923 = vrot.lane.b32.xlu0 %v1725, 95
        %v1924 = vpop.permute.xlu0 %1923
        %1925 = vrot.lane.b32.xlu0 %v1727, 95
        %v1926 = vpop.permute.xlu0 %1925
        %1927 = vrot.lane.b32.xlu0 %v1729, 95
        %v1928 = vpop.permute.xlu0 %1927
        %v1929 = vsel %vm1801, %v1922, %v1924
        %v1930 = vsel %vm1801, %v1926, %v1928
        %v1933 = vmul.f32 %v1920, %v1929
        %v1934 = vmul.f32 %v1920, %v1930
        %v1935 = vadd.f32 %v1893, %v1933
        %v1936 = vadd.f32 %v1894, %v1934
        %v1937 = vld [vmem:[%s0 + $0x5b] sm:$0x1]
        %v1938 = vlaneseq
        %v1939 = vshrl.u32 %v1938, 7
        %v1940 = vsub.s32 0, %v1939
        %v1941 = vrot.slane %v1937, %v1940
        %1942 = vrot.lane.b32.xlu0 %v1722, 94
        %v1943 = vpop.permute.xlu0 %1942
        %1944 = vrot.lane.b32.xlu0 %v1725, 94
        %v1945 = vpop.permute.xlu0 %1944
        %1946 = vrot.lane.b32.xlu0 %v1727, 94
        %v1947 = vpop.permute.xlu0 %1946
        %1948 = vrot.lane.b32.xlu0 %v1729, 94
        %v1949 = vpop.permute.xlu0 %1948
        %v1950 = vsel %vm1823, %v1943, %v1945
        %v1951 = vsel %vm1823, %v1947, %v1949
        %v1954 = vmul.f32 %v1941, %v1950
        %v1955 = vmul.f32 %v1941, %v1951
        %v1956 = vadd.f32 %v1914, %v1954
        %v1957 = vadd.f32 %v1915, %v1955
        %v1958 = vld [vmem:[%s0 + $0x5c] sm:$0x1]
        %v1959 = vlaneseq
        %v1960 = vshrl.u32 %v1959, 7
        %v1961 = vsub.s32 0, %v1960
        %v1962 = vrot.slane %v1958, %v1961
        %1963 = vrot.lane.b32.xlu0 %v1551, 64
        %v1964 = vpop.permute.xlu0 %1963
        %1965 = vrot.lane.b32.xlu0 %v1560, 64
        %v1966 = vpop.permute.xlu0 %1965
        %1967 = vrot.lane.b32.xlu0 %v1552, 64
        %v1968 = vpop.permute.xlu0 %1967
        %1969 = vrot.lane.b32.xlu0 %v1561, 64
        %v1970 = vpop.permute.xlu0 %1969
        %v1971 = vsel %vm522, %v1964, %v1966
        %v1972 = vsel %vm522, %v1968, %v1970
        %v1975 = vmul.f32 %v1962, %v1971
        %v1976 = vmul.f32 %v1962, %v1972
        %v1977 = vadd.f32 %v1935, %v1975
        %v1978 = vadd.f32 %v1936, %v1976
        %v1979 = vld [vmem:[%s0 + $0x5d] sm:$0x1]
        %v1980 = vlaneseq
        %v1981 = vshrl.u32 %v1980, 7
        %v1982 = vsub.s32 0, %v1981
        %v1983 = vrot.slane %v1979, %v1982
        %1984 = vrot.lane.b32.xlu0 %v1551, 63
        %v1985 = vpop.permute.xlu0 %1984
        %1986 = vrot.lane.b32.xlu0 %v1560, 63
        %v1987 = vpop.permute.xlu0 %1986
        %1988 = vrot.lane.b32.xlu0 %v1552, 63
        %v1989 = vpop.permute.xlu0 %1988
        %1990 = vrot.lane.b32.xlu0 %v1561, 63
        %v1991 = vpop.permute.xlu0 %1990
        %vm1992 = vcmask 515072
        %v1993 = vsel %vm1992, %v1985, %v1987
        %v1994 = vsel %vm1992, %v1989, %v1991
        %v1997 = vmul.f32 %v1983, %v1993
        %v1998 = vmul.f32 %v1983, %v1994
        %v1999 = vadd.f32 %v1956, %v1997
        %v2000 = vadd.f32 %v1957, %v1998
        %v2001 = vld [vmem:[%s0 + $0x5e] sm:$0x1]
        %v2002 = vlaneseq
        %v2003 = vshrl.u32 %v2002, 7
        %v2004 = vsub.s32 0, %v2003
        %v2005 = vrot.slane %v2001, %v2004
        %2006 = vrot.lane.b32.xlu0 %v1551, 62
        %v2007 = vpop.permute.xlu0 %2006
        %2008 = vrot.lane.b32.xlu0 %v1560, 62
        %v2009 = vpop.permute.xlu0 %2008
        %2010 = vrot.lane.b32.xlu0 %v1552, 62
        %v2011 = vpop.permute.xlu0 %2010
        %2012 = vrot.lane.b32.xlu0 %v1561, 62
        %v2013 = vpop.permute.xlu0 %2012
        %vm2014 = vcmask 506880
        %v2015 = vsel %vm2014, %v2007, %v2009
        %v2016 = vsel %vm2014, %v2011, %v2013
        %v2019 = vmul.f32 %v2005, %v2015
        %v2020 = vmul.f32 %v2005, %v2016
        %v2021 = vadd.f32 %v1977, %v2019
        %v2022 = vadd.f32 %v1978, %v2020
        %v2023 = vld [vmem:[%s0 + $0x5f] sm:$0x1]
        %v2024 = vlaneseq
        %v2025 = vshrl.u32 %v2024, 7
        %v2026 = vsub.s32 0, %v2025
        %v2027 = vrot.slane %v2023, %v2026
        %2028 = vrot.lane.b32.xlu0 %v1641, 64
        %v2029 = vpop.permute.xlu0 %2028
        %2030 = vrot.lane.b32.xlu0 %v1644, 64
        %v2031 = vpop.permute.xlu0 %2030
        %2032 = vrot.lane.b32.xlu0 %v1646, 64
        %v2033 = vpop.permute.xlu0 %2032
        %2034 = vrot.lane.b32.xlu0 %v1648, 64
        %v2035 = vpop.permute.xlu0 %2034
        %v2036 = vsel %vm522, %v2029, %v2031
        %v2037 = vsel %vm522, %v2033, %v2035
        %v2040 = vmul.f32 %v2027, %v2036
        %v2041 = vmul.f32 %v2027, %v2037
        %v2042 = vadd.f32 %v1999, %v2040
        %v2043 = vadd.f32 %v2000, %v2041
        %v2044 = vld [vmem:[%s0 + $0x60] sm:$0x1]
        %v2045 = vlaneseq
        %v2046 = vshrl.u32 %v2045, 7
        %v2047 = vsub.s32 0, %v2046
        %v2048 = vrot.slane %v2044, %v2047
        %2049 = vrot.lane.b32.xlu0 %v1641, 63
        %v2050 = vpop.permute.xlu0 %2049
        %2051 = vrot.lane.b32.xlu0 %v1644, 63
        %v2052 = vpop.permute.xlu0 %2051
        %2053 = vrot.lane.b32.xlu0 %v1646, 63
        %v2054 = vpop.permute.xlu0 %2053
        %2055 = vrot.lane.b32.xlu0 %v1648, 63
        %v2056 = vpop.permute.xlu0 %2055
        %v2057 = vsel %vm1992, %v2050, %v2052
        %v2058 = vsel %vm1992, %v2054, %v2056
        %v2061 = vmul.f32 %v2048, %v2057
        %v2062 = vmul.f32 %v2048, %v2058
        %v2063 = vadd.f32 %v2021, %v2061
        %v2064 = vadd.f32 %v2022, %v2062
        %v2065 = vld [vmem:[%s0 + $0x61] sm:$0x1]
        %v2066 = vlaneseq
        %v2067 = vshrl.u32 %v2066, 7
        %v2068 = vsub.s32 0, %v2067
        %v2069 = vrot.slane %v2065, %v2068
        %2070 = vrot.lane.b32.xlu0 %v1641, 62
        %v2071 = vpop.permute.xlu0 %2070
        %2072 = vrot.lane.b32.xlu0 %v1644, 62
        %v2073 = vpop.permute.xlu0 %2072
        %2074 = vrot.lane.b32.xlu0 %v1646, 62
        %v2075 = vpop.permute.xlu0 %2074
        %2076 = vrot.lane.b32.xlu0 %v1648, 62
        %v2077 = vpop.permute.xlu0 %2076
        %v2078 = vsel %vm2014, %v2071, %v2073
        %v2079 = vsel %vm2014, %v2075, %v2077
        %v2082 = vmul.f32 %v2069, %v2078
        %v2083 = vmul.f32 %v2069, %v2079
        %v2084 = vadd.f32 %v2042, %v2082
        %v2085 = vadd.f32 %v2043, %v2083
        %v2086 = vld [vmem:[%s0 + $0x62] sm:$0x1]
        %v2087 = vlaneseq
        %v2088 = vshrl.u32 %v2087, 7
        %v2089 = vsub.s32 0, %v2088
        %v2090 = vrot.slane %v2086, %v2089
        %2091 = vrot.lane.b32.xlu0 %v1722, 64
        %v2092 = vpop.permute.xlu0 %2091
        %2093 = vrot.lane.b32.xlu0 %v1725, 64
        %v2094 = vpop.permute.xlu0 %2093
        %2095 = vrot.lane.b32.xlu0 %v1727, 64
        %v2096 = vpop.permute.xlu0 %2095
        %2097 = vrot.lane.b32.xlu0 %v1729, 64
        %v2098 = vpop.permute.xlu0 %2097
        %v2099 = vsel %vm522, %v2092, %v2094
        %v2100 = vsel %vm522, %v2096, %v2098
        %v2103 = vmul.f32 %v2090, %v2099
        %v2104 = vmul.f32 %v2090, %v2100
        %v2105 = vadd.f32 %v2063, %v2103
        %v2106 = vadd.f32 %v2064, %v2104
        %v2107 = vld [vmem:[%s0 + $0x63] sm:$0x1]
        %v2108 = vlaneseq
        %v2109 = vshrl.u32 %v2108, 7
        %v2110 = vsub.s32 0, %v2109
        %v2111 = vrot.slane %v2107, %v2110
        %2112 = vrot.lane.b32.xlu0 %v1722, 63
        %v2113 = vpop.permute.xlu0 %2112
        %2114 = vrot.lane.b32.xlu0 %v1725, 63
        %v2115 = vpop.permute.xlu0 %2114
        %2116 = vrot.lane.b32.xlu0 %v1727, 63
        %v2117 = vpop.permute.xlu0 %2116
        %2118 = vrot.lane.b32.xlu0 %v1729, 63
        %v2119 = vpop.permute.xlu0 %2118
        %v2120 = vsel %vm1992, %v2113, %v2115
        %v2121 = vsel %vm1992, %v2117, %v2119
        %v2124 = vmul.f32 %v2111, %v2120
        %v2125 = vmul.f32 %v2111, %v2121
        %v2126 = vadd.f32 %v2084, %v2124
        %v2127 = vadd.f32 %v2085, %v2125
        %v2128 = vld [vmem:[%s0 + $0x64] sm:$0x1]
        %v2129 = vlaneseq
        %v2130 = vshrl.u32 %v2129, 7
        %v2131 = vsub.s32 0, %v2130
        %v2132 = vrot.slane %v2128, %v2131
        %2133 = vrot.lane.b32.xlu0 %v1722, 62
        %v2134 = vpop.permute.xlu0 %2133
        %2135 = vrot.lane.b32.xlu0 %v1725, 62
        %v2136 = vpop.permute.xlu0 %2135
        %2137 = vrot.lane.b32.xlu0 %v1727, 62
        %v2138 = vpop.permute.xlu0 %2137
        %2139 = vrot.lane.b32.xlu0 %v1729, 62
        %v2140 = vpop.permute.xlu0 %2139
        %v2141 = vsel %vm2014, %v2134, %v2136
        %v2142 = vsel %vm2014, %v2138, %v2140
        %v2145 = vmul.f32 %v2132, %v2141
        %v2146 = vmul.f32 %v2132, %v2142
        %v2147 = vadd.f32 %v2105, %v2145
        %v2148 = vadd.f32 %v2106, %v2146
        %v2149 = vld [vmem:[%s0 + $0x65] sm:$0x1]
        %v2150 = vlaneseq
        %v2151 = vshrl.u32 %v2150, 7
        %v2152 = vsub.s32 0, %v2151
        %v2153 = vrot.slane %v2149, %v2152
        %2154 = vrot.lane.b32.xlu0 %v1551, 32
        %v2155 = vpop.permute.xlu0 %2154
        %2156 = vrot.lane.b32.xlu0 %v1560, 32
        %v2157 = vpop.permute.xlu0 %2156
        %2158 = vrot.lane.b32.xlu0 %v1552, 32
        %v2159 = vpop.permute.xlu0 %2158
        %2160 = vrot.lane.b32.xlu0 %v1561, 32
        %v2161 = vpop.permute.xlu0 %2160
        %v2162 = vsel %vm544, %v2155, %v2157
        %v2163 = vsel %vm544, %v2159, %v2161
        %v2166 = vmul.f32 %v2153, %v2162
        %v2167 = vmul.f32 %v2153, %v2163
        %v2168 = vadd.f32 %v2126, %v2166
        %v2169 = vadd.f32 %v2127, %v2167
        %v2170 = vld [vmem:[%s0 + $0x66] sm:$0x1]
        %v2171 = vlaneseq
        %v2172 = vshrl.u32 %v2171, 7
        %v2173 = vsub.s32 0, %v2172
        %v2174 = vrot.slane %v2170, %v2173
        %2175 = vrot.lane.b32.xlu0 %v1551, 31
        %v2176 = vpop.permute.xlu0 %2175
        %2177 = vrot.lane.b32.xlu0 %v1560, 31
        %v2178 = vpop.permute.xlu0 %2177
        %2179 = vrot.lane.b32.xlu0 %v1552, 31
        %v2180 = vpop.permute.xlu0 %2179
        %2181 = vrot.lane.b32.xlu0 %v1561, 31
        %v2182 = vpop.permute.xlu0 %2181
        %vm2183 = vcmask 252928
        %v2184 = vsel %vm2183, %v2176, %v2178
        %v2185 = vsel %vm2183, %v2180, %v2182
        %v2188 = vmul.f32 %v2174, %v2184
        %v2189 = vmul.f32 %v2174, %v2185
        %v2190 = vadd.f32 %v2147, %v2188
        %v2191 = vadd.f32 %v2148, %v2189
        %v2192 = vld [vmem:[%s0 + $0x67] sm:$0x1]
        %v2193 = vlaneseq
        %v2194 = vshrl.u32 %v2193, 7
        %v2195 = vsub.s32 0, %v2194
        %v2196 = vrot.slane %v2192, %v2195
        %2197 = vrot.lane.b32.xlu0 %v1551, 30
        %v2198 = vpop.permute.xlu0 %2197
        %2199 = vrot.lane.b32.xlu0 %v1560, 30
        %v2200 = vpop.permute.xlu0 %2199
        %2201 = vrot.lane.b32.xlu0 %v1552, 30
        %v2202 = vpop.permute.xlu0 %2201
        %2203 = vrot.lane.b32.xlu0 %v1561, 30
        %v2204 = vpop.permute.xlu0 %2203
        %vm2205 = vcmask 244736
        %v2206 = vsel %vm2205, %v2198, %v2200
        %v2207 = vsel %vm2205, %v2202, %v2204
        %v2210 = vmul.f32 %v2196, %v2206
        %v2211 = vmul.f32 %v2196, %v2207
        %v2212 = vadd.f32 %v2168, %v2210
        %v2213 = vadd.f32 %v2169, %v2211
        %v2214 = vld [vmem:[%s0 + $0x68] sm:$0x1]
        %v2215 = vlaneseq
        %v2216 = vshrl.u32 %v2215, 7
        %v2217 = vsub.s32 0, %v2216
        %v2218 = vrot.slane %v2214, %v2217
        %2219 = vrot.lane.b32.xlu0 %v1641, 32
        %v2220 = vpop.permute.xlu0 %2219
        %2221 = vrot.lane.b32.xlu0 %v1644, 32
        %v2222 = vpop.permute.xlu0 %2221
        %2223 = vrot.lane.b32.xlu0 %v1646, 32
        %v2224 = vpop.permute.xlu0 %2223
        %2225 = vrot.lane.b32.xlu0 %v1648, 32
        %v2226 = vpop.permute.xlu0 %2225
        %v2227 = vsel %vm544, %v2220, %v2222
        %v2228 = vsel %vm544, %v2224, %v2226
        %v2231 = vmul.f32 %v2218, %v2227
        %v2232 = vmul.f32 %v2218, %v2228
        %v2233 = vadd.f32 %v2190, %v2231
        %v2234 = vadd.f32 %v2191, %v2232
        %v2235 = vld [vmem:[%s0 + $0x69] sm:$0x1]
        %v2236 = vlaneseq
        %v2237 = vshrl.u32 %v2236, 7
        %v2238 = vsub.s32 0, %v2237
        %v2239 = vrot.slane %v2235, %v2238
        %2240 = vrot.lane.b32.xlu0 %v1641, 31
        %v2241 = vpop.permute.xlu0 %2240
        %2242 = vrot.lane.b32.xlu0 %v1644, 31
        %v2243 = vpop.permute.xlu0 %2242
        %2244 = vrot.lane.b32.xlu0 %v1646, 31
        %v2245 = vpop.permute.xlu0 %2244
        %2246 = vrot.lane.b32.xlu0 %v1648, 31
        %v2247 = vpop.permute.xlu0 %2246
        %v2248 = vsel %vm2183, %v2241, %v2243
        %v2249 = vsel %vm2183, %v2245, %v2247
        %v2252 = vmul.f32 %v2239, %v2248
        %v2253 = vmul.f32 %v2239, %v2249
        %v2254 = vadd.f32 %v2212, %v2252
        %v2255 = vadd.f32 %v2213, %v2253
        %v2256 = vld [vmem:[%s0 + $0x6a] sm:$0x1]
        %v2257 = vlaneseq
        %v2258 = vshrl.u32 %v2257, 7
        %v2259 = vsub.s32 0, %v2258
        %v2260 = vrot.slane %v2256, %v2259
        %2261 = vrot.lane.b32.xlu0 %v1641, 30
        %v2262 = vpop.permute.xlu0 %2261
        %2263 = vrot.lane.b32.xlu0 %v1644, 30
        %v2264 = vpop.permute.xlu0 %2263
        %2265 = vrot.lane.b32.xlu0 %v1646, 30
        %v2266 = vpop.permute.xlu0 %2265
        %2267 = vrot.lane.b32.xlu0 %v1648, 30
        %v2268 = vpop.permute.xlu0 %2267
        %v2269 = vsel %vm2205, %v2262, %v2264
        %v2270 = vsel %vm2205, %v2266, %v2268
        %v2273 = vmul.f32 %v2260, %v2269
        %v2274 = vmul.f32 %v2260, %v2270
        %v2275 = vadd.f32 %v2233, %v2273
        %v2276 = vadd.f32 %v2234, %v2274
        %v2277 = vld [vmem:[%s0 + $0x6b] sm:$0x1]
        %v2278 = vlaneseq
        %v2279 = vshrl.u32 %v2278, 7
        %v2280 = vsub.s32 0, %v2279
        %v2281 = vrot.slane %v2277, %v2280
        %2282 = vrot.lane.b32.xlu0 %v1722, 32
        %v2283 = vpop.permute.xlu0 %2282
        %2284 = vrot.lane.b32.xlu0 %v1725, 32
        %v2285 = vpop.permute.xlu0 %2284
        %2286 = vrot.lane.b32.xlu0 %v1727, 32
        %v2287 = vpop.permute.xlu0 %2286
        %2288 = vrot.lane.b32.xlu0 %v1729, 32
        %v2289 = vpop.permute.xlu0 %2288
        %v2290 = vsel %vm544, %v2283, %v2285
        %v2291 = vsel %vm544, %v2287, %v2289
        %v2294 = vmul.f32 %v2281, %v2290
        %v2295 = vmul.f32 %v2281, %v2291
        %v2296 = vadd.f32 %v2254, %v2294
        %v2297 = vadd.f32 %v2255, %v2295
        %v2298 = vld [vmem:[%s0 + $0x6c] sm:$0x1]
        %v2299 = vlaneseq
        %v2300 = vshrl.u32 %v2299, 7
        %v2301 = vsub.s32 0, %v2300
        %v2302 = vrot.slane %v2298, %v2301
        %2303 = vrot.lane.b32.xlu0 %v1722, 31
        %v2304 = vpop.permute.xlu0 %2303
        %2305 = vrot.lane.b32.xlu0 %v1725, 31
        %v2306 = vpop.permute.xlu0 %2305
        %2307 = vrot.lane.b32.xlu0 %v1727, 31
        %v2308 = vpop.permute.xlu0 %2307
        %2309 = vrot.lane.b32.xlu0 %v1729, 31
        %v2310 = vpop.permute.xlu0 %2309
        %v2311 = vsel %vm2183, %v2304, %v2306
        %v2312 = vsel %vm2183, %v2308, %v2310
        %v2315 = vmul.f32 %v2302, %v2311
        %v2316 = vmul.f32 %v2302, %v2312
        %v2317 = vadd.f32 %v2275, %v2315
        %v2318 = vadd.f32 %v2276, %v2316
        %v2319 = vld [vmem:[%s0 + $0x6d] sm:$0x1]
        %v2320 = vlaneseq
        %v2321 = vshrl.u32 %v2320, 7
        %v2322 = vsub.s32 0, %v2321
        %v2323 = vrot.slane %v2319, %v2322
        %2324 = vrot.lane.b32.xlu0 %v1722, 30
        %v2325 = vpop.permute.xlu0 %2324
        %2326 = vrot.lane.b32.xlu0 %v1725, 30
        %v2327 = vpop.permute.xlu0 %2326
        %2328 = vrot.lane.b32.xlu0 %v1727, 30
        %v2329 = vpop.permute.xlu0 %2328
        %2330 = vrot.lane.b32.xlu0 %v1729, 30
        %v2331 = vpop.permute.xlu0 %2330
        %v2332 = vsel %vm2205, %v2325, %v2327
        %v2333 = vsel %vm2205, %v2329, %v2331
        %v2336 = vmul.f32 %v2323, %v2332
        %v2337 = vmul.f32 %v2323, %v2333
        %v2338 = vadd.f32 %v2296, %v2336
        %v2339 = vadd.f32 %v2297, %v2337
        %v2340 = vadd.f32 %v2317, %v2338
        %v2341 = vadd.f32 %v2318, %v2339
        %v2342 = vld [vmem:[%s0 + $0x6e] sm:$0x1]
        %v2343 = vlaneseq
        %v2344 = vshrl.u32 %v2343, 7
        %v2345 = vsub.s32 0, %v2344
        %v2346 = vrot.slane %v2342, %v2345
        %v2347 = vadd.f32 %v2340, %v2346
        %v2348 = vadd.f32 %v2341, %v2346
        %v2349 = vmax.f32 %v2347, 0.0
        %v2350 = vmax.f32 %v2348, 0.0
        %2351 = vst [vmem:[#allocation4] sm:$0xff] %v2349
        %2352 = vst [vmem:[#allocation4 + $0x10] sm:$0xff] %v2350
        %2353 = vst [vmem:[#allocation4 + $0x8] sm:$0xff] %v2349
        %2354 = vst [vmem:[#allocation4 + $0x18] sm:$0xff] %v2350
        %v2355 = vld [vmem:[%s0 + $0x6f] sm:$0x1]
        %v2356 = vlaneseq
        %v2357 = vshrl.u32 %v2356, 7
        %v2358 = vsub.s32 0, %v2357
        %v2359 = vrot.slane %v2355, %v2358
        %v2360 = vmul.f32 %v2359, %v2349
        %v2361 = vmul.f32 %v2359, %v2350
        %v2362 = vld [vmem:[%s0 + $0x70] sm:$0x1]
        %v2363 = vld [vmem:[#allocation4] sm:$0xff]
        %v2364 = vld [vmem:[#allocation4 + $0x8] sm:$0xff]
        %v2365 = vld [vmem:[#allocation4 + $0x10] sm:$0xff]
        %v2366 = vld [vmem:[#allocation4 + $0x18] sm:$0xff]
        %v2367 = vlaneseq
        %v2368 = vshrl.u32 %v2367, 7
        %v2369 = vsub.s32 0, %v2368
        %v2370 = vrot.slane %v2362, %v2369
        %2375 = vrot.lane.b32.xlu0 %v2363, 96
        %v2376 = vpop.permute.xlu0 %2375
        %2377 = vrot.lane.b32.xlu0 %v2364, 96
        %v2378 = vpop.permute.xlu0 %2377
        %2379 = vrot.lane.b32.xlu0 %v2365, 96
        %v2380 = vpop.permute.xlu0 %2379
        %2381 = vrot.lane.b32.xlu0 %v2366, 96
        %v2382 = vpop.permute.xlu0 %2381
        %v2383 = vsel %vm500, %v2376, %v2378
        %v2384 = vsel %vm500, %v2380, %v2382
        %v2387 = vmul.f32 %v2370, %v2383
        %v2388 = vmul.f32 %v2370, %v2384
        %v2389 = vadd.f32 %v2360, %v2387
        %v2390 = vadd.f32 %v2361, %v2388
        %v2391 = vld [vmem:[%s0 + $0x71] sm:$0x1]
        %v2392 = vlaneseq
        %v2393 = vshrl.u32 %v2392, 7
        %v2394 = vsub.s32 0, %v2393
        %v2395 = vrot.slane %v2391, %v2394
        %2396 = vrot.lane.b32.xlu0 %v2363, 64
        %v2397 = vpop.permute.xlu0 %2396
        %2398 = vrot.lane.b32.xlu0 %v2364, 64
        %v2399 = vpop.permute.xlu0 %2398
        %2400 = vrot.lane.b32.xlu0 %v2365, 64
        %v2401 = vpop.permute.xlu0 %2400
        %2402 = vrot.lane.b32.xlu0 %v2366, 64
        %v2403 = vpop.permute.xlu0 %2402
        %v2404 = vsel %vm522, %v2397, %v2399
        %v2405 = vsel %vm522, %v2401, %v2403
        %v2408 = vmul.f32 %v2395, %v2404
        %v2409 = vmul.f32 %v2395, %v2405
        %v2410 = vadd.f32 %v2389, %v2408
        %v2411 = vadd.f32 %v2390, %v2409
        %v2412 = vld [vmem:[%s0 + $0x72] sm:$0x1]
        %v2413 = vlaneseq
        %v2414 = vshrl.u32 %v2413, 7
        %v2415 = vsub.s32 0, %v2414
        %v2416 = vrot.slane %v2412, %v2415
        %2417 = vrot.lane.b32.xlu0 %v2363, 32
        %v2418 = vpop.permute.xlu0 %2417
        %2419 = vrot.lane.b32.xlu0 %v2364, 32
        %v2420 = vpop.permute.xlu0 %2419
        %2421 = vrot.lane.b32.xlu0 %v2365, 32
        %v2422 = vpop.permute.xlu0 %2421
        %2423 = vrot.lane.b32.xlu0 %v2366, 32
        %v2424 = vpop.permute.xlu0 %2423
        %v2425 = vsel %vm544, %v2418, %v2420
        %v2426 = vsel %vm544, %v2422, %v2424
        %v2429 = vmul.f32 %v2416, %v2425
        %v2430 = vmul.f32 %v2416, %v2426
        %v2431 = vadd.f32 %v2410, %v2429
        %v2432 = vadd.f32 %v2411, %v2430
        %v2433 = vld [vmem:[%s0 + $0x73] sm:$0x1]
        %v2434 = vlaneseq
        %v2435 = vshrl.u32 %v2434, 7
        %v2436 = vsub.s32 0, %v2435
        %v2437 = vrot.slane %v2433, %v2436
        %v2438 = vadd.f32 %v2431, %v2437
        %v2439 = vadd.f32 %v2432, %v2437
        %v2440 = vxor.u32 %v2438, 2147483648
        %v2441 = vxor.u32 %v2439, 2147483648
        %v2442 = vmul.f32 %v2440, 1.442695
        %v2443 = vpow.pop %v2442
        %v2444 = vmul.f32 %v2441, 1.442695
        %v2445 = vpow.pop %v2444
        %v2446 = vadd.f32 %v2443, 1.0
        %v2447 = vadd.f32 %v2445, 1.0
        %v2448 = vrcp.pop %v2446
        %v2449 = vmul.f32 1.0, %v2448
        %v2450 = vrcp.pop %v2447
        %v2451 = vmul.f32 1.0, %v2450
        %v2452 = vadd.f32 %v569, 1.0
        %v2453 = vadd.f32 %v571, 1.0
        %v2454 = vmul.f32 %v2449, %v2452
        %v2455 = vmul.f32 %v2451, %v2453
        %v2456 = vld [vmem:[%s290 + $0x4] sm:$0xff]
        %v2457 = vld [vmem:[%s290 + $0xc] sm:$0xff]
        %v2458 = vmul.f32 %v2456, %v2454
        %v2459 = vmul.f32 %v2457, %v2455
        %vm2460 = vcmask 130048
        %2461 = vst.msk [vmem:[%s136] sm:$0xff] %vm2460, %v2458
        %2462 = vst.msk [vmem:[%s136 + $0x8] sm:$0xff] %vm2460, %v2459
        %2465 = vrot.lane.b32.xlu0 %v2458, 96
        %v2466 = vpop.permute.xlu0 %2465
        %2467 = vrot.lane.b32.xlu0 %v2459, 96
        %v2468 = vpop.permute.xlu0 %2467
        %s2471 = scalar_lea.vmem %s136, 16 [#allocation6]
        %2472 = vst.msk [vmem:[%s2471] sm:$0xff] %vm2460, %v2466
        %2473 = vst.msk [vmem:[%s2471 + $0x8] sm:$0xff] %vm2460, %v2468
        %2474 = vrot.lane.b32.xlu0 %v2458, 64
        %v2475 = vpop.permute.xlu0 %2474
        %2476 = vrot.lane.b32.xlu0 %v2459, 64
        %v2477 = vpop.permute.xlu0 %2476
        %s2480 = scalar_lea.vmem %s136, 32 [#allocation6]
        %2481 = vst.msk [vmem:[%s2480] sm:$0xff] %vm2460, %v2475
        %2482 = vst.msk [vmem:[%s2480 + $0x8] sm:$0xff] %vm2460, %v2477
        %2483 = vrot.lane.b32.xlu0 %v2458, 32
        %v2484 = vpop.permute.xlu0 %2483
        %2485 = vrot.lane.b32.xlu0 %v2459, 32
        %v2486 = vpop.permute.xlu0 %2485
        %s2489 = scalar_lea.vmem %s136, 48 [#allocation6]
        %2490 = vst.msk [vmem:[%s2489] sm:$0xff] %vm2460, %v2484
        %2491 = vst.msk [vmem:[%s2489 + $0x8] sm:$0xff] %vm2460, %v2486
        %s2492 = sand.u32 %s71, 1
        %s2493 = scalar_lea.sflag [#allocation7], %s2492
        %s2494 = sand.u32 %s71, 1
        %s2495 = smul.addr %s2494, 64
        %s2496 = scalar_lea.vmem [#allocation6], %s2495
        // Predicated region
        $region29: #{lcea_forward.1} parent=27 // pred_check
          %p2497 = pneg %p81
        $region30: #{lcea_forward.1} parent=27 // pred_check_branch
          %2499 = sbr.rel (%p2497) target = $region32
        $region31: #{lcea_forward.1} parent=27 // pred_region
          %s2501 = ssub.s32 1024, 1024
          %2502 = vsyncadd %s2493, %s2501
          %s2503 = smul.addr %s16, 8
          %s2504 = smul.addr %s2503, 128
          %s2505 = scalar_lea.hbm %s2, %s2504
          %s2506 = sshll.u32 %s2496, 4
          %s2507 = int_to_ptr.vmem [resolvable:$true] %s2506
          %2512 = dma.vmem_to_hbm [thread:$0]  %s2507, 1024, %s2505, %s2493, 128, 128, 8
        $region32: #{lcea_forward.1} parent=27 // pred_fallthru
          _
      $region28: #{lcea_forward.1} parent=5 // pred_fallthru
        _
      %p2513 = scmp.le.s32.totalorder 2, %s11
      // Predicated region
      $region33: #{lcea_forward.1} parent=5 // pred_check
        %p2514 = pneg %p2513
      $region34: #{lcea_forward.1} parent=5 // pred_check_branch
        %2516 = sbr.rel (%p2514) target = $region36
      $region35: #{lcea_forward.1} parent=5 // pred_region
        %s2517 = ssub.s32 %s11, 2
        // Predicated region
        $region37: #{lcea_forward.1} parent=35 // pred_check
          %p2518 = pneg %p87
        $region38: #{lcea_forward.1} parent=35 // pred_check_branch
          %2520 = sbr.rel (%p2518) target = $region40
        $region39: #{lcea_forward.1} parent=35 // pred_region
          %s2521 = sand.u32 %s72, 1
          %s2522 = scalar_lea.sflag [#allocation7], %s2521
          %s2523 = sand.u32 %s72, 1
          %s2524 = smul.addr %s2523, 64
          %s2525 = scalar_lea.vmem [#allocation6], %s2524
          %2526 = dma.done %s2522, 1024
        $region40: #{lcea_forward.1} parent=35 // pred_fallthru
          _
      $region36: #{lcea_forward.1} parent=5 // pred_fallthru
        _
    $region6: #{lcea_forward.1} parent=1 // loop_footer
      %s15 = sadd.s32 1, %s11
    $region7: #{lcea_forward.1} parent=1 // loop_footer_branch
      %10 = sbr.rel target = $region3
    $region8: #{lcea_forward.1} parent=1 // loop_exit
      _
    %2527 = vsyncpa [#allocation7], 1
    %s2528 = scalar_lea.sflag [#allocation7], 1
    %2529 = vsyncpa %s2528, 1

</llo_original>
